<compile_context>
chip_gen: v7x
topology: tpu7x:2x2x1
jax: 0.10.0
libtpu: 0.0.40
codegen_flags: <defaults>
</compile_context>

<pallas_src>
import functools

import jax
import jax.numpy as jnp
from jax import lax
from jax.experimental import pallas as pl
from jax.experimental.pallas import tpu as pltpu


def _residual_block_kernel(x_tile_ref, w1_ref, w2_ref, ab1_ref, ab2_ref, o_ref,
                           *, H, TH, compute_dtype):
    """One (batch, H-tile) per grid step.

    x_tile_ref : (1, TH+4, W+2, Cp)  input tile, padded by 2 rows / 1 col of
                                     zeros on the image border, with a 2-row
                                     halo between tiles (rows h*TH .. h*TH+TH+3
                                     of the 2-padded image).
    w1_ref     : (3, 3*Cp, Cp)       conv1 weights; w1_ref[dy] has rows ordered
                                     [dx-major, cin-minor], cols = cout.
    w2_ref     : (3, 3*Cp, Cp)       conv2 weights, same layout.
    ab1_ref    : (2, Cp)             row0 = fused BN1 scale, row1 = fused BN1
                                     bias (includes conv1 bias).
    ab2_ref    : (2, Cp)             same for conv2/BN2.
    o_ref      : (1, TH, W, Cp)
    """
    W = o_ref.shape[2]
    Cp = o_ref.shape[3]
    h = pl.program_id(1)

    # ---- conv1 on TH+2 "extended" output rows (1-row halo recomputed) ------
    # Build the three column-shifted copies ONCE (shared by all three dy taps);
    # the zero W-padding is already present in the tile (cols 0 and W+1).
    x0 = x_tile_ref[0, :, 0:W, :].astype(compute_dtype)          # col s-1
    x1 = x_tile_ref[0, :, 1:1 + W, :].astype(compute_dtype)      # col s
    x2 = x_tile_ref[0, :, 2:2 + W, :].astype(compute_dtype)      # col s+1
    xcat = jnp.concatenate([x0, x1, x2], axis=-1)                # (TH+4, W, 3*Cp)

    M1 = (TH + 2) * W
    acc1 = jnp.zeros((M1, Cp), jnp.float32)
    for dy in range(3):                                          # 3 wide matmuls, K=3*Cp
        lhs = xcat[dy:dy + TH + 2].reshape(M1, 3 * Cp)
        acc1 = acc1 + jnp.dot(lhs, w1_ref[dy],
                              preferred_element_type=jnp.float32)

    # fused BN1 (+ conv1 bias) and ReLU
    a1 = ab1_ref[0:1, :]
    b1 = ab1_ref[1:2, :]
    y = jnp.maximum(acc1 * a1 + b1, 0.0).reshape(TH + 2, W, Cp)

    # Extended rows that fall outside the image are conv2's zero padding of y.
    row = lax.broadcasted_iota(jnp.int32, (TH + 2, 1, 1), 0)
    q = h * TH - 1 + row                                          # original row index
    y = jnp.where((q >= 0) & (q < H), y, 0.0)

    # ---- conv2 on the TH real output rows ----------------------------------
    yc = y.astype(compute_dtype)
    zcol = jnp.zeros((TH + 2, 1, Cp), yc.dtype)
    y_left = jnp.concatenate([zcol, yc[:, :W - 1, :]], axis=1)    # y[:, s-1]
    y_right = jnp.concatenate([yc[:, 1:, :], zcol], axis=1)       # y[:, s+1]
    ycat = jnp.concatenate([y_left, yc, y_right], axis=-1)        # (TH+2, W, 3*Cp)

    M2 = TH * W
    acc2 = jnp.zeros((M2, Cp), jnp.float32)
    for dy in range(3):
        lhs = ycat[dy:dy + TH].reshape(M2, 3 * Cp)
        acc2 = acc2 + jnp.dot(lhs, w2_ref[dy],
                              preferred_element_type=jnp.float32)

    a2 = ab2_ref[0:1, :]
    b2 = ab2_ref[1:2, :]

    # residual straight from the interior of the padded tile (no extra input)
    res = x_tile_ref[0, 2:2 + TH, 1:1 + W, :].astype(jnp.float32)

    out = (acc2 * a2 + b2).reshape(TH, W, Cp) + res
    o_ref[0] = out.astype(o_ref.dtype)


def residual_block_pallas(x_nchw, params, *, tile_h=None,
                          compute_dtype=jnp.float32):
    """x_nchw: (B, C, H, W) float32. Returns (B, C, H, W)."""
    B, C, H, W = x_nchw.shape
    eps = 1e-5
    LANE = 128
    Cp = ((C + LANE - 1) // LANE) * LANE        # lane-dense channel padding

    if tile_h is None:
        tile_h = H
    assert H % tile_h == 0, "tile_h must divide H"
    TH = tile_h
    nH = H // TH

    # NCHW -> NHWC, pad channels to Cp with zeros.
    x = jnp.transpose(x_nchw, (0, 2, 3, 1)).astype(jnp.float32)
    if Cp != C:
        x = jnp.pad(x, ((0, 0), (0, 0), (0, 0), (0, Cp - C)))
    # Pad H by 2 (1 SAME pad + 1 extra so conv1's halo row can be recomputed
    # per tile) and W by 1 (SAME pad).
    x2p = jnp.pad(x, ((0, 0), (2, 2), (1, 1), (0, 0)))            # (B, H+4, W+2, Cp)

    # Build overlapping H tiles (rows h*TH .. h*TH+TH+3) as a flat tile axis so
    # the Pallas BlockSpec stays a plain non-overlapping block.
    row_idx = jnp.arange(nH)[:, None] * TH + jnp.arange(TH + 4)[None, :]
    x_tiles = x2p[:, row_idx]                                     # (B, nH, TH+4, W+2, Cp)
    x_tiles = x_tiles.reshape(B * nH, TH + 4, W + 2, Cp)

    def fold_bn(conv_b, gamma, beta, mean, var):
        a = gamma / jnp.sqrt(var + eps)
        b = (conv_b - mean) * a + beta
        ab = jnp.stack([a, b], axis=0)                            # (2, C)
        if Cp != C:
            ab = jnp.pad(ab, ((0, 0), (0, Cp - C)))
        return ab

    # PyTorch conv weight [cout, cin, kh, kw] -> per-dy matrix (3, 3*Cp, Cp)
    # with rows ordered [dx-major, cin-minor] to match the concatenated patches.
    def to_mats(w):
        w = jnp.transpose(w, (2, 3, 1, 0))                        # (kh, kw, cin, cout)
        if Cp != C:
            w = jnp.pad(w, ((0, 0), (0, 0), (0, Cp - C), (0, Cp - C)))
        return w.reshape(3, 3 * Cp, Cp).astype(compute_dtype)

    w1 = to_mats(params["w1"])
    w2 = to_mats(params["w2"])
    ab1 = fold_bn(params["b1"], params["g1"], params["be1"], params["m1"], params["v1"])
    ab2 = fold_bn(params["b2"], params["g2"], params["be2"], params["m2"], params["v2"])

    kernel = functools.partial(_residual_block_kernel, H=H, TH=TH,
                               compute_dtype=compute_dtype)

    out = pl.pallas_call(
        kernel,
        out_shape=jax.ShapeDtypeStruct((B, H, W, Cp), jnp.float32),
        grid_spec=pltpu.PrefetchScalarGridSpec(
            num_scalar_prefetch=0,
            grid=(B, nH),
            in_specs=[
                pl.BlockSpec((1, TH + 4, W + 2, Cp),
                             lambda b, h: (b * nH + h, 0, 0, 0)),
                pl.BlockSpec((3, 3 * Cp, Cp), lambda b, h: (0, 0, 0)),
                pl.BlockSpec((3, 3 * Cp, Cp), lambda b, h: (0, 0, 0)),
                pl.BlockSpec((2, Cp), lambda b, h: (0, 0)),
                pl.BlockSpec((2, Cp), lambda b, h: (0, 0)),
            ],
            out_specs=pl.BlockSpec((1, TH, W, Cp), lambda b, h: (b, h, 0, 0)),
        ),
        compiler_params=pltpu.CompilerParams(
            dimension_semantics=("parallel", "parallel"),
            vmem_limit_bytes=48 * 1024 * 1024),
    )(x_tiles, w1, w2, ab1, ab2)

    # strip channel padding, NHWC -> NCHW
    out = out[..., :C]
    return jnp.transpose(out, (0, 3, 1, 2))


def _reference(x_nchw, params):
    """Pure-JAX reference of the same forward pass (inference-mode BN)."""
    eps = 1e-5
    x = jnp.transpose(x_nchw, (0, 2, 3, 1))  # NHWC

    def conv(inp, w):
        w_hwio = jnp.transpose(w, (2, 3, 1, 0))  # HWIO
        return lax.conv_general_dilated(
            inp, w_hwio, window_strides=(1, 1), padding="SAME",
            dimension_numbers=("NHWC", "HWIO", "NHWC"))

    def bn(inp, conv_b, g, be, m, v):
        a = g / jnp.sqrt(v + eps)
        return (inp + conv_b) * a + (be - m * a)

    y = jax.nn.relu(bn(conv(x, params["w1"]), params["b1"], params["g1"],
                       params["be1"], params["m1"], params["v1"]))
    out = bn(conv(y, params["w2"]), params["b2"], params["g2"],
             params["be2"], params["m2"], params["v2"]) + x
    return jnp.transpose(out, (0, 3, 1, 2))


def make_params(channels, key):
    keys = jax.random.split(key, 4)
    C = channels
    fan = C * 9
    scale = 1.0 / jnp.sqrt(fan)
    return {
        "w1": jax.random.uniform(keys[0], (C, C, 3, 3), jnp.float32, -scale, scale),
        "b1": jax.random.uniform(keys[1], (C,), jnp.float32, -scale, scale),
        "w2": jax.random.uniform(keys[2], (C, C, 3, 3), jnp.float32, -scale, scale),
        "b2": jax.random.uniform(keys[3], (C,), jnp.float32, -scale, scale),
        # BatchNorm (inference-mode running stats + affine), deterministic values
        "g1": 1.0 + 0.05 * jnp.arange(C, dtype=jnp.float32),
        "be1": 0.01 * jnp.arange(C, dtype=jnp.float32),
        "m1": 0.02 * jnp.arange(C, dtype=jnp.float32),
        "v1": 1.0 + 0.1 * jnp.arange(C, dtype=jnp.float32),
        "g2": 1.0 - 0.03 * jnp.arange(C, dtype=jnp.float32),
        "be2": -0.02 * jnp.arange(C, dtype=jnp.float32),
        "m2": 0.01 * jnp.arange(C, dtype=jnp.float32),
        "v2": 1.0 + 0.05 * jnp.arange(C, dtype=jnp.float32),
    }


if __name__ == "__main__":
    B, C, H, W = 2, 4, 16, 16
    key = jax.random.PRNGKey(0)
    x = jax.random.normal(key, (B, C, H, W), dtype=jnp.float32)
    params = make_params(C, jax.random.PRNGKey(42))

    # tile_h=8 -> grid (B, nH) = (2, 2): exercises the H-tiled path and gives
    # an even number of parallel steps for v7x's two TensorCores.
    out = residual_block_pallas(x, params, tile_h=8)
    out = jax.block_until_ready(out)

    ref = _reference(x, params)
    assert out.shape == (B, C, H, W)
    assert jnp.allclose(out, ref, atol=5e-4, rtol=5e-4), "mismatch vs JAX reference"

    print("KERNEL_OK")
</pallas_src>

<mosaic_0001>
module attributes {stable_mosaic.version = 11 : i64} {
  func.func @_residual_block_kernel(%arg0: i32, %arg1: i32, %arg2: memref<1x12x18x128xf32, #tpu.memory_space<vmem>>, %arg3: memref<3x384x128xf32, #tpu.memory_space<vmem>>, %arg4: memref<3x384x128xf32, #tpu.memory_space<vmem>>, %arg5: memref<2x128xf32, #tpu.memory_space<vmem>>, %arg6: memref<2x128xf32, #tpu.memory_space<vmem>>, %arg7: memref<1x8x16x128xf32, #tpu.memory_space<vmem>>) attributes {dimension_semantics = [#tpu.dimension_semantics<parallel>, #tpu.dimension_semantics<parallel>], iteration_bounds = array<i64: 2, 2>, scalar_prefetch = 0 : i64, scratch_operands = 0 : i64, tpu.core_type = #tpu.core_type<tc>, window_params = [{transform_indices = @transform_0, window_bounds = array<i64: 1, 12, 18, 128>}, {pipeline_mode = #tpu.pipeline_mode<synchronous>, transform_indices = @transform_1, window_bounds = array<i64: 3, 384, 128>}, {pipeline_mode = #tpu.pipeline_mode<synchronous>, transform_indices = @transform_2, window_bounds = array<i64: 3, 384, 128>}, {pipeline_mode = #tpu.pipeline_mode<synchronous>, transform_indices = @transform_3, window_bounds = array<i64: 2, 128>}, {pipeline_mode = #tpu.pipeline_mode<synchronous>, transform_indices = @transform_4, window_bounds = array<i64: 2, 128>}, {transform_indices = @transform_5, window_bounds = array<i64: 1, 8, 16, 128>}]} {
    %c0 = arith.constant 0 : index
    %c0_0 = arith.constant 0 : index
    %c0_1 = arith.constant 0 : index
    %c0_2 = arith.constant 0 : index
    %0 = vector.load %arg2[%c0, %c0_0, %c0_1, %c0_2] : memref<1x12x18x128xf32, #tpu.memory_space<vmem>>, vector<1x12x16x128xf32>
    %1 = vector.shape_cast %0 : vector<1x12x16x128xf32> to vector<12x16x128xf32>
    %c0_3 = arith.constant 0 : index
    %c0_4 = arith.constant 0 : index
    %c1 = arith.constant 1 : index
    %c0_5 = arith.constant 0 : index
    %2 = vector.load %arg2[%c0_3, %c0_4, %c1, %c0_5] : memref<1x12x18x128xf32, #tpu.memory_space<vmem>>, vector<1x12x16x128xf32>
    %3 = vector.shape_cast %2 : vector<1x12x16x128xf32> to vector<12x16x128xf32>
    %c0_6 = arith.constant 0 : index
    %c0_7 = arith.constant 0 : index
    %c2 = arith.constant 2 : index
    %c0_8 = arith.constant 0 : index
    %4 = vector.load %arg2[%c0_6, %c0_7, %c2, %c0_8] : memref<1x12x18x128xf32, #tpu.memory_space<vmem>>, vector<1x12x16x128xf32>
    %5 = vector.shape_cast %4 : vector<1x12x16x128xf32> to vector<12x16x128xf32>
    %6 = tpu.concatenate %1, %3, %5 in 2 : vector<12x16x128xf32>, vector<12x16x128xf32>, vector<12x16x128xf32> -> vector<12x16x384xf32>
    %cst = arith.constant 0.000000e+00 : f32
    %7 = vector.broadcast %cst : f32 to vector<160x128xf32>
    %8 = vector.extract_strided_slice %6 {offsets = [0, 0, 0], sizes = [10, 16, 384], strides = [1, 1, 1]} : vector<12x16x384xf32> to vector<10x16x384xf32>
    %9 = vector.shape_cast %8 : vector<10x16x384xf32> to vector<160x384xf32>
    %c0_9 = arith.constant 0 : index
    %c0_10 = arith.constant 0 : index
    %c0_11 = arith.constant 0 : index
    %10 = vector.load %arg3[%c0_9, %c0_10, %c0_11] : memref<3x384x128xf32, #tpu.memory_space<vmem>>, vector<1x384x128xf32>
    %11 = vector.shape_cast %10 : vector<1x384x128xf32> to vector<384x128xf32>
    %cst_12 = arith.constant dense<0.000000e+00> : vector<160x128xf32>
    %12 = tpu.matmul %9, %11, %cst_12 {dimension_numbers = #tpu.dot_dimension_numbers<[1], [0], [0], [1], [0, 0, 1, 1], [], []>} : vector<160x384xf32>, vector<384x128xf32>, vector<160x128xf32> -> vector<160x128xf32>
    %13 = arith.addf %7, %12 : vector<160x128xf32>
    %14 = vector.extract_strided_slice %6 {offsets = [1, 0, 0], sizes = [10, 16, 384], strides = [1, 1, 1]} : vector<12x16x384xf32> to vector<10x16x384xf32>
    %15 = vector.shape_cast %14 : vector<10x16x384xf32> to vector<160x384xf32>
    %c1_13 = arith.constant 1 : index
    %c0_14 = arith.constant 0 : index
    %c0_15 = arith.constant 0 : index
    %16 = vector.load %arg3[%c1_13, %c0_14, %c0_15] : memref<3x384x128xf32, #tpu.memory_space<vmem>>, vector<1x384x128xf32>
    %17 = vector.shape_cast %16 : vector<1x384x128xf32> to vector<384x128xf32>
    %cst_16 = arith.constant dense<0.000000e+00> : vector<160x128xf32>
    %18 = tpu.matmul %15, %17, %cst_16 {dimension_numbers = #tpu.dot_dimension_numbers<[1], [0], [0], [1], [0, 0, 1, 1], [], []>} : vector<160x384xf32>, vector<384x128xf32>, vector<160x128xf32> -> vector<160x128xf32>
    %19 = arith.addf %13, %18 : vector<160x128xf32>
    %20 = vector.extract_strided_slice %6 {offsets = [2, 0, 0], sizes = [10, 16, 384], strides = [1, 1, 1]} : vector<12x16x384xf32> to vector<10x16x384xf32>
    %21 = vector.shape_cast %20 : vector<10x16x384xf32> to vector<160x384xf32>
    %c2_17 = arith.constant 2 : index
    %c0_18 = arith.constant 0 : index
    %c0_19 = arith.constant 0 : index
    %22 = vector.load %arg3[%c2_17, %c0_18, %c0_19] : memref<3x384x128xf32, #tpu.memory_space<vmem>>, vector<1x384x128xf32>
    %23 = vector.shape_cast %22 : vector<1x384x128xf32> to vector<384x128xf32>
    %cst_20 = arith.constant dense<0.000000e+00> : vector<160x128xf32>
    %24 = tpu.matmul %21, %23, %cst_20 {dimension_numbers = #tpu.dot_dimension_numbers<[1], [0], [0], [1], [0, 0, 1, 1], [], []>} : vector<160x384xf32>, vector<384x128xf32>, vector<160x128xf32> -> vector<160x128xf32>
    %25 = arith.addf %19, %24 : vector<160x128xf32>
    %c0_21 = arith.constant 0 : index
    %c0_22 = arith.constant 0 : index
    %26 = vector.load %arg5[%c0_21, %c0_22] : memref<2x128xf32, #tpu.memory_space<vmem>>, vector<1x128xf32>
    %c1_23 = arith.constant 1 : index
    %c0_24 = arith.constant 0 : index
    %27 = vector.load %arg5[%c1_23, %c0_24] : memref<2x128xf32, #tpu.memory_space<vmem>>, vector<1x128xf32>
    %28 = vector.broadcast %26 : vector<1x128xf32> to vector<160x128xf32>
    %29 = arith.mulf %25, %28 : vector<160x128xf32>
    %30 = vector.broadcast %27 : vector<1x128xf32> to vector<160x128xf32>
    %31 = arith.addf %29, %30 : vector<160x128xf32>
    %cst_25 = arith.constant 0.000000e+00 : f32
    %32 = vector.broadcast %cst_25 : f32 to vector<160x128xf32>
    %33 = arith.maximumf %31, %32 : vector<160x128xf32>
    %34 = vector.shape_cast %33 : vector<160x128xf32> to vector<10x16x128xf32>
    %35 = tpu.iota {dimensions = array<i32: 0>} : vector<10x1x1xi32>
    %c8_i32 = arith.constant 8 : i32
    %36 = arith.muli %arg1, %c8_i32 : i32
    %c1_i32 = arith.constant 1 : i32
    %37 = arith.subi %36, %c1_i32 : i32
    %38 = vector.broadcast %37 : i32 to vector<10x1x1xi32>
    %39 = arith.addi %38, %35 : vector<10x1x1xi32>
    %c0_i32 = arith.constant 0 : i32
    %40 = vector.broadcast %c0_i32 : i32 to vector<10x1x1xi32>
    %41 = arith.cmpi sge, %39, %40 : vector<10x1x1xi32>
    %c16_i32 = arith.constant 16 : i32
    %42 = vector.broadcast %c16_i32 : i32 to vector<10x1x1xi32>
    %43 = arith.cmpi slt, %39, %42 : vector<10x1x1xi32>
    %44 = arith.andi %41, %43 : vector<10x1x1xi1>
    %cst_26 = arith.constant 0.000000e+00 : f32
    %45 = vector.shape_cast %44 : vector<10x1x1xi1> to vector<10x1x1xi1>
    %46 = vector.broadcast %45 : vector<10x1x1xi1> to vector<10x16x128xi1>
    %47 = vector.broadcast %cst_26 : f32 to vector<10x16x128xf32>
    %48 = arith.select %46, %34, %47 : vector<10x16x128xi1>, vector<10x16x128xf32>
    %cst_27 = arith.constant 0.000000e+00 : f32
    %49 = vector.broadcast %cst_27 : f32 to vector<10x1x128xf32>
    %50 = vector.extract_strided_slice %48 {offsets = [0, 0, 0], sizes = [10, 15, 128], strides = [1, 1, 1]} : vector<10x16x128xf32> to vector<10x15x128xf32>
    %51 = tpu.concatenate %49, %50 in 1 : vector<10x1x128xf32>, vector<10x15x128xf32> -> vector<10x16x128xf32>
    %52 = vector.extract_strided_slice %48 {offsets = [0, 1, 0], sizes = [10, 15, 128], strides = [1, 1, 1]} : vector<10x16x128xf32> to vector<10x15x128xf32>
    %53 = tpu.concatenate %52, %49 in 1 : vector<10x15x128xf32>, vector<10x1x128xf32> -> vector<10x16x128xf32>
    %54 = tpu.concatenate %51, %48, %53 in 2 : vector<10x16x128xf32>, vector<10x16x128xf32>, vector<10x16x128xf32> -> vector<10x16x384xf32>
    %cst_28 = arith.constant 0.000000e+00 : f32
    %55 = vector.broadcast %cst_28 : f32 to vector<128x128xf32>
    %56 = vector.extract_strided_slice %54 {offsets = [0, 0, 0], sizes = [8, 16, 384], strides = [1, 1, 1]} : vector<10x16x384xf32> to vector<8x16x384xf32>
    %57 = vector.shape_cast %56 : vector<8x16x384xf32> to vector<128x384xf32>
    %c0_29 = arith.constant 0 : index
    %c0_30 = arith.constant 0 : index
    %c0_31 = arith.constant 0 : index
    %58 = vector.load %arg4[%c0_29, %c0_30, %c0_31] : memref<3x384x128xf32, #tpu.memory_space<vmem>>, vector<1x384x128xf32>
    %59 = vector.shape_cast %58 : vector<1x384x128xf32> to vector<384x128xf32>
    %cst_32 = arith.constant dense<0.000000e+00> : vector<128x128xf32>
    %60 = tpu.matmul %57, %59, %cst_32 {dimension_numbers = #tpu.dot_dimension_numbers<[1], [0], [0], [1], [0, 0, 1, 1], [], []>} : vector<128x384xf32>, vector<384x128xf32>, vector<128x128xf32> -> vector<128x128xf32>
    %61 = arith.addf %55, %60 : vector<128x128xf32>
    %62 = vector.extract_strided_slice %54 {offsets = [1, 0, 0], sizes = [8, 16, 384], strides = [1, 1, 1]} : vector<10x16x384xf32> to vector<8x16x384xf32>
    %63 = vector.shape_cast %62 : vector<8x16x384xf32> to vector<128x384xf32>
    %c1_33 = arith.constant 1 : index
    %c0_34 = arith.constant 0 : index
    %c0_35 = arith.constant 0 : index
    %64 = vector.load %arg4[%c1_33, %c0_34, %c0_35] : memref<3x384x128xf32, #tpu.memory_space<vmem>>, vector<1x384x128xf32>
    %65 = vector.shape_cast %64 : vector<1x384x128xf32> to vector<384x128xf32>
    %cst_36 = arith.constant dense<0.000000e+00> : vector<128x128xf32>
    %66 = tpu.matmul %63, %65, %cst_36 {dimension_numbers = #tpu.dot_dimension_numbers<[1], [0], [0], [1], [0, 0, 1, 1], [], []>} : vector<128x384xf32>, vector<384x128xf32>, vector<128x128xf32> -> vector<128x128xf32>
    %67 = arith.addf %61, %66 : vector<128x128xf32>
    %68 = vector.extract_strided_slice %54 {offsets = [2, 0, 0], sizes = [8, 16, 384], strides = [1, 1, 1]} : vector<10x16x384xf32> to vector<8x16x384xf32>
    %69 = vector.shape_cast %68 : vector<8x16x384xf32> to vector<128x384xf32>
    %c2_37 = arith.constant 2 : index
    %c0_38 = arith.constant 0 : index
    %c0_39 = arith.constant 0 : index
    %70 = vector.load %arg4[%c2_37, %c0_38, %c0_39] : memref<3x384x128xf32, #tpu.memory_space<vmem>>, vector<1x384x128xf32>
    %71 = vector.shape_cast %70 : vector<1x384x128xf32> to vector<384x128xf32>
    %cst_40 = arith.constant dense<0.000000e+00> : vector<128x128xf32>
    %72 = tpu.matmul %69, %71, %cst_40 {dimension_numbers = #tpu.dot_dimension_numbers<[1], [0], [0], [1], [0, 0, 1, 1], [], []>} : vector<128x384xf32>, vector<384x128xf32>, vector<128x128xf32> -> vector<128x128xf32>
    %73 = arith.addf %67, %72 : vector<128x128xf32>
    %c0_41 = arith.constant 0 : index
    %c0_42 = arith.constant 0 : index
    %74 = vector.load %arg6[%c0_41, %c0_42] : memref<2x128xf32, #tpu.memory_space<vmem>>, vector<1x128xf32>
    %c1_43 = arith.constant 1 : index
    %c0_44 = arith.constant 0 : index
    %75 = vector.load %arg6[%c1_43, %c0_44] : memref<2x128xf32, #tpu.memory_space<vmem>>, vector<1x128xf32>
    %c0_45 = arith.constant 0 : index
    %c2_46 = arith.constant 2 : index
    %c1_47 = arith.constant 1 : index
    %c0_48 = arith.constant 0 : index
    %76 = vector.load %arg2[%c0_45, %c2_46, %c1_47, %c0_48] : memref<1x12x18x128xf32, #tpu.memory_space<vmem>>, vector<1x8x16x128xf32>
    %77 = vector.shape_cast %76 : vector<1x8x16x128xf32> to vector<8x16x128xf32>
    %78 = vector.broadcast %74 : vector<1x128xf32> to vector<128x128xf32>
    %79 = arith.mulf %73, %78 : vector<128x128xf32>
    %80 = vector.broadcast %75 : vector<1x128xf32> to vector<128x128xf32>
    %81 = arith.addf %79, %80 : vector<128x128xf32>
    %82 = vector.shape_cast %81 : vector<128x128xf32> to vector<8x16x128xf32>
    %83 = arith.addf %82, %77 : vector<8x16x128xf32>
    %c0_49 = arith.constant 0 : index
    %c0_50 = arith.constant 0 : index
    %c0_51 = arith.constant 0 : index
    %c0_52 = arith.constant 0 : index
    %84 = vector.load %arg7[%c0_49, %c0_50, %c0_51, %c0_52] : memref<1x8x16x128xf32, #tpu.memory_space<vmem>>, vector<1x8x16x128xf32>
    %85 = vector.shape_cast %84 : vector<1x8x16x128xf32> to vector<8x16x128xf32>
    %86 = vector.shape_cast %83 : vector<8x16x128xf32> to vector<1x8x16x128xf32>
    tpu.vector_store %arg7[%c0_49, %c0_50, %c0_51, %c0_52], %86 {strides = array<i32>} : memref<1x8x16x128xf32, #tpu.memory_space<vmem>>, vector<1x8x16x128xf32>,
    return
  }
  func.func @transform_0(%arg0: i32, %arg1: i32) -> (i32, i32, i32, i32) {
    %c2_i32 = arith.constant 2 : i32
    %0 = arith.muli %arg0, %c2_i32 : i32
    %1 = arith.addi %0, %arg1 : i32
    %c0_i32 = arith.constant 0 : i32
    %c0_i32_0 = arith.constant 0 : i32
    %c0_i32_1 = arith.constant 0 : i32
    %c0_i32_2 = arith.constant 0 : i32
    return %1, %c0_i32, %c0_i32_0, %c0_i32_1 : i32, i32, i32, i32
  }
  func.func @transform_1(%arg0: i32, %arg1: i32) -> (i32, i32, i32) {
    %c0_i32 = arith.constant 0 : i32
    %c0_i32_0 = arith.constant 0 : i32
    %c0_i32_1 = arith.constant 0 : i32
    %c0_i32_2 = arith.constant 0 : i32
    return %c0_i32, %c0_i32_0, %c0_i32_1 : i32, i32, i32
  }
  func.func @transform_2(%arg0: i32, %arg1: i32) -> (i32, i32, i32) {
    %c0_i32 = arith.constant 0 : i32
    %c0_i32_0 = arith.constant 0 : i32
    %c0_i32_1 = arith.constant 0 : i32
    %c0_i32_2 = arith.constant 0 : i32
    return %c0_i32, %c0_i32_0, %c0_i32_1 : i32, i32, i32
  }
  func.func @transform_3(%arg0: i32, %arg1: i32) -> (i32, i32) {
    %c0_i32 = arith.constant 0 : i32
    %c0_i32_0 = arith.constant 0 : i32
    %c0_i32_1 = arith.constant 0 : i32
    return %c0_i32, %c0_i32_0 : i32, i32
  }
  func.func @transform_4(%arg0: i32, %arg1: i32) -> (i32, i32) {
    %c0_i32 = arith.constant 0 : i32
    %c0_i32_0 = arith.constant 0 : i32
    %c0_i32_1 = arith.constant 0 : i32
    return %c0_i32, %c0_i32_0 : i32, i32
  }
  func.func @transform_5(%arg0: i32, %arg1: i32) -> (i32, i32, i32, i32) {
    %c0_i32 = arith.constant 0 : i32
    %c0_i32_0 = arith.constant 0 : i32
    %c0_i32_1 = arith.constant 0 : i32
    return %arg0, %arg1, %c0_i32, %c0_i32_0 : i32, i32, i32, i32
  }
}

</mosaic_0001>

<llo_original>
// kernel: tpu_custom_call.1
$region0: #{tpu_custom_call.1}
  #allocation0 [shape = 'u32[]', space=smem, size = 0x4, offset = 0x4, fixed_abs, tag = 'smem constant byte address 0x4 - core index']
  #allocation1 [shape = 'u32[144,128]{1,0:T(1,128)}', space=vmem, size = 0x12000, scoped, tag = 'internal scratch']
  %s0 = inlined_call_operand.vmem [shape: f32[4,12,18,128], index: 0, kind: input, shape index: {}]
  %s1 = inlined_call_operand.vmem [shape: f32[3,384,128], index: 1, kind: input, shape index: {}]
  %s2 = inlined_call_operand.hbm [shape: f32[3,384,128], index: 2, kind: input, shape index: {}]
  %s3 = inlined_call_operand.vmem [shape: f32[2,128], index: 3, kind: input, shape index: {}]
  %s4 = inlined_call_operand.vmem [shape: f32[2,128], index: 4, kind: input, shape index: {}]
  %s5 = inlined_call_operand.hbm [shape: f32[2,16,16,128], index: 5, kind: output, shape index: {}]
  %s6 = sld [smem:[#allocation0]]
  $region57: #{tpu_custom_call.1} parent=0
    _
  %s8 = ssub.s32 1, %s6
  %s9 = scalar_select 0, %s8, %s6
  $region1: #{tpu_custom_call.1} parent=0
    #allocation2 [shape = 'u8[589824]{0}', space=vmem, size = 0x90000, scoped, tag = 'input window, operand 2, single buffered']
    #allocation3 [shape = 's32[2]{0}', space=sflag, size = 0x8, scoped, tag = 'scoped memory for tpu_custom_call.1']
    #allocation4 [shape = 's32[2]{0}', space=sflag, size = 0x8, scoped, tag = 'scoped memory for tpu_custom_call.1']
    #allocation5 [shape = 'u8[131072]{0}', space=vmem, size = 0x20000, scoped, tag = 'output window, operand 0']
    %10 = vsyncpa [#allocation3], 0
    %11 = vsyncpa [#allocation4], 0
    %s12 = scalar_lea.sflag [#allocation4], 1
    %13 = vsyncpa %s12, 0
    loop: start=0, step=1, limit=6
    $region2: #{tpu_custom_call.1} parent=1 // loop_pre_header
      _
    $region3: #{tpu_custom_call.1} parent=1 // loop_header
      %s15 = sphi 0, %s19
      %p16 = scmp.ge.s32.totalorder %s15, 6
      %s22 = sphi 0, %s34
      %s23 = sphi 0, %s30
      %s24 = sphi 0, %s22
      %s25 = sphi 0, %s23
      %s26 = sphi 0, %s24
      %s27 = sphi 0, %s25
      %s41 = sphi 0, %s43
      %s44 = sphi 0, %s41
      %s45 = sphi 0, %s44
      %s61 = sphi 0, %s45
      %s65 = sphi 0, %s65
      %s67 = sphi 0, %s65
      %s68 = sphi 0, %s67
      %s82 = sphi 0, %s68
      %s86 = sphi 0, %s86
      %s88 = sphi 0, %s86
      %s89 = sphi 0, %s88
      %s103 = sphi 0, %s89
      %s107 = sphi 0, %s107
      %s109 = sphi 0, %s107
      %s110 = sphi 0, %s109
      %s124 = sphi 0, %s110
      %s128 = sphi 0, %s128
      %s130 = sphi 0, %s128
      %s131 = sphi 0, %s130
      %s145 = sphi 0, %s131
      %s153 = sphi 0, %s155
      %s156 = sphi 0, %s153
      %s157 = sphi 0, %s156
      %s173 = sphi 0, %s157
    $region4: #{tpu_custom_call.1} parent=1 // loop_header_branch
      %18 = sbr.rel (%p16) target = $region8
    $region5: #{tpu_custom_call.1} parent=1 // loop_body
      %s20 = ssub.s32 %s15, 1
      %s21 = ssub.s32 %s15, 2
      %s28 = sadd.s32 1, %s23
      %p29 = scmp.ge.s32.totalorder %s28, 2
      %s30 = scalar_select %p29, 0, %s28
      %s31 = sadd.s32 1, %s22
      %s32 = scalar_select %p29, %s31, %s22
      %p33 = scmp.ge.s32.totalorder %s32, 2
      %s34 = scalar_select %p33, 0, %s32
      %s35 = smul.u32 %s22, 2
      %s36 = sadd.s32 %s35, %s23
      %s37 = smul.u32 %s34, 2
      %s38 = sadd.s32 %s37, %s30
      %s39 = ssub.s32 %s36, %s38
      %p40 = scmp.eq.s32.totalorder %s39, 0
      %s42 = sadd.s32 %s41, 1
      %s43 = scalar_select %p40, %s41, %s42
      %p46 = pneg %p40
      %p47 = scmp.eq.s32.totalorder %s15, 3
      %p48 = por %p46, %p47
      %p49 = scmp.ne.s32.totalorder %s41, %s44
      %p50 = scmp.eq.s32.totalorder %s15, 0
      %p51 = por %p49, %p50
      %p52 = scmp.ne.s32.totalorder %s41, %s44
      %p53 = scmp.eq.s32.totalorder %s20, 3
      %p54 = por %p52, %p53
      %p55 = scmp.ne.s32.totalorder %s44, %s45
      %p56 = scmp.eq.s32.totalorder %s20, 0
      %p57 = por %p55, %p56
      %p58 = scmp.ne.s32.totalorder %s44, %s45
      %p59 = scmp.eq.s32.totalorder %s21, 3
      %p60 = por %p58, %p59
      %p62 = scmp.ne.s32.totalorder %s45, %s61
      %p63 = scmp.eq.s32.totalorder %s21, 0
      %p64 = por %p62, %p63
      %s66 = sadd.s32 %s65, 1
      %p69 = scmp.eq.s32.totalorder %s15, 3
      %p70 = scmp.ne.s32.totalorder %s65, %s67
      %p71 = scmp.eq.s32.totalorder %s15, 0
      %p72 = por %p70, %p71
      %p73 = scmp.ne.s32.totalorder %s65, %s67
      %p74 = scmp.eq.s32.totalorder %s20, 3
      %p75 = por %p73, %p74
      %p76 = scmp.ne.s32.totalorder %s67, %s68
      %p77 = scmp.eq.s32.totalorder %s20, 0
      %p78 = por %p76, %p77
      %p79 = scmp.ne.s32.totalorder %s67, %s68
      %p80 = scmp.eq.s32.totalorder %s21, 3
      %p81 = por %p79, %p80
      %p83 = scmp.ne.s32.totalorder %s68, %s82
      %p84 = scmp.eq.s32.totalorder %s21, 0
      %p85 = por %p83, %p84
      %s87 = sadd.s32 %s86, 1
      %p90 = scmp.eq.s32.totalorder %s15, 3
      %p91 = scmp.ne.s32.totalorder %s86, %s88
      %p92 = scmp.eq.s32.totalorder %s15, 0
      %p93 = por %p91, %p92
      %p94 = scmp.ne.s32.totalorder %s86, %s88
      %p95 = scmp.eq.s32.totalorder %s20, 3
      %p96 = por %p94, %p95
      %p97 = scmp.ne.s32.totalorder %s88, %s89
      %p98 = scmp.eq.s32.totalorder %s20, 0
      %p99 = por %p97, %p98
      %p100 = scmp.ne.s32.totalorder %s88, %s89
      %p101 = scmp.eq.s32.totalorder %s21, 3
      %p102 = por %p100, %p101
      %p104 = scmp.ne.s32.totalorder %s89, %s103
      %p105 = scmp.eq.s32.totalorder %s21, 0
      %p106 = por %p104, %p105
      %s108 = sadd.s32 %s107, 1
      %p111 = scmp.eq.s32.totalorder %s15, 3
      %p112 = scmp.ne.s32.totalorder %s107, %s109
      %p113 = scmp.eq.s32.totalorder %s15, 0
      %p114 = por %p112, %p113
      %p115 = scmp.ne.s32.totalorder %s107, %s109
      %p116 = scmp.eq.s32.totalorder %s20, 3
      %p117 = por %p115, %p116
      %p118 = scmp.ne.s32.totalorder %s109, %s110
      %p119 = scmp.eq.s32.totalorder %s20, 0
      %p120 = por %p118, %p119
      %p121 = scmp.ne.s32.totalorder %s109, %s110
      %p122 = scmp.eq.s32.totalorder %s21, 3
      %p123 = por %p121, %p122
      %p125 = scmp.ne.s32.totalorder %s110, %s124
      %p126 = scmp.eq.s32.totalorder %s21, 0
      %p127 = por %p125, %p126
      %s129 = sadd.s32 %s128, 1
      %p132 = scmp.eq.s32.totalorder %s15, 3
      %p133 = scmp.ne.s32.totalorder %s128, %s130
      %p134 = scmp.eq.s32.totalorder %s15, 0
      %p135 = por %p133, %p134
      %p136 = scmp.ne.s32.totalorder %s128, %s130
      %p137 = scmp.eq.s32.totalorder %s20, 3
      %p138 = por %p136, %p137
      %p139 = scmp.ne.s32.totalorder %s130, %s131
      %p140 = scmp.eq.s32.totalorder %s20, 0
      %p141 = por %p139, %p140
      %p142 = scmp.ne.s32.totalorder %s130, %s131
      %p143 = scmp.eq.s32.totalorder %s21, 3
      %p144 = por %p142, %p143
      %p146 = scmp.ne.s32.totalorder %s131, %s145
      %p147 = scmp.eq.s32.totalorder %s21, 0
      %p148 = por %p146, %p147
      %s149 = ssub.s32 %s22, %s34
      %s150 = ssub.s32 %s23, %s30
      %s151 = sor.u32 %s149, %s150
      %p152 = scmp.eq.s32.totalorder %s151, 0
      %s154 = sadd.s32 %s153, 1
      %s155 = scalar_select %p152, %s153, %s154
      %p158 = pneg %p152
      %p159 = scmp.eq.s32.totalorder %s15, 3
      %p160 = por %p158, %p159
      %p161 = scmp.ne.s32.totalorder %s153, %s156
      %p162 = scmp.eq.s32.totalorder %s15, 0
      %p163 = por %p161, %p162
      %p164 = scmp.ne.s32.totalorder %s153, %s156
      %p165 = scmp.eq.s32.totalorder %s20, 3
      %p166 = por %p164, %p165
      %p167 = scmp.ne.s32.totalorder %s156, %s157
      %p168 = scmp.eq.s32.totalorder %s20, 0
      %p169 = por %p167, %p168
      %p170 = scmp.ne.s32.totalorder %s156, %s157
      %p171 = scmp.eq.s32.totalorder %s21, 3
      %p172 = por %p170, %p171
      %p174 = scmp.ne.s32.totalorder %s157, %s173
      %p175 = scmp.eq.s32.totalorder %s21, 0
      %p176 = por %p174, %p175
      %p177 = scmp.le.s32.totalorder 1, %s15
      %p178 = scmp.lt.s32.totalorder %s15, 5
      %p179 = pnand %p177, %p178
      %p180 = pneg %p179
      // Predicated region
      $region9: #{tpu_custom_call.1} parent=5 // pred_check
        _
      $region10: #{tpu_custom_call.1} parent=5 // pred_check_branch
        %182 = sbr.rel (%p179) target = $region12
      $region11: #{tpu_custom_call.1} parent=5 // pred_region
        %s183 = ssub.s32 %s15, 1
        // Predicated region
        $region13: #{tpu_custom_call.1} parent=11 // pred_check
          %p184 = pneg %p78
        $region14: #{tpu_custom_call.1} parent=11 // pred_check_branch
          %186 = sbr.rel (%p184) target = $region16
        $region15: #{tpu_custom_call.1} parent=11 // pred_region
          _
        $region16: #{tpu_custom_call.1} parent=11 // pred_fallthru
          _
        // Predicated region
        $region17: #{tpu_custom_call.1} parent=11 // pred_check
          %p187 = pneg %p99
        $region18: #{tpu_custom_call.1} parent=11 // pred_check_branch
          %189 = sbr.rel (%p187) target = $region20
        $region19: #{tpu_custom_call.1} parent=11 // pred_region
          %s191 = ssub.s32 18432, 18432
          %192 = vsyncadd [#allocation3], %s191
          %s193 = sshll.u32 [#allocation2], 4
          %s194 = int_to_ptr.vmem [resolvable:$true] %s193
          %199 = dma.hbm_to_vmem [thread:$0]  %s2, 18432, %s194, [#allocation3], 128, 128, 8
        $region20: #{tpu_custom_call.1} parent=11 // pred_fallthru
          _
        // Predicated region
        $region21: #{tpu_custom_call.1} parent=11 // pred_check
          %p200 = pneg %p120
        $region22: #{tpu_custom_call.1} parent=11 // pred_check_branch
          %202 = sbr.rel (%p200) target = $region24
        $region23: #{tpu_custom_call.1} parent=11 // pred_region
          _
        $region24: #{tpu_custom_call.1} parent=11 // pred_fallthru
          _
        // Predicated region
        $region25: #{tpu_custom_call.1} parent=11 // pred_check
          %p203 = pneg %p141
        $region26: #{tpu_custom_call.1} parent=11 // pred_check_branch
          %205 = sbr.rel (%p203) target = $region28
        $region27: #{tpu_custom_call.1} parent=11 // pred_region
          _
        $region28: #{tpu_custom_call.1} parent=11 // pred_fallthru
          _
      $region12: #{tpu_custom_call.1} parent=5 // pred_fallthru
        _
      %p206 = scmp.lt.s32.totalorder %s15, 4
      // Predicated region
      $region29: #{tpu_custom_call.1} parent=5 // pred_check
        %p207 = pneg %p206
      $region30: #{tpu_custom_call.1} parent=5 // pred_check_branch
        %209 = sbr.rel (%p207) target = $region32
      $region31: #{tpu_custom_call.1} parent=5 // pred_region
        // Predicated region
        $region33: #{tpu_custom_call.1} parent=31 // pred_check
          %p210 = pneg %p51
        $region34: #{tpu_custom_call.1} parent=31 // pred_check_branch
          %212 = sbr.rel (%p210) target = $region36
        $region35: #{tpu_custom_call.1} parent=31 // pred_region
          %s213 = smul.u32 %s22, 2
          %s214 = sadd.s32 %s213, %s23
          %p215 = scmp.lt.s32.totalorder %s214, 3
          %s216 = scalar_select %p215, %s214, 3
          %s217 = smul.addr %s216, 36
          %s218 = smul.addr %s217, 8
          %s219 = scalar_lea.vmem %s0, %s218
          %s220 = smul.u32 %s22, 2
          %s221 = sadd.s32 %s220, %s23
        $region36: #{tpu_custom_call.1} parent=31 // pred_fallthru
          _
      $region32: #{tpu_custom_call.1} parent=5 // pred_fallthru
        _
      %p222 = scmp.le.s32.totalorder 1, %s15
      %p223 = scmp.lt.s32.totalorder %s15, 5
      %p224 = pnand %p222, %p223
      %p225 = pneg %p224
      // Predicated region
      $region37: #{tpu_custom_call.1} parent=5 // pred_check
        _
      $region38: #{tpu_custom_call.1} parent=5 // pred_check_branch
        %227 = sbr.rel (%p224) target = $region40
      $region39: #{tpu_custom_call.1} parent=5 // pred_region
        %s228 = ssub.s32 %s15, 1
        // Predicated region
        $region41: #{tpu_custom_call.1} parent=39 // pred_check
          %p229 = pneg %p99
        $region42: #{tpu_custom_call.1} parent=39 // pred_check_branch
          %231 = sbr.rel (%p229) target = $region44
        $region43: #{tpu_custom_call.1} parent=39 // pred_region
          %232 = dma.done [#allocation3], 18432
        $region44: #{tpu_custom_call.1} parent=39 // pred_fallthru
          _
        %s233 = smul.u32 %s24, 2
        %s234 = sadd.s32 %s233, %s25
        %p235 = scmp.lt.s32.totalorder %s234, 3
        %s236 = scalar_select %p235, %s234, 3
        %s237 = smul.addr %s236, 36
        %s238 = smul.addr %s237, 8
        %s239 = scalar_lea.vmem %s0, %s238
        %p240 = pneg %p57
        %p241 = pneg %p54
        %p242 = pneg %p78
        %p243 = pneg %p75
        %p244 = pneg %p99
        %p245 = pneg %p96
        %p246 = pneg %p120
        %p247 = pneg %p117
        %p248 = pneg %p141
        %p249 = pneg %p138
        %p250 = pneg %p169
        %p251 = pneg %p166
        %s252 = sand.u32 %s156, 1
        %s253 = scalar_lea.sflag [#allocation4], %s252
        %s254 = sand.u32 %s156, 1
        %s255 = smul.addr %s254, 128
        %s256 = scalar_lea.vmem [#allocation5], %s255
        %s257 = smul.u32 %s24, 2
        %s258 = sadd.s32 %s257, %s25
        %p259 = scmp.lt.s32.totalorder %s258, 3
        %s260 = scalar_select %p259, %s258, 3
        %s261 = smul.addr %s260, 36
        %s262 = smul.addr %s261, 8
        %s263 = scalar_lea.vmem %s0, %s262
        %s264 = smul.u32 %s24, 2
        %s265 = sadd.s32 %s264, %s25
        %s266 = smul.u32 8, %s25
        %v267 = vld [vmem:[%s263] sm:$0xff]
        %v268 = vld [vmem:[%s263 + $0x8] sm:$0xff]
        %v269 = vld [vmem:[%s263 + $0x18] sm:$0xff]
        %v270 = vld [vmem:[%s263 + $0x20] sm:$0xff]
        %v271 = vld [vmem:[%s263 + $0x30] sm:$0xff]
        %v272 = vld [vmem:[%s263 + $0x38] sm:$0xff]
        %v273 = vld [vmem:[%s263 + $0x48] sm:$0xff]
        %v274 = vld [vmem:[%s263 + $0x50] sm:$0xff]
        %v275 = vld [vmem:[%s263 + $0x60] sm:$0xff]
        %v276 = vld [vmem:[%s263 + $0x68] sm:$0xff]
        %v277 = vld [vmem:[%s263 + $0x78] sm:$0xff]
        %v278 = vld [vmem:[%s263 + $0x80] sm:$0xff]
        %v279 = vld [vmem:[%s263 + $0x90] sm:$0xff]
        %v280 = vld [vmem:[%s263 + $0x98] sm:$0xff]
        %v281 = vld [vmem:[%s263 + $0xa8] sm:$0xff]
        %v282 = vld [vmem:[%s263 + $0xb0] sm:$0xff]
        %v283 = vld [vmem:[%s263 + $0xc0] sm:$0xff]
        %v284 = vld [vmem:[%s263 + $0xc8] sm:$0xff]
        %v285 = vld [vmem:[%s263 + $0xd8] sm:$0xff]
        %v286 = vld [vmem:[%s263 + $0xe0] sm:$0xff]
        %v287 = vld [vmem:[%s263 + $0xf0] sm:$0xff]
        %v288 = vld [vmem:[%s263 + $0xf8] sm:$0xff]
        %v289 = vld [vmem:[%s263 + $0x108] sm:$0xff]
        %v290 = vld [vmem:[%s263 + $0x110] sm:$0xff]
        %v291 = vld [vmem:[%s263 + $0x1] sm:$0xff]
        %v292 = vld [vmem:[%s263 + $0x9] sm:$0xff]
        %v293 = vld [vmem:[%s263 + $0x19] sm:$0xff]
        %v294 = vld [vmem:[%s263 + $0x21] sm:$0xff]
        %v295 = vld [vmem:[%s263 + $0x31] sm:$0xff]
        %v296 = vld [vmem:[%s263 + $0x39] sm:$0xff]
        %v297 = vld [vmem:[%s263 + $0x49] sm:$0xff]
        %v298 = vld [vmem:[%s263 + $0x51] sm:$0xff]
        %v299 = vld [vmem:[%s263 + $0x61] sm:$0xff]
        %v300 = vld [vmem:[%s263 + $0x69] sm:$0xff]
        %v301 = vld [vmem:[%s263 + $0x79] sm:$0xff]
        %v302 = vld [vmem:[%s263 + $0x81] sm:$0xff]
        %v303 = vld [vmem:[%s263 + $0x91] sm:$0xff]
        %v304 = vld [vmem:[%s263 + $0x99] sm:$0xff]
        %v305 = vld [vmem:[%s263 + $0xa9] sm:$0xff]
        %v306 = vld [vmem:[%s263 + $0xb1] sm:$0xff]
        %v307 = vld [vmem:[%s263 + $0xc1] sm:$0xff]
        %v308 = vld [vmem:[%s263 + $0xc9] sm:$0xff]
        %v309 = vld [vmem:[%s263 + $0xd9] sm:$0xff]
        %v310 = vld [vmem:[%s263 + $0xe1] sm:$0xff]
        %v311 = vld [vmem:[%s263 + $0xf1] sm:$0xff]
        %v312 = vld [vmem:[%s263 + $0xf9] sm:$0xff]
        %v313 = vld [vmem:[%s263 + $0x109] sm:$0xff]
        %v314 = vld [vmem:[%s263 + $0x111] sm:$0xff]
        %v315 = vld [vmem:[%s263 + $0x2] sm:$0xff]
        %v316 = vld [vmem:[%s263 + $0xa] sm:$0xff]
        %v317 = vld [vmem:[%s263 + $0x1a] sm:$0xff]
        %v318 = vld [vmem:[%s263 + $0x22] sm:$0xff]
        %v319 = vld [vmem:[%s263 + $0x32] sm:$0xff]
        %v320 = vld [vmem:[%s263 + $0x3a] sm:$0xff]
        %v321 = vld [vmem:[%s263 + $0x4a] sm:$0xff]
        %v322 = vld [vmem:[%s263 + $0x52] sm:$0xff]
        %v323 = vld [vmem:[%s263 + $0x62] sm:$0xff]
        %v324 = vld [vmem:[%s263 + $0x6a] sm:$0xff]
        %v325 = vld [vmem:[%s263 + $0x7a] sm:$0xff]
        %v326 = vld [vmem:[%s263 + $0x82] sm:$0xff]
        %v327 = vld [vmem:[%s263 + $0x92] sm:$0xff]
        %v328 = vld [vmem:[%s263 + $0x9a] sm:$0xff]
        %v329 = vld [vmem:[%s263 + $0xaa] sm:$0xff]
        %v330 = vld [vmem:[%s263 + $0xb2] sm:$0xff]
        %v331 = vld [vmem:[%s263 + $0xc2] sm:$0xff]
        %v332 = vld [vmem:[%s263 + $0xca] sm:$0xff]
        %v333 = vld [vmem:[%s263 + $0xda] sm:$0xff]
        %v334 = vld [vmem:[%s263 + $0xe2] sm:$0xff]
        %v335 = vld [vmem:[%s263 + $0xf2] sm:$0xff]
        %v336 = vld [vmem:[%s263 + $0xfa] sm:$0xff]
        %v337 = vld [vmem:[%s263 + $0x10a] sm:$0xff]
        %v338 = vld [vmem:[%s263 + $0x112] sm:$0xff]
        %v339 = vld [vmem:[%s1] sm:$0xff]
        %v340 = vld [vmem:[%s1 + $0x8] sm:$0xff]
        %v341 = vld [vmem:[%s1 + $0x10] sm:$0xff]
        %v342 = vld [vmem:[%s1 + $0x18] sm:$0xff]
        %v343 = vld [vmem:[%s1 + $0x20] sm:$0xff]
        %v344 = vld [vmem:[%s1 + $0x28] sm:$0xff]
        %v345 = vld [vmem:[%s1 + $0x30] sm:$0xff]
        %v346 = vld [vmem:[%s1 + $0x38] sm:$0xff]
        %v347 = vld [vmem:[%s1 + $0x40] sm:$0xff]
        %v348 = vld [vmem:[%s1 + $0x48] sm:$0xff]
        %v349 = vld [vmem:[%s1 + $0x50] sm:$0xff]
        %v350 = vld [vmem:[%s1 + $0x58] sm:$0xff]
        %v351 = vld [vmem:[%s1 + $0x60] sm:$0xff]
        %v352 = vld [vmem:[%s1 + $0x68] sm:$0xff]
        %v353 = vld [vmem:[%s1 + $0x70] sm:$0xff]
        %v354 = vld [vmem:[%s1 + $0x78] sm:$0xff]
        %v355 = vld [vmem:[%s1 + $0x80] sm:$0xff]
        %v356 = vld [vmem:[%s1 + $0x88] sm:$0xff]
        %v357 = vld [vmem:[%s1 + $0x90] sm:$0xff]
        %v358 = vld [vmem:[%s1 + $0x98] sm:$0xff]
        %v359 = vld [vmem:[%s1 + $0xa0] sm:$0xff]
        %v360 = vld [vmem:[%s1 + $0xa8] sm:$0xff]
        %v361 = vld [vmem:[%s1 + $0xb0] sm:$0xff]
        %v362 = vld [vmem:[%s1 + $0xb8] sm:$0xff]
        %v363 = vld [vmem:[%s1 + $0xc0] sm:$0xff]
        %v364 = vld [vmem:[%s1 + $0xc8] sm:$0xff]
        %v365 = vld [vmem:[%s1 + $0xd0] sm:$0xff]
        %v366 = vld [vmem:[%s1 + $0xd8] sm:$0xff]
        %v367 = vld [vmem:[%s1 + $0xe0] sm:$0xff]
        %v368 = vld [vmem:[%s1 + $0xe8] sm:$0xff]
        %v369 = vld [vmem:[%s1 + $0xf0] sm:$0xff]
        %v370 = vld [vmem:[%s1 + $0xf8] sm:$0xff]
        %v371 = vld [vmem:[%s1 + $0x100] sm:$0xff]
        %v372 = vld [vmem:[%s1 + $0x108] sm:$0xff]
        %v373 = vld [vmem:[%s1 + $0x110] sm:$0xff]
        %v374 = vld [vmem:[%s1 + $0x118] sm:$0xff]
        %v375 = vld [vmem:[%s1 + $0x120] sm:$0xff]
        %v376 = vld [vmem:[%s1 + $0x128] sm:$0xff]
        %v377 = vld [vmem:[%s1 + $0x130] sm:$0xff]
        %v378 = vld [vmem:[%s1 + $0x138] sm:$0xff]
        %v379 = vld [vmem:[%s1 + $0x140] sm:$0xff]
        %v380 = vld [vmem:[%s1 + $0x148] sm:$0xff]
        %v381 = vld [vmem:[%s1 + $0x150] sm:$0xff]
        %v382 = vld [vmem:[%s1 + $0x158] sm:$0xff]
        %v383 = vld [vmem:[%s1 + $0x160] sm:$0xff]
        %v384 = vld [vmem:[%s1 + $0x168] sm:$0xff]
        %v385 = vld [vmem:[%s1 + $0x170] sm:$0xff]
        %v386 = vld [vmem:[%s1 + $0x178] sm:$0xff]
        %s387 = scalar_lea.vmem %s1, 384
        %v388 = vld [vmem:[%s387] sm:$0xff]
        %v389 = vld [vmem:[%s387 + $0x8] sm:$0xff]
        %v390 = vld [vmem:[%s387 + $0x10] sm:$0xff]
        %v391 = vld [vmem:[%s387 + $0x18] sm:$0xff]
        %v392 = vld [vmem:[%s387 + $0x20] sm:$0xff]
        %v393 = vld [vmem:[%s387 + $0x28] sm:$0xff]
        %v394 = vld [vmem:[%s387 + $0x30] sm:$0xff]
        %v395 = vld [vmem:[%s387 + $0x38] sm:$0xff]
        %v396 = vld [vmem:[%s387 + $0x40] sm:$0xff]
        %v397 = vld [vmem:[%s387 + $0x48] sm:$0xff]
        %v398 = vld [vmem:[%s387 + $0x50] sm:$0xff]
        %v399 = vld [vmem:[%s387 + $0x58] sm:$0xff]
        %v400 = vld [vmem:[%s387 + $0x60] sm:$0xff]
        %v401 = vld [vmem:[%s387 + $0x68] sm:$0xff]
        %v402 = vld [vmem:[%s387 + $0x70] sm:$0xff]
        %v403 = vld [vmem:[%s387 + $0x78] sm:$0xff]
        %v404 = vld [vmem:[%s387 + $0x80] sm:$0xff]
        %v405 = vld [vmem:[%s387 + $0x88] sm:$0xff]
        %v406 = vld [vmem:[%s387 + $0x90] sm:$0xff]
        %v407 = vld [vmem:[%s387 + $0x98] sm:$0xff]
        %v408 = vld [vmem:[%s387 + $0xa0] sm:$0xff]
        %v409 = vld [vmem:[%s387 + $0xa8] sm:$0xff]
        %v410 = vld [vmem:[%s387 + $0xb0] sm:$0xff]
        %v411 = vld [vmem:[%s387 + $0xb8] sm:$0xff]
        %v412 = vld [vmem:[%s387 + $0xc0] sm:$0xff]
        %v413 = vld [vmem:[%s387 + $0xc8] sm:$0xff]
        %v414 = vld [vmem:[%s387 + $0xd0] sm:$0xff]
        %v415 = vld [vmem:[%s387 + $0xd8] sm:$0xff]
        %v416 = vld [vmem:[%s387 + $0xe0] sm:$0xff]
        %v417 = vld [vmem:[%s387 + $0xe8] sm:$0xff]
        %v418 = vld [vmem:[%s387 + $0xf0] sm:$0xff]
        %v419 = vld [vmem:[%s387 + $0xf8] sm:$0xff]
        %v420 = vld [vmem:[%s387 + $0x100] sm:$0xff]
        %v421 = vld [vmem:[%s387 + $0x108] sm:$0xff]
        %v422 = vld [vmem:[%s387 + $0x110] sm:$0xff]
        %v423 = vld [vmem:[%s387 + $0x118] sm:$0xff]
        %v424 = vld [vmem:[%s387 + $0x120] sm:$0xff]
        %v425 = vld [vmem:[%s387 + $0x128] sm:$0xff]
        %v426 = vld [vmem:[%s387 + $0x130] sm:$0xff]
        %v427 = vld [vmem:[%s387 + $0x138] sm:$0xff]
        %v428 = vld [vmem:[%s387 + $0x140] sm:$0xff]
        %v429 = vld [vmem:[%s387 + $0x148] sm:$0xff]
        %v430 = vld [vmem:[%s387 + $0x150] sm:$0xff]
        %v431 = vld [vmem:[%s387 + $0x158] sm:$0xff]
        %v432 = vld [vmem:[%s387 + $0x160] sm:$0xff]
        %v433 = vld [vmem:[%s387 + $0x168] sm:$0xff]
        %v434 = vld [vmem:[%s387 + $0x170] sm:$0xff]
        %v435 = vld [vmem:[%s387 + $0x178] sm:$0xff]
        %436 = vmatprep.subr.mxu0 0.0
        %437 = vmatpush1.msra.mxu0 %v388
        %438 = vmatprep.subr.mxu0 0.0
        %439 = vmatpush1.msra.mxu0 %v389
        %440 = vmatprep.subr.mxu0 0.0
        %441 = vmatpush1.msra.mxu0 %v390
        %442 = vmatprep.subr.mxu0 0.0
        %443 = vmatpush1.msra.mxu0 %v391
        %444 = vmatprep.subr.mxu0 0.0
        %445 = vmatpush1.msra.mxu0 %v392
        %446 = vmatprep.subr.mxu0 0.0
        %447 = vmatpush1.msra.mxu0 %v393
        %448 = vmatprep.subr.mxu0 0.0
        %449 = vmatpush1.msra.mxu0 %v394
        %450 = vmatprep.subr.mxu0 0.0
        %451 = vmatpush1.msra.mxu0 %v395
        %452 = vmatprep.subr.mxu0 0.0
        %453 = vmatpush1.msra.mxu0 %v396
        %454 = vmatprep.subr.mxu0 0.0
        %455 = vmatpush1.msra.mxu0 %v397
        %456 = vmatprep.subr.mxu0 0.0
        %457 = vmatpush1.msra.mxu0 %v398
        %458 = vmatprep.subr.mxu0 0.0
        %459 = vmatpush1.msra.mxu0 %v399
        %460 = vmatprep.subr.mxu0 0.0
        %461 = vmatpush1.msra.mxu0 %v400
        %462 = vmatprep.subr.mxu0 0.0
        %463 = vmatpush1.msra.mxu0 %v401
        %464 = vmatprep.subr.mxu0 0.0
        %465 = vmatpush1.msra.mxu0 %v402
        %466 = vmatprep.subr.mxu0 0.0
        %467 = vmatpush1.msra.mxu0 %v403
        %468 = vmatprep.subr.mxu0 0.0
        %469 = vmatpush1.msra.mxu0 %v404
        %470 = vmatprep.subr.mxu0 0.0
        %471 = vmatpush1.msra.mxu0 %v405
        %472 = vmatprep.subr.mxu0 0.0
        %473 = vmatpush1.msra.mxu0 %v406
        %474 = vmatprep.subr.mxu0 0.0
        %475 = vmatpush1.msra.mxu0 %v407
        %476 = vmatprep.subr.mxu0 0.0
        %477 = vmatpush1.msra.mxu0 %v408
        %478 = vmatprep.subr.mxu0 0.0
        %479 = vmatpush1.msra.mxu0 %v409
        %480 = vmatprep.subr.mxu0 0.0
        %481 = vmatpush1.msra.mxu0 %v410
        %482 = vmatprep.subr.mxu0 0.0
        %483 = vmatpush1.msra.mxu0 %v411
        %484 = vmatprep.subr.mxu0 0.0
        %485 = vmatpush1.msra.mxu0 %v412
        %486 = vmatprep.subr.mxu0 0.0
        %487 = vmatpush1.msra.mxu0 %v413
        %488 = vmatprep.subr.mxu0 0.0
        %489 = vmatpush1.msra.mxu0 %v414
        %490 = vmatprep.subr.mxu0 0.0
        %491 = vmatpush1.msra.mxu0 %v415
        %492 = vmatprep.subr.mxu0 0.0
        %493 = vmatpush1.msra.mxu0 %v416
        %494 = vmatprep.subr.mxu0 0.0
        %495 = vmatpush1.msra.mxu0 %v417
        %496 = vmatprep.subr.mxu0 0.0
        %497 = vmatpush1.msra.mxu0 %v418
        %498 = vmatprep.subr.mxu0 0.0
        %499 = vmatpush1.msra.mxu0 %v419
        %500 = vmatprep.mubr.f32.mxu0 %v293
        %501 = vmatmul.mubr.f32.gmra.mrb[0].mxu0 %v269
        %v502 = vpop.f32.mrb[0].mxu0
        %v503 = vadd.f32 0.0, %v502
        %v504 = vpop.f32.mrb[0].mxu0
        %505 = vmatprep.mubr.f32.mxu0 %v294
        %506 = vmatmul.mubr.f32.gmra.mrb[0].mxu0 %v270
        %v507 = vpop.f32.mrb[0].mxu0
        %v508 = vadd.f32 0.0, %v507
        %v509 = vpop.f32.mrb[0].mxu0
        %510 = vmatprep.mubr.f32.mxu0 %v295
        %511 = vmatmul.mubr.f32.gmra.mrb[0].mxu0 %v271
        %v512 = vpop.f32.mrb[0].mxu0
        %v513 = vadd.f32 0.0, %v512
        %v514 = vpop.f32.mrb[0].mxu0
        %515 = vmatprep.mubr.f32.mxu0 %v296
        %516 = vmatmul.mubr.f32.gmra.mrb[0].mxu0 %v272
        %v517 = vpop.f32.mrb[0].mxu0
        %v518 = vadd.f32 0.0, %v517
        %v519 = vpop.f32.mrb[0].mxu0
        %520 = vmatprep.mubr.f32.mxu0 %v297
        %521 = vmatmul.mubr.f32.gmra.mrb[0].mxu0 %v273
        %v522 = vpop.f32.mrb[0].mxu0
        %v523 = vadd.f32 0.0, %v522
        %v524 = vpop.f32.mrb[0].mxu0
        %525 = vmatprep.mubr.f32.mxu0 %v298
        %526 = vmatmul.mubr.f32.gmra.mrb[0].mxu0 %v274
        %v527 = vpop.f32.mrb[0].mxu0
        %v528 = vadd.f32 0.0, %v527
        %v529 = vpop.f32.mrb[0].mxu0
        %530 = vmatprep.mubr.f32.mxu0 %v299
        %531 = vmatmul.mubr.f32.gmra.mrb[0].mxu0 %v275
        %v532 = vpop.f32.mrb[0].mxu0
        %v533 = vadd.f32 0.0, %v532
        %v534 = vpop.f32.mrb[0].mxu0
        %535 = vmatprep.mubr.f32.mxu0 %v300
        %536 = vmatmul.mubr.f32.gmra.mrb[0].mxu0 %v276
        %v537 = vpop.f32.mrb[0].mxu0
        %v538 = vadd.f32 0.0, %v537
        %v539 = vpop.f32.mrb[0].mxu0
        %540 = vmatprep.mubr.f32.mxu0 %v301
        %541 = vmatmul.mubr.f32.gmra.mrb[0].mxu0 %v277
        %v542 = vpop.f32.mrb[0].mxu0
        %v543 = vadd.f32 0.0, %v542
        %v544 = vpop.f32.mrb[0].mxu0
        %545 = vmatprep.mubr.f32.mxu0 %v302
        %546 = vmatmul.mubr.f32.gmra.mrb[0].mxu0 %v278
        %v547 = vpop.f32.mrb[0].mxu0
        %v548 = vadd.f32 0.0, %v547
        %v549 = vpop.f32.mrb[0].mxu0
        %550 = vmatprep.mubr.f32.mxu0 %v303
        %551 = vmatmul.mubr.f32.gmra.mrb[0].mxu0 %v279
        %v552 = vpop.f32.mrb[0].mxu0
        %v553 = vadd.f32 0.0, %v552
        %v554 = vpop.f32.mrb[0].mxu0
        %555 = vmatprep.mubr.f32.mxu0 %v304
        %556 = vmatmul.mubr.f32.gmra.mrb[0].mxu0 %v280
        %v557 = vpop.f32.mrb[0].mxu0
        %v558 = vadd.f32 0.0, %v557
        %v559 = vpop.f32.mrb[0].mxu0
        %560 = vmatprep.mubr.f32.mxu0 %v305
        %561 = vmatmul.mubr.f32.gmra.mrb[0].mxu0 %v281
        %v562 = vpop.f32.mrb[0].mxu0
        %v563 = vadd.f32 0.0, %v562
        %v564 = vpop.f32.mrb[0].mxu0
        %565 = vmatprep.mubr.f32.mxu0 %v306
        %566 = vmatmul.mubr.f32.gmra.mrb[0].mxu0 %v282
        %v567 = vpop.f32.mrb[0].mxu0
        %v568 = vadd.f32 0.0, %v567
        %v569 = vpop.f32.mrb[0].mxu0
        %570 = vmatprep.mubr.f32.mxu0 %v307
        %571 = vmatmul.mubr.f32.gmra.mrb[0].mxu0 %v283
        %v572 = vpop.f32.mrb[0].mxu0
        %v573 = vadd.f32 0.0, %v572
        %v574 = vpop.f32.mrb[0].mxu0
        %575 = vmatprep.mubr.f32.mxu0 %v308
        %576 = vmatmul.mubr.f32.gmra.mrb[0].mxu0 %v284
        %v577 = vpop.f32.mrb[0].mxu0
        %v578 = vadd.f32 0.0, %v577
        %v579 = vpop.f32.mrb[0].mxu0
        %580 = vmatprep.mubr.f32.mxu0 %v309
        %581 = vmatmul.mubr.f32.gmra.mrb[0].mxu0 %v285
        %v582 = vpop.f32.mrb[0].mxu0
        %v583 = vadd.f32 0.0, %v582
        %v584 = vpop.f32.mrb[0].mxu0
        %585 = vmatprep.mubr.f32.mxu0 %v310
        %586 = vmatmul.mubr.f32.gmra.mrb[0].mxu0 %v286
        %v587 = vpop.f32.mrb[0].mxu0
        %v588 = vadd.f32 0.0, %v587
        %v589 = vpop.f32.mrb[0].mxu0
        %590 = vmatprep.mubr.f32.mxu0 %v311
        %591 = vmatmul.mubr.f32.gmra.mrb[0].mxu0 %v287
        %v592 = vpop.f32.mrb[0].mxu0
        %v593 = vadd.f32 0.0, %v592
        %v594 = vpop.f32.mrb[0].mxu0
        %595 = vmatprep.mubr.f32.mxu0 %v312
        %596 = vmatmul.mubr.f32.gmra.mrb[0].mxu0 %v288
        %v597 = vpop.f32.mrb[0].mxu0
        %v598 = vadd.f32 0.0, %v597
        %v599 = vpop.f32.mrb[0].mxu0
        %600 = vdwg.mxu0
        %601 = vmatprep.subr.mxu0 0.0
        %602 = vmatpush1.msra.mxu0 %v420
        %603 = vmatprep.subr.mxu0 0.0
        %604 = vmatpush1.msra.mxu0 %v421
        %605 = vmatprep.subr.mxu0 0.0
        %606 = vmatpush1.msra.mxu0 %v422
        %607 = vmatprep.subr.mxu0 0.0
        %608 = vmatpush1.msra.mxu0 %v423
        %609 = vmatprep.subr.mxu0 0.0
        %610 = vmatpush1.msra.mxu0 %v424
        %611 = vmatprep.subr.mxu0 0.0
        %612 = vmatpush1.msra.mxu0 %v425
        %613 = vmatprep.subr.mxu0 0.0
        %614 = vmatpush1.msra.mxu0 %v426
        %615 = vmatprep.subr.mxu0 0.0
        %616 = vmatpush1.msra.mxu0 %v427
        %617 = vmatprep.subr.mxu0 0.0
        %618 = vmatpush1.msra.mxu0 %v428
        %619 = vmatprep.subr.mxu0 0.0
        %620 = vmatpush1.msra.mxu0 %v429
        %621 = vmatprep.subr.mxu0 0.0
        %622 = vmatpush1.msra.mxu0 %v430
        %623 = vmatprep.subr.mxu0 0.0
        %624 = vmatpush1.msra.mxu0 %v431
        %625 = vmatprep.subr.mxu0 0.0
        %626 = vmatpush1.msra.mxu0 %v432
        %627 = vmatprep.subr.mxu0 0.0
        %628 = vmatpush1.msra.mxu0 %v433
        %629 = vmatprep.subr.mxu0 0.0
        %630 = vmatpush1.msra.mxu0 %v434
        %631 = vmatprep.subr.mxu0 0.0
        %632 = vmatpush1.msra.mxu0 %v435
        %633 = vmatprep.subr.mxu0 0.0
        %634 = vmatpush1.msra.mxu0 0.0
        %635 = vmatprep.subr.mxu0 0.0
        %636 = vmatpush1.msra.mxu0 0.0
        %637 = vmatprep.subr.mxu0 0.0
        %638 = vmatpush1.msra.mxu0 0.0
        %639 = vmatprep.subr.mxu0 0.0
        %640 = vmatpush1.msra.mxu0 0.0
        %641 = vmatprep.subr.mxu0 0.0
        %642 = vmatpush1.msra.mxu0 0.0
        %643 = vmatprep.subr.mxu0 0.0
        %644 = vmatpush1.msra.mxu0 0.0
        %645 = vmatprep.subr.mxu0 0.0
        %646 = vmatpush1.msra.mxu0 0.0
        %647 = vmatprep.subr.mxu0 0.0
        %648 = vmatpush1.msra.mxu0 0.0
        %649 = vmatprep.subr.mxu0 0.0
        %650 = vmatpush1.msra.mxu0 0.0
        %651 = vmatprep.subr.mxu0 0.0
        %652 = vmatpush1.msra.mxu0 0.0
        %653 = vmatprep.subr.mxu0 0.0
        %654 = vmatpush1.msra.mxu0 0.0
        %655 = vmatprep.subr.mxu0 0.0
        %656 = vmatpush1.msra.mxu0 0.0
        %657 = vmatprep.subr.mxu0 0.0
        %658 = vmatpush1.msra.mxu0 0.0
        %659 = vmatprep.subr.mxu0 0.0
        %660 = vmatpush1.msra.mxu0 0.0
        %661 = vmatprep.subr.mxu0 0.0
        %662 = vmatpush1.msra.mxu0 0.0
        %663 = vmatprep.subr.mxu0 0.0
        %664 = vmatpush1.msra.mxu0 0.0
        %665 = vmatprep.mubr.f32.mxu0 0.0
        %666 = vmatmul.mubr.f32.gmra.mrb[0].mxu0 %v317
        %v667 = vpop.f32.mrb[0].mxu0
        %v668 = vadd.f32 %v503, %v667
        %v669 = vpop.f32.mrb[0].mxu0
        %670 = vmatprep.mubr.f32.mxu0 0.0
        %671 = vmatmul.mubr.f32.gmra.mrb[0].mxu0 %v318
        %v672 = vpop.f32.mrb[0].mxu0
        %v673 = vadd.f32 %v508, %v672
        %v674 = vpop.f32.mrb[0].mxu0
        %675 = vmatprep.mubr.f32.mxu0 0.0
        %676 = vmatmul.mubr.f32.gmra.mrb[0].mxu0 %v319
        %v677 = vpop.f32.mrb[0].mxu0
        %v678 = vadd.f32 %v513, %v677
        %v679 = vpop.f32.mrb[0].mxu0
        %680 = vmatprep.mubr.f32.mxu0 0.0
        %681 = vmatmul.mubr.f32.gmra.mrb[0].mxu0 %v320
        %v682 = vpop.f32.mrb[0].mxu0
        %v683 = vadd.f32 %v518, %v682
        %v684 = vpop.f32.mrb[0].mxu0
        %685 = vmatprep.mubr.f32.mxu0 0.0
        %686 = vmatmul.mubr.f32.gmra.mrb[0].mxu0 %v321
        %v687 = vpop.f32.mrb[0].mxu0
        %v688 = vadd.f32 %v523, %v687
        %v689 = vpop.f32.mrb[0].mxu0
        %690 = vmatprep.mubr.f32.mxu0 0.0
        %691 = vmatmul.mubr.f32.gmra.mrb[0].mxu0 %v322
        %v692 = vpop.f32.mrb[0].mxu0
        %v693 = vadd.f32 %v528, %v692
        %v694 = vpop.f32.mrb[0].mxu0
        %695 = vmatprep.mubr.f32.mxu0 0.0
        %696 = vmatmul.mubr.f32.gmra.mrb[0].mxu0 %v323
        %v697 = vpop.f32.mrb[0].mxu0
        %v698 = vadd.f32 %v533, %v697
        %v699 = vpop.f32.mrb[0].mxu0
        %700 = vmatprep.mubr.f32.mxu0 0.0
        %701 = vmatmul.mubr.f32.gmra.mrb[0].mxu0 %v324
        %v702 = vpop.f32.mrb[0].mxu0
        %v703 = vadd.f32 %v538, %v702
        %v704 = vpop.f32.mrb[0].mxu0
        %705 = vmatprep.mubr.f32.mxu0 0.0
        %706 = vmatmul.mubr.f32.gmra.mrb[0].mxu0 %v325
        %v707 = vpop.f32.mrb[0].mxu0
        %v708 = vadd.f32 %v543, %v707
        %v709 = vpop.f32.mrb[0].mxu0
        %710 = vmatprep.mubr.f32.mxu0 0.0
        %711 = vmatmul.mubr.f32.gmra.mrb[0].mxu0 %v326
        %v712 = vpop.f32.mrb[0].mxu0
        %v713 = vadd.f32 %v548, %v712
        %v714 = vpop.f32.mrb[0].mxu0
        %715 = vmatprep.mubr.f32.mxu0 0.0
        %716 = vmatmul.mubr.f32.gmra.mrb[0].mxu0 %v327
        %v717 = vpop.f32.mrb[0].mxu0
        %v718 = vadd.f32 %v553, %v717
        %v719 = vpop.f32.mrb[0].mxu0
        %720 = vmatprep.mubr.f32.mxu0 0.0
        %721 = vmatmul.mubr.f32.gmra.mrb[0].mxu0 %v328
        %v722 = vpop.f32.mrb[0].mxu0
        %v723 = vadd.f32 %v558, %v722
        %v724 = vpop.f32.mrb[0].mxu0
        %725 = vmatprep.mubr.f32.mxu0 0.0
        %726 = vmatmul.mubr.f32.gmra.mrb[0].mxu0 %v329
        %v727 = vpop.f32.mrb[0].mxu0
        %v728 = vadd.f32 %v563, %v727
        %v729 = vpop.f32.mrb[0].mxu0
        %730 = vmatprep.mubr.f32.mxu0 0.0
        %731 = vmatmul.mubr.f32.gmra.mrb[0].mxu0 %v330
        %v732 = vpop.f32.mrb[0].mxu0
        %v733 = vadd.f32 %v568, %v732
        %v734 = vpop.f32.mrb[0].mxu0
        %735 = vmatprep.mubr.f32.mxu0 0.0
        %736 = vmatmul.mubr.f32.gmra.mrb[0].mxu0 %v331
        %v737 = vpop.f32.mrb[0].mxu0
        %v738 = vadd.f32 %v573, %v737
        %v739 = vpop.f32.mrb[0].mxu0
        %740 = vmatprep.mubr.f32.mxu0 0.0
        %741 = vmatmul.mubr.f32.gmra.mrb[0].mxu0 %v332
        %v742 = vpop.f32.mrb[0].mxu0
        %v743 = vadd.f32 %v578, %v742
        %v744 = vpop.f32.mrb[0].mxu0
        %745 = vmatprep.mubr.f32.mxu0 0.0
        %746 = vmatmul.mubr.f32.gmra.mrb[0].mxu0 %v333
        %v747 = vpop.f32.mrb[0].mxu0
        %v748 = vadd.f32 %v583, %v747
        %v749 = vpop.f32.mrb[0].mxu0
        %750 = vmatprep.mubr.f32.mxu0 0.0
        %751 = vmatmul.mubr.f32.gmra.mrb[0].mxu0 %v334
        %v752 = vpop.f32.mrb[0].mxu0
        %v753 = vadd.f32 %v588, %v752
        %v754 = vpop.f32.mrb[0].mxu0
        %755 = vmatprep.mubr.f32.mxu0 0.0
        %756 = vmatmul.mubr.f32.gmra.mrb[0].mxu0 %v335
        %v757 = vpop.f32.mrb[0].mxu0
        %v758 = vadd.f32 %v593, %v757
        %v759 = vpop.f32.mrb[0].mxu0
        %760 = vmatprep.mubr.f32.mxu0 0.0
        %761 = vmatmul.mubr.f32.gmra.mrb[0].mxu0 %v336
        %v762 = vpop.f32.mrb[0].mxu0
        %v763 = vadd.f32 %v598, %v762
        %v764 = vpop.f32.mrb[0].mxu0
        %765 = vdwg.mxu0
        %766 = vmatprep.subr.mxu0 0.0
        %767 = vmatpush1.msra.mxu0 %v339
        %768 = vmatprep.subr.mxu0 0.0
        %769 = vmatpush1.msra.mxu0 %v340
        %770 = vmatprep.subr.mxu0 0.0
        %771 = vmatpush1.msra.mxu0 %v341
        %772 = vmatprep.subr.mxu0 0.0
        %773 = vmatpush1.msra.mxu0 %v342
        %774 = vmatprep.subr.mxu0 0.0
        %775 = vmatpush1.msra.mxu0 %v343
        %776 = vmatprep.subr.mxu0 0.0
        %777 = vmatpush1.msra.mxu0 %v344
        %778 = vmatprep.subr.mxu0 0.0
        %779 = vmatpush1.msra.mxu0 %v345
        %780 = vmatprep.subr.mxu0 0.0
        %781 = vmatpush1.msra.mxu0 %v346
        %782 = vmatprep.subr.mxu0 0.0
        %783 = vmatpush1.msra.mxu0 %v347
        %784 = vmatprep.subr.mxu0 0.0
        %785 = vmatpush1.msra.mxu0 %v348
        %786 = vmatprep.subr.mxu0 0.0
        %787 = vmatpush1.msra.mxu0 %v349
        %788 = vmatprep.subr.mxu0 0.0
        %789 = vmatpush1.msra.mxu0 %v350
        %790 = vmatprep.subr.mxu0 0.0
        %791 = vmatpush1.msra.mxu0 %v351
        %792 = vmatprep.subr.mxu0 0.0
        %793 = vmatpush1.msra.mxu0 %v352
        %794 = vmatprep.subr.mxu0 0.0
        %795 = vmatpush1.msra.mxu0 %v353
        %796 = vmatprep.subr.mxu0 0.0
        %797 = vmatpush1.msra.mxu0 %v354
        %798 = vmatprep.subr.mxu0 0.0
        %799 = vmatpush1.msra.mxu0 %v355
        %800 = vmatprep.subr.mxu0 0.0
        %801 = vmatpush1.msra.mxu0 %v356
        %802 = vmatprep.subr.mxu0 0.0
        %803 = vmatpush1.msra.mxu0 %v357
        %804 = vmatprep.subr.mxu0 0.0
        %805 = vmatpush1.msra.mxu0 %v358
        %806 = vmatprep.subr.mxu0 0.0
        %807 = vmatpush1.msra.mxu0 %v359
        %808 = vmatprep.subr.mxu0 0.0
        %809 = vmatpush1.msra.mxu0 %v360
        %810 = vmatprep.subr.mxu0 0.0
        %811 = vmatpush1.msra.mxu0 %v361
        %812 = vmatprep.subr.mxu0 0.0
        %813 = vmatpush1.msra.mxu0 %v362
        %814 = vmatprep.subr.mxu0 0.0
        %815 = vmatpush1.msra.mxu0 %v363
        %816 = vmatprep.subr.mxu0 0.0
        %817 = vmatpush1.msra.mxu0 %v364
        %818 = vmatprep.subr.mxu0 0.0
        %819 = vmatpush1.msra.mxu0 %v365
        %820 = vmatprep.subr.mxu0 0.0
        %821 = vmatpush1.msra.mxu0 %v366
        %822 = vmatprep.subr.mxu0 0.0
        %823 = vmatpush1.msra.mxu0 %v367
        %824 = vmatprep.subr.mxu0 0.0
        %825 = vmatpush1.msra.mxu0 %v368
        %826 = vmatprep.subr.mxu0 0.0
        %827 = vmatpush1.msra.mxu0 %v369
        %828 = vmatprep.subr.mxu0 0.0
        %829 = vmatpush1.msra.mxu0 %v370
        %830 = vmatprep.mubr.f32.mxu0 %v291
        %831 = vmatmul.mubr.f32.gmra.mrb[0].mxu0 %v267
        %v832 = vpop.f32.mrb[0].mxu0
        %v833 = vadd.f32 %v668, %v832
        %v834 = vpop.f32.mrb[0].mxu0
        %835 = vmatprep.mubr.f32.mxu0 %v292
        %836 = vmatmul.mubr.f32.gmra.mrb[0].mxu0 %v268
        %v837 = vpop.f32.mrb[0].mxu0
        %v838 = vadd.f32 %v673, %v837
        %v839 = vpop.f32.mrb[0].mxu0
        %840 = vmatprep.mubr.f32.mxu0 %v293
        %841 = vmatmul.mubr.f32.gmra.mrb[0].mxu0 %v269
        %v842 = vpop.f32.mrb[0].mxu0
        %v843 = vadd.f32 %v678, %v842
        %v844 = vpop.f32.mrb[0].mxu0
        %845 = vmatprep.mubr.f32.mxu0 %v294
        %846 = vmatmul.mubr.f32.gmra.mrb[0].mxu0 %v270
        %v847 = vpop.f32.mrb[0].mxu0
        %v848 = vadd.f32 %v683, %v847
        %v849 = vpop.f32.mrb[0].mxu0
        %850 = vmatprep.mubr.f32.mxu0 %v295
        %851 = vmatmul.mubr.f32.gmra.mrb[0].mxu0 %v271
        %v852 = vpop.f32.mrb[0].mxu0
        %v853 = vadd.f32 %v688, %v852
        %v854 = vpop.f32.mrb[0].mxu0
        %855 = vmatprep.mubr.f32.mxu0 %v296
        %856 = vmatmul.mubr.f32.gmra.mrb[0].mxu0 %v272
        %v857 = vpop.f32.mrb[0].mxu0
        %v858 = vadd.f32 %v693, %v857
        %v859 = vpop.f32.mrb[0].mxu0
        %860 = vmatprep.mubr.f32.mxu0 %v297
        %861 = vmatmul.mubr.f32.gmra.mrb[0].mxu0 %v273
        %v862 = vpop.f32.mrb[0].mxu0
        %v863 = vadd.f32 %v698, %v862
        %v864 = vpop.f32.mrb[0].mxu0
        %865 = vmatprep.mubr.f32.mxu0 %v298
        %866 = vmatmul.mubr.f32.gmra.mrb[0].mxu0 %v274
        %v867 = vpop.f32.mrb[0].mxu0
        %v868 = vadd.f32 %v703, %v867
        %v869 = vpop.f32.mrb[0].mxu0
        %870 = vmatprep.mubr.f32.mxu0 %v299
        %871 = vmatmul.mubr.f32.gmra.mrb[0].mxu0 %v275
        %v872 = vpop.f32.mrb[0].mxu0
        %v873 = vadd.f32 %v708, %v872
        %v874 = vpop.f32.mrb[0].mxu0
        %875 = vmatprep.mubr.f32.mxu0 %v300
        %876 = vmatmul.mubr.f32.gmra.mrb[0].mxu0 %v276
        %v877 = vpop.f32.mrb[0].mxu0
        %v878 = vadd.f32 %v713, %v877
        %v879 = vpop.f32.mrb[0].mxu0
        %880 = vmatprep.mubr.f32.mxu0 %v301
        %881 = vmatmul.mubr.f32.gmra.mrb[0].mxu0 %v277
        %v882 = vpop.f32.mrb[0].mxu0
        %v883 = vadd.f32 %v718, %v882
        %v884 = vpop.f32.mrb[0].mxu0
        %885 = vmatprep.mubr.f32.mxu0 %v302
        %886 = vmatmul.mubr.f32.gmra.mrb[0].mxu0 %v278
        %v887 = vpop.f32.mrb[0].mxu0
        %v888 = vadd.f32 %v723, %v887
        %v889 = vpop.f32.mrb[0].mxu0
        %890 = vmatprep.mubr.f32.mxu0 %v303
        %891 = vmatmul.mubr.f32.gmra.mrb[0].mxu0 %v279
        %v892 = vpop.f32.mrb[0].mxu0
        %v893 = vadd.f32 %v728, %v892
        %v894 = vpop.f32.mrb[0].mxu0
        %895 = vmatprep.mubr.f32.mxu0 %v304
        %896 = vmatmul.mubr.f32.gmra.mrb[0].mxu0 %v280
        %v897 = vpop.f32.mrb[0].mxu0
        %v898 = vadd.f32 %v733, %v897
        %v899 = vpop.f32.mrb[0].mxu0
        %900 = vmatprep.mubr.f32.mxu0 %v305
        %901 = vmatmul.mubr.f32.gmra.mrb[0].mxu0 %v281
        %v902 = vpop.f32.mrb[0].mxu0
        %v903 = vadd.f32 %v738, %v902
        %v904 = vpop.f32.mrb[0].mxu0
        %905 = vmatprep.mubr.f32.mxu0 %v306
        %906 = vmatmul.mubr.f32.gmra.mrb[0].mxu0 %v282
        %v907 = vpop.f32.mrb[0].mxu0
        %v908 = vadd.f32 %v743, %v907
        %v909 = vpop.f32.mrb[0].mxu0
        %910 = vmatprep.mubr.f32.mxu0 %v307
        %911 = vmatmul.mubr.f32.gmra.mrb[0].mxu0 %v283
        %v912 = vpop.f32.mrb[0].mxu0
        %v913 = vadd.f32 %v748, %v912
        %v914 = vpop.f32.mrb[0].mxu0
        %915 = vmatprep.mubr.f32.mxu0 %v308
        %916 = vmatmul.mubr.f32.gmra.mrb[0].mxu0 %v284
        %v917 = vpop.f32.mrb[0].mxu0
        %v918 = vadd.f32 %v753, %v917
        %v919 = vpop.f32.mrb[0].mxu0
        %920 = vmatprep.mubr.f32.mxu0 %v309
        %921 = vmatmul.mubr.f32.gmra.mrb[0].mxu0 %v285
        %v922 = vpop.f32.mrb[0].mxu0
        %v923 = vadd.f32 %v758, %v922
        %v924 = vpop.f32.mrb[0].mxu0
        %925 = vmatprep.mubr.f32.mxu0 %v310
        %926 = vmatmul.mubr.f32.gmra.mrb[0].mxu0 %v286
        %v927 = vpop.f32.mrb[0].mxu0
        %v928 = vadd.f32 %v763, %v927
        %v929 = vpop.f32.mrb[0].mxu0
        %930 = vdwg.mxu0
        %931 = vmatprep.subr.mxu0 0.0
        %932 = vmatpush1.msra.mxu0 %v371
        %933 = vmatprep.subr.mxu0 0.0
        %934 = vmatpush1.msra.mxu0 %v372
        %935 = vmatprep.subr.mxu0 0.0
        %936 = vmatpush1.msra.mxu0 %v373
        %937 = vmatprep.subr.mxu0 0.0
        %938 = vmatpush1.msra.mxu0 %v374
        %939 = vmatprep.subr.mxu0 0.0
        %940 = vmatpush1.msra.mxu0 %v375
        %941 = vmatprep.subr.mxu0 0.0
        %942 = vmatpush1.msra.mxu0 %v376
        %943 = vmatprep.subr.mxu0 0.0
        %944 = vmatpush1.msra.mxu0 %v377
        %945 = vmatprep.subr.mxu0 0.0
        %946 = vmatpush1.msra.mxu0 %v378
        %947 = vmatprep.subr.mxu0 0.0
        %948 = vmatpush1.msra.mxu0 %v379
        %949 = vmatprep.subr.mxu0 0.0
        %950 = vmatpush1.msra.mxu0 %v380
        %951 = vmatprep.subr.mxu0 0.0
        %952 = vmatpush1.msra.mxu0 %v381
        %953 = vmatprep.subr.mxu0 0.0
        %954 = vmatpush1.msra.mxu0 %v382
        %955 = vmatprep.subr.mxu0 0.0
        %956 = vmatpush1.msra.mxu0 %v383
        %957 = vmatprep.subr.mxu0 0.0
        %958 = vmatpush1.msra.mxu0 %v384
        %959 = vmatprep.subr.mxu0 0.0
        %960 = vmatpush1.msra.mxu0 %v385
        %961 = vmatprep.subr.mxu0 0.0
        %962 = vmatpush1.msra.mxu0 %v386
        %963 = vmatprep.subr.mxu0 0.0
        %964 = vmatpush1.msra.mxu0 0.0
        %965 = vmatprep.subr.mxu0 0.0
        %966 = vmatpush1.msra.mxu0 0.0
        %967 = vmatprep.subr.mxu0 0.0
        %968 = vmatpush1.msra.mxu0 0.0
        %969 = vmatprep.subr.mxu0 0.0
        %970 = vmatpush1.msra.mxu0 0.0
        %971 = vmatprep.subr.mxu0 0.0
        %972 = vmatpush1.msra.mxu0 0.0
        %973 = vmatprep.subr.mxu0 0.0
        %974 = vmatpush1.msra.mxu0 0.0
        %975 = vmatprep.subr.mxu0 0.0
        %976 = vmatpush1.msra.mxu0 0.0
        %977 = vmatprep.subr.mxu0 0.0
        %978 = vmatpush1.msra.mxu0 0.0
        %979 = vmatprep.subr.mxu0 0.0
        %980 = vmatpush1.msra.mxu0 0.0
        %981 = vmatprep.subr.mxu0 0.0
        %982 = vmatpush1.msra.mxu0 0.0
        %983 = vmatprep.subr.mxu0 0.0
        %984 = vmatpush1.msra.mxu0 0.0
        %985 = vmatprep.subr.mxu0 0.0
        %986 = vmatpush1.msra.mxu0 0.0
        %987 = vmatprep.subr.mxu0 0.0
        %988 = vmatpush1.msra.mxu0 0.0
        %989 = vmatprep.subr.mxu0 0.0
        %990 = vmatpush1.msra.mxu0 0.0
        %991 = vmatprep.subr.mxu0 0.0
        %992 = vmatpush1.msra.mxu0 0.0
        %993 = vmatprep.subr.mxu0 0.0
        %994 = vmatpush1.msra.mxu0 0.0
        %995 = vmatprep.mubr.f32.mxu0 0.0
        %996 = vmatmul.mubr.f32.gmra.mrb[0].mxu0 %v315
        %v997 = vpop.f32.mrb[0].mxu0
        %v998 = vadd.f32 %v833, %v997
        %v999 = vpop.f32.mrb[0].mxu0
        %1000 = vmatprep.mubr.f32.mxu0 0.0
        %1001 = vmatmul.mubr.f32.gmra.mrb[0].mxu0 %v316
        %v1002 = vpop.f32.mrb[0].mxu0
        %v1003 = vadd.f32 %v838, %v1002
        %v1004 = vpop.f32.mrb[0].mxu0
        %1005 = vmatprep.mubr.f32.mxu0 0.0
        %1006 = vmatmul.mubr.f32.gmra.mrb[0].mxu0 %v317
        %v1007 = vpop.f32.mrb[0].mxu0
        %v1008 = vadd.f32 %v843, %v1007
        %v1009 = vpop.f32.mrb[0].mxu0
        %1010 = vmatprep.mubr.f32.mxu0 0.0
        %1011 = vmatmul.mubr.f32.gmra.mrb[0].mxu0 %v318
        %v1012 = vpop.f32.mrb[0].mxu0
        %v1013 = vadd.f32 %v848, %v1012
        %v1014 = vpop.f32.mrb[0].mxu0
        %1015 = vmatprep.mubr.f32.mxu0 0.0
        %1016 = vmatmul.mubr.f32.gmra.mrb[0].mxu0 %v319
        %v1017 = vpop.f32.mrb[0].mxu0
        %v1018 = vadd.f32 %v853, %v1017
        %v1019 = vpop.f32.mrb[0].mxu0
        %1020 = vmatprep.mubr.f32.mxu0 0.0
        %1021 = vmatmul.mubr.f32.gmra.mrb[0].mxu0 %v320
        %v1022 = vpop.f32.mrb[0].mxu0
        %v1023 = vadd.f32 %v858, %v1022
        %v1024 = vpop.f32.mrb[0].mxu0
        %1025 = vmatprep.mubr.f32.mxu0 0.0
        %1026 = vmatmul.mubr.f32.gmra.mrb[0].mxu0 %v321
        %v1027 = vpop.f32.mrb[0].mxu0
        %v1028 = vadd.f32 %v863, %v1027
        %v1029 = vpop.f32.mrb[0].mxu0
        %1030 = vmatprep.mubr.f32.mxu0 0.0
        %1031 = vmatmul.mubr.f32.gmra.mrb[0].mxu0 %v322
        %v1032 = vpop.f32.mrb[0].mxu0
        %v1033 = vadd.f32 %v868, %v1032
        %v1034 = vpop.f32.mrb[0].mxu0
        %1035 = vmatprep.mubr.f32.mxu0 0.0
        %1036 = vmatmul.mubr.f32.gmra.mrb[0].mxu0 %v323
        %v1037 = vpop.f32.mrb[0].mxu0
        %v1038 = vadd.f32 %v873, %v1037
        %v1039 = vpop.f32.mrb[0].mxu0
        %1040 = vmatprep.mubr.f32.mxu0 0.0
        %1041 = vmatmul.mubr.f32.gmra.mrb[0].mxu0 %v324
        %v1042 = vpop.f32.mrb[0].mxu0
        %v1043 = vadd.f32 %v878, %v1042
        %v1044 = vpop.f32.mrb[0].mxu0
        %1045 = vmatprep.mubr.f32.mxu0 0.0
        %1046 = vmatmul.mubr.f32.gmra.mrb[0].mxu0 %v325
        %v1047 = vpop.f32.mrb[0].mxu0
        %v1048 = vadd.f32 %v883, %v1047
        %v1049 = vpop.f32.mrb[0].mxu0
        %1050 = vmatprep.mubr.f32.mxu0 0.0
        %1051 = vmatmul.mubr.f32.gmra.mrb[0].mxu0 %v326
        %v1052 = vpop.f32.mrb[0].mxu0
        %v1053 = vadd.f32 %v888, %v1052
        %v1054 = vpop.f32.mrb[0].mxu0
        %1055 = vmatprep.mubr.f32.mxu0 0.0
        %1056 = vmatmul.mubr.f32.gmra.mrb[0].mxu0 %v327
        %v1057 = vpop.f32.mrb[0].mxu0
        %v1058 = vadd.f32 %v893, %v1057
        %v1059 = vpop.f32.mrb[0].mxu0
        %1060 = vmatprep.mubr.f32.mxu0 0.0
        %1061 = vmatmul.mubr.f32.gmra.mrb[0].mxu0 %v328
        %v1062 = vpop.f32.mrb[0].mxu0
        %v1063 = vadd.f32 %v898, %v1062
        %v1064 = vpop.f32.mrb[0].mxu0
        %1065 = vmatprep.mubr.f32.mxu0 0.0
        %1066 = vmatmul.mubr.f32.gmra.mrb[0].mxu0 %v329
        %v1067 = vpop.f32.mrb[0].mxu0
        %v1068 = vadd.f32 %v903, %v1067
        %v1069 = vpop.f32.mrb[0].mxu0
        %1070 = vmatprep.mubr.f32.mxu0 0.0
        %1071 = vmatmul.mubr.f32.gmra.mrb[0].mxu0 %v330
        %v1072 = vpop.f32.mrb[0].mxu0
        %v1073 = vadd.f32 %v908, %v1072
        %v1074 = vpop.f32.mrb[0].mxu0
        %1075 = vmatprep.mubr.f32.mxu0 0.0
        %1076 = vmatmul.mubr.f32.gmra.mrb[0].mxu0 %v331
        %v1077 = vpop.f32.mrb[0].mxu0
        %v1078 = vadd.f32 %v913, %v1077
        %v1079 = vpop.f32.mrb[0].mxu0
        %1080 = vmatprep.mubr.f32.mxu0 0.0
        %1081 = vmatmul.mubr.f32.gmra.mrb[0].mxu0 %v332
        %v1082 = vpop.f32.mrb[0].mxu0
        %v1083 = vadd.f32 %v918, %v1082
        %v1084 = vpop.f32.mrb[0].mxu0
        %1085 = vmatprep.mubr.f32.mxu0 0.0
        %1086 = vmatmul.mubr.f32.gmra.mrb[0].mxu0 %v333
        %v1087 = vpop.f32.mrb[0].mxu0
        %v1088 = vadd.f32 %v923, %v1087
        %v1089 = vpop.f32.mrb[0].mxu0
        %1090 = vmatprep.mubr.f32.mxu0 0.0
        %1091 = vmatmul.mubr.f32.gmra.mrb[0].mxu0 %v334
        %v1092 = vpop.f32.mrb[0].mxu0
        %v1093 = vadd.f32 %v928, %v1092
        %v1094 = vpop.f32.mrb[0].mxu0
        %1095 = vdwg.mxu0
        %s1096 = scalar_lea.vmem %s1, 768
        %v1097 = vld [vmem:[%s1096] sm:$0xff]
        %v1098 = vld [vmem:[%s1096 + $0x8] sm:$0xff]
        %v1099 = vld [vmem:[%s1096 + $0x10] sm:$0xff]
        %v1100 = vld [vmem:[%s1096 + $0x18] sm:$0xff]
        %v1101 = vld [vmem:[%s1096 + $0x20] sm:$0xff]
        %v1102 = vld [vmem:[%s1096 + $0x28] sm:$0xff]
        %v1103 = vld [vmem:[%s1096 + $0x30] sm:$0xff]
        %v1104 = vld [vmem:[%s1096 + $0x38] sm:$0xff]
        %v1105 = vld [vmem:[%s1096 + $0x40] sm:$0xff]
        %v1106 = vld [vmem:[%s1096 + $0x48] sm:$0xff]
        %v1107 = vld [vmem:[%s1096 + $0x50] sm:$0xff]
        %v1108 = vld [vmem:[%s1096 + $0x58] sm:$0xff]
        %v1109 = vld [vmem:[%s1096 + $0x60] sm:$0xff]
        %v1110 = vld [vmem:[%s1096 + $0x68] sm:$0xff]
        %v1111 = vld [vmem:[%s1096 + $0x70] sm:$0xff]
        %v1112 = vld [vmem:[%s1096 + $0x78] sm:$0xff]
        %v1113 = vld [vmem:[%s1096 + $0x80] sm:$0xff]
        %v1114 = vld [vmem:[%s1096 + $0x88] sm:$0xff]
        %v1115 = vld [vmem:[%s1096 + $0x90] sm:$0xff]
        %v1116 = vld [vmem:[%s1096 + $0x98] sm:$0xff]
        %v1117 = vld [vmem:[%s1096 + $0xa0] sm:$0xff]
        %v1118 = vld [vmem:[%s1096 + $0xa8] sm:$0xff]
        %v1119 = vld [vmem:[%s1096 + $0xb0] sm:$0xff]
        %v1120 = vld [vmem:[%s1096 + $0xb8] sm:$0xff]
        %v1121 = vld [vmem:[%s1096 + $0xc0] sm:$0xff]
        %v1122 = vld [vmem:[%s1096 + $0xc8] sm:$0xff]
        %v1123 = vld [vmem:[%s1096 + $0xd0] sm:$0xff]
        %v1124 = vld [vmem:[%s1096 + $0xd8] sm:$0xff]
        %v1125 = vld [vmem:[%s1096 + $0xe0] sm:$0xff]
        %v1126 = vld [vmem:[%s1096 + $0xe8] sm:$0xff]
        %v1127 = vld [vmem:[%s1096 + $0xf0] sm:$0xff]
        %v1128 = vld [vmem:[%s1096 + $0xf8] sm:$0xff]
        %v1129 = vld [vmem:[%s1096 + $0x100] sm:$0xff]
        %v1130 = vld [vmem:[%s1096 + $0x108] sm:$0xff]
        %v1131 = vld [vmem:[%s1096 + $0x110] sm:$0xff]
        %v1132 = vld [vmem:[%s1096 + $0x118] sm:$0xff]
        %v1133 = vld [vmem:[%s1096 + $0x120] sm:$0xff]
        %v1134 = vld [vmem:[%s1096 + $0x128] sm:$0xff]
        %v1135 = vld [vmem:[%s1096 + $0x130] sm:$0xff]
        %v1136 = vld [vmem:[%s1096 + $0x138] sm:$0xff]
        %v1137 = vld [vmem:[%s1096 + $0x140] sm:$0xff]
        %v1138 = vld [vmem:[%s1096 + $0x148] sm:$0xff]
        %v1139 = vld [vmem:[%s1096 + $0x150] sm:$0xff]
        %v1140 = vld [vmem:[%s1096 + $0x158] sm:$0xff]
        %v1141 = vld [vmem:[%s1096 + $0x160] sm:$0xff]
        %v1142 = vld [vmem:[%s1096 + $0x168] sm:$0xff]
        %v1143 = vld [vmem:[%s1096 + $0x170] sm:$0xff]
        %v1144 = vld [vmem:[%s1096 + $0x178] sm:$0xff]
        %1145 = vmatprep.subr.mxu0 0.0
        %1146 = vmatpush1.msra.mxu0 %v1097
        %1147 = vmatprep.subr.mxu0 0.0
        %1148 = vmatpush1.msra.mxu0 %v1098
        %1149 = vmatprep.subr.mxu0 0.0
        %1150 = vmatpush1.msra.mxu0 %v1099
        %1151 = vmatprep.subr.mxu0 0.0
        %1152 = vmatpush1.msra.mxu0 %v1100
        %1153 = vmatprep.subr.mxu0 0.0
        %1154 = vmatpush1.msra.mxu0 %v1101
        %1155 = vmatprep.subr.mxu0 0.0
        %1156 = vmatpush1.msra.mxu0 %v1102
        %1157 = vmatprep.subr.mxu0 0.0
        %1158 = vmatpush1.msra.mxu0 %v1103
        %1159 = vmatprep.subr.mxu0 0.0
        %1160 = vmatpush1.msra.mxu0 %v1104
        %1161 = vmatprep.subr.mxu0 0.0
        %1162 = vmatpush1.msra.mxu0 %v1105
        %1163 = vmatprep.subr.mxu0 0.0
        %1164 = vmatpush1.msra.mxu0 %v1106
        %1165 = vmatprep.subr.mxu0 0.0
        %1166 = vmatpush1.msra.mxu0 %v1107
        %1167 = vmatprep.subr.mxu0 0.0
        %1168 = vmatpush1.msra.mxu0 %v1108
        %1169 = vmatprep.subr.mxu0 0.0
        %1170 = vmatpush1.msra.mxu0 %v1109
        %1171 = vmatprep.subr.mxu0 0.0
        %1172 = vmatpush1.msra.mxu0 %v1110
        %1173 = vmatprep.subr.mxu0 0.0
        %1174 = vmatpush1.msra.mxu0 %v1111
        %1175 = vmatprep.subr.mxu0 0.0
        %1176 = vmatpush1.msra.mxu0 %v1112
        %1177 = vmatprep.subr.mxu0 0.0
        %1178 = vmatpush1.msra.mxu0 %v1113
        %1179 = vmatprep.subr.mxu0 0.0
        %1180 = vmatpush1.msra.mxu0 %v1114
        %1181 = vmatprep.subr.mxu0 0.0
        %1182 = vmatpush1.msra.mxu0 %v1115
        %1183 = vmatprep.subr.mxu0 0.0
        %1184 = vmatpush1.msra.mxu0 %v1116
        %1185 = vmatprep.subr.mxu0 0.0
        %1186 = vmatpush1.msra.mxu0 %v1117
        %1187 = vmatprep.subr.mxu0 0.0
        %1188 = vmatpush1.msra.mxu0 %v1118
        %1189 = vmatprep.subr.mxu0 0.0
        %1190 = vmatpush1.msra.mxu0 %v1119
        %1191 = vmatprep.subr.mxu0 0.0
        %1192 = vmatpush1.msra.mxu0 %v1120
        %1193 = vmatprep.subr.mxu0 0.0
        %1194 = vmatpush1.msra.mxu0 %v1121
        %1195 = vmatprep.subr.mxu0 0.0
        %1196 = vmatpush1.msra.mxu0 %v1122
        %1197 = vmatprep.subr.mxu0 0.0
        %1198 = vmatpush1.msra.mxu0 %v1123
        %1199 = vmatprep.subr.mxu0 0.0
        %1200 = vmatpush1.msra.mxu0 %v1124
        %1201 = vmatprep.subr.mxu0 0.0
        %1202 = vmatpush1.msra.mxu0 %v1125
        %1203 = vmatprep.subr.mxu0 0.0
        %1204 = vmatpush1.msra.mxu0 %v1126
        %1205 = vmatprep.subr.mxu0 0.0
        %1206 = vmatpush1.msra.mxu0 %v1127
        %1207 = vmatprep.subr.mxu0 0.0
        %1208 = vmatpush1.msra.mxu0 %v1128
        %1209 = vmatprep.mubr.f32.mxu0 %v295
        %1210 = vmatmul.mubr.f32.gmra.mrb[0].mxu0 %v271
        %v1211 = vpop.f32.mrb[0].mxu0
        %v1212 = vadd.f32 0.0, %v1211
        %v1213 = vpop.f32.mrb[0].mxu0
        %1214 = vmatprep.mubr.f32.mxu0 %v296
        %1215 = vmatmul.mubr.f32.gmra.mrb[0].mxu0 %v272
        %v1216 = vpop.f32.mrb[0].mxu0
        %v1217 = vadd.f32 0.0, %v1216
        %v1218 = vpop.f32.mrb[0].mxu0
        %1219 = vmatprep.mubr.f32.mxu0 %v297
        %1220 = vmatmul.mubr.f32.gmra.mrb[0].mxu0 %v273
        %v1221 = vpop.f32.mrb[0].mxu0
        %v1222 = vadd.f32 0.0, %v1221
        %v1223 = vpop.f32.mrb[0].mxu0
        %1224 = vmatprep.mubr.f32.mxu0 %v298
        %1225 = vmatmul.mubr.f32.gmra.mrb[0].mxu0 %v274
        %v1226 = vpop.f32.mrb[0].mxu0
        %v1227 = vadd.f32 0.0, %v1226
        %v1228 = vpop.f32.mrb[0].mxu0
        %1229 = vmatprep.mubr.f32.mxu0 %v299
        %1230 = vmatmul.mubr.f32.gmra.mrb[0].mxu0 %v275
        %v1231 = vpop.f32.mrb[0].mxu0
        %v1232 = vadd.f32 0.0, %v1231
        %v1233 = vpop.f32.mrb[0].mxu0
        %1234 = vmatprep.mubr.f32.mxu0 %v300
        %1235 = vmatmul.mubr.f32.gmra.mrb[0].mxu0 %v276
        %v1236 = vpop.f32.mrb[0].mxu0
        %v1237 = vadd.f32 0.0, %v1236
        %v1238 = vpop.f32.mrb[0].mxu0
        %1239 = vmatprep.mubr.f32.mxu0 %v301
        %1240 = vmatmul.mubr.f32.gmra.mrb[0].mxu0 %v277
        %v1241 = vpop.f32.mrb[0].mxu0
        %v1242 = vadd.f32 0.0, %v1241
        %v1243 = vpop.f32.mrb[0].mxu0
        %1244 = vmatprep.mubr.f32.mxu0 %v302
        %1245 = vmatmul.mubr.f32.gmra.mrb[0].mxu0 %v278
        %v1246 = vpop.f32.mrb[0].mxu0
        %v1247 = vadd.f32 0.0, %v1246
        %v1248 = vpop.f32.mrb[0].mxu0
        %1249 = vmatprep.mubr.f32.mxu0 %v303
        %1250 = vmatmul.mubr.f32.gmra.mrb[0].mxu0 %v279
        %v1251 = vpop.f32.mrb[0].mxu0
        %v1252 = vadd.f32 0.0, %v1251
        %v1253 = vpop.f32.mrb[0].mxu0
        %1254 = vmatprep.mubr.f32.mxu0 %v304
        %1255 = vmatmul.mubr.f32.gmra.mrb[0].mxu0 %v280
        %v1256 = vpop.f32.mrb[0].mxu0
        %v1257 = vadd.f32 0.0, %v1256
        %v1258 = vpop.f32.mrb[0].mxu0
        %1259 = vmatprep.mubr.f32.mxu0 %v305
        %1260 = vmatmul.mubr.f32.gmra.mrb[0].mxu0 %v281
        %v1261 = vpop.f32.mrb[0].mxu0
        %v1262 = vadd.f32 0.0, %v1261
        %v1263 = vpop.f32.mrb[0].mxu0
        %1264 = vmatprep.mubr.f32.mxu0 %v306
        %1265 = vmatmul.mubr.f32.gmra.mrb[0].mxu0 %v282
        %v1266 = vpop.f32.mrb[0].mxu0
        %v1267 = vadd.f32 0.0, %v1266
        %v1268 = vpop.f32.mrb[0].mxu0
        %1269 = vmatprep.mubr.f32.mxu0 %v307
        %1270 = vmatmul.mubr.f32.gmra.mrb[0].mxu0 %v283
        %v1271 = vpop.f32.mrb[0].mxu0
        %v1272 = vadd.f32 0.0, %v1271
        %v1273 = vpop.f32.mrb[0].mxu0
        %1274 = vmatprep.mubr.f32.mxu0 %v308
        %1275 = vmatmul.mubr.f32.gmra.mrb[0].mxu0 %v284
        %v1276 = vpop.f32.mrb[0].mxu0
        %v1277 = vadd.f32 0.0, %v1276
        %v1278 = vpop.f32.mrb[0].mxu0
        %1279 = vmatprep.mubr.f32.mxu0 %v309
        %1280 = vmatmul.mubr.f32.gmra.mrb[0].mxu0 %v285
        %v1281 = vpop.f32.mrb[0].mxu0
        %v1282 = vadd.f32 0.0, %v1281
        %v1283 = vpop.f32.mrb[0].mxu0
        %1284 = vmatprep.mubr.f32.mxu0 %v310
        %1285 = vmatmul.mubr.f32.gmra.mrb[0].mxu0 %v286
        %v1286 = vpop.f32.mrb[0].mxu0
        %v1287 = vadd.f32 0.0, %v1286
        %v1288 = vpop.f32.mrb[0].mxu0
        %1289 = vmatprep.mubr.f32.mxu0 %v311
        %1290 = vmatmul.mubr.f32.gmra.mrb[0].mxu0 %v287
        %v1291 = vpop.f32.mrb[0].mxu0
        %v1292 = vadd.f32 0.0, %v1291
        %v1293 = vpop.f32.mrb[0].mxu0
        %1294 = vmatprep.mubr.f32.mxu0 %v312
        %1295 = vmatmul.mubr.f32.gmra.mrb[0].mxu0 %v288
        %v1296 = vpop.f32.mrb[0].mxu0
        %v1297 = vadd.f32 0.0, %v1296
        %v1298 = vpop.f32.mrb[0].mxu0
        %1299 = vmatprep.mubr.f32.mxu0 %v313
        %1300 = vmatmul.mubr.f32.gmra.mrb[0].mxu0 %v289
        %v1301 = vpop.f32.mrb[0].mxu0
        %v1302 = vadd.f32 0.0, %v1301
        %v1303 = vpop.f32.mrb[0].mxu0
        %1304 = vmatprep.mubr.f32.mxu0 %v314
        %1305 = vmatmul.mubr.f32.gmra.mrb[0].mxu0 %v290
        %v1306 = vpop.f32.mrb[0].mxu0
        %v1307 = vadd.f32 0.0, %v1306
        %v1308 = vpop.f32.mrb[0].mxu0
        %1309 = vdwg.mxu0
        %1310 = vmatprep.subr.mxu0 0.0
        %1311 = vmatpush1.msra.mxu0 %v1129
        %1312 = vmatprep.subr.mxu0 0.0
        %1313 = vmatpush1.msra.mxu0 %v1130
        %1314 = vmatprep.subr.mxu0 0.0
        %1315 = vmatpush1.msra.mxu0 %v1131
        %1316 = vmatprep.subr.mxu0 0.0
        %1317 = vmatpush1.msra.mxu0 %v1132
        %1318 = vmatprep.subr.mxu0 0.0
        %1319 = vmatpush1.msra.mxu0 %v1133
        %1320 = vmatprep.subr.mxu0 0.0
        %1321 = vmatpush1.msra.mxu0 %v1134
        %1322 = vmatprep.subr.mxu0 0.0
        %1323 = vmatpush1.msra.mxu0 %v1135
        %1324 = vmatprep.subr.mxu0 0.0
        %1325 = vmatpush1.msra.mxu0 %v1136
        %1326 = vmatprep.subr.mxu0 0.0
        %1327 = vmatpush1.msra.mxu0 %v1137
        %1328 = vmatprep.subr.mxu0 0.0
        %1329 = vmatpush1.msra.mxu0 %v1138
        %1330 = vmatprep.subr.mxu0 0.0
        %1331 = vmatpush1.msra.mxu0 %v1139
        %1332 = vmatprep.subr.mxu0 0.0
        %1333 = vmatpush1.msra.mxu0 %v1140
        %1334 = vmatprep.subr.mxu0 0.0
        %1335 = vmatpush1.msra.mxu0 %v1141
        %1336 = vmatprep.subr.mxu0 0.0
        %1337 = vmatpush1.msra.mxu0 %v1142
        %1338 = vmatprep.subr.mxu0 0.0
        %1339 = vmatpush1.msra.mxu0 %v1143
        %1340 = vmatprep.subr.mxu0 0.0
        %1341 = vmatpush1.msra.mxu0 %v1144
        %1342 = vmatprep.subr.mxu0 0.0
        %1343 = vmatpush1.msra.mxu0 0.0
        %1344 = vmatprep.subr.mxu0 0.0
        %1345 = vmatpush1.msra.mxu0 0.0
        %1346 = vmatprep.subr.mxu0 0.0
        %1347 = vmatpush1.msra.mxu0 0.0
        %1348 = vmatprep.subr.mxu0 0.0
        %1349 = vmatpush1.msra.mxu0 0.0
        %1350 = vmatprep.subr.mxu0 0.0
        %1351 = vmatpush1.msra.mxu0 0.0
        %1352 = vmatprep.subr.mxu0 0.0
        %1353 = vmatpush1.msra.mxu0 0.0
        %1354 = vmatprep.subr.mxu0 0.0
        %1355 = vmatpush1.msra.mxu0 0.0
        %1356 = vmatprep.subr.mxu0 0.0
        %1357 = vmatpush1.msra.mxu0 0.0
        %1358 = vmatprep.subr.mxu0 0.0
        %1359 = vmatpush1.msra.mxu0 0.0
        %1360 = vmatprep.subr.mxu0 0.0
        %1361 = vmatpush1.msra.mxu0 0.0
        %1362 = vmatprep.subr.mxu0 0.0
        %1363 = vmatpush1.msra.mxu0 0.0
        %1364 = vmatprep.subr.mxu0 0.0
        %1365 = vmatpush1.msra.mxu0 0.0
        %1366 = vmatprep.subr.mxu0 0.0
        %1367 = vmatpush1.msra.mxu0 0.0
        %1368 = vmatprep.subr.mxu0 0.0
        %1369 = vmatpush1.msra.mxu0 0.0
        %1370 = vmatprep.subr.mxu0 0.0
        %1371 = vmatpush1.msra.mxu0 0.0
        %1372 = vmatprep.subr.mxu0 0.0
        %1373 = vmatpush1.msra.mxu0 0.0
        %1374 = vmatprep.mubr.f32.mxu0 0.0
        %1375 = vmatmul.mubr.f32.gmra.mrb[0].mxu0 %v319
        %v1376 = vpop.f32.mrb[0].mxu0
        %v1377 = vadd.f32 %v1212, %v1376
        %v1378 = vpop.f32.mrb[0].mxu0
        %1379 = vmatprep.mubr.f32.mxu0 0.0
        %1380 = vmatmul.mubr.f32.gmra.mrb[0].mxu0 %v320
        %v1381 = vpop.f32.mrb[0].mxu0
        %v1382 = vadd.f32 %v1217, %v1381
        %v1383 = vpop.f32.mrb[0].mxu0
        %1384 = vmatprep.mubr.f32.mxu0 0.0
        %1385 = vmatmul.mubr.f32.gmra.mrb[0].mxu0 %v321
        %v1386 = vpop.f32.mrb[0].mxu0
        %v1387 = vadd.f32 %v1222, %v1386
        %v1388 = vpop.f32.mrb[0].mxu0
        %1389 = vmatprep.mubr.f32.mxu0 0.0
        %1390 = vmatmul.mubr.f32.gmra.mrb[0].mxu0 %v322
        %v1391 = vpop.f32.mrb[0].mxu0
        %v1392 = vadd.f32 %v1227, %v1391
        %v1393 = vpop.f32.mrb[0].mxu0
        %1394 = vmatprep.mubr.f32.mxu0 0.0
        %1395 = vmatmul.mubr.f32.gmra.mrb[0].mxu0 %v323
        %v1396 = vpop.f32.mrb[0].mxu0
        %v1397 = vadd.f32 %v1232, %v1396
        %v1398 = vpop.f32.mrb[0].mxu0
        %1399 = vmatprep.mubr.f32.mxu0 0.0
        %1400 = vmatmul.mubr.f32.gmra.mrb[0].mxu0 %v324
        %v1401 = vpop.f32.mrb[0].mxu0
        %v1402 = vadd.f32 %v1237, %v1401
        %v1403 = vpop.f32.mrb[0].mxu0
        %1404 = vmatprep.mubr.f32.mxu0 0.0
        %1405 = vmatmul.mubr.f32.gmra.mrb[0].mxu0 %v325
        %v1406 = vpop.f32.mrb[0].mxu0
        %v1407 = vadd.f32 %v1242, %v1406
        %v1408 = vpop.f32.mrb[0].mxu0
        %1409 = vmatprep.mubr.f32.mxu0 0.0
        %1410 = vmatmul.mubr.f32.gmra.mrb[0].mxu0 %v326
        %v1411 = vpop.f32.mrb[0].mxu0
        %v1412 = vadd.f32 %v1247, %v1411
        %v1413 = vpop.f32.mrb[0].mxu0
        %1414 = vmatprep.mubr.f32.mxu0 0.0
        %1415 = vmatmul.mubr.f32.gmra.mrb[0].mxu0 %v327
        %v1416 = vpop.f32.mrb[0].mxu0
        %v1417 = vadd.f32 %v1252, %v1416
        %v1418 = vpop.f32.mrb[0].mxu0
        %1419 = vmatprep.mubr.f32.mxu0 0.0
        %1420 = vmatmul.mubr.f32.gmra.mrb[0].mxu0 %v328
        %v1421 = vpop.f32.mrb[0].mxu0
        %v1422 = vadd.f32 %v1257, %v1421
        %v1423 = vpop.f32.mrb[0].mxu0
        %1424 = vmatprep.mubr.f32.mxu0 0.0
        %1425 = vmatmul.mubr.f32.gmra.mrb[0].mxu0 %v329
        %v1426 = vpop.f32.mrb[0].mxu0
        %v1427 = vadd.f32 %v1262, %v1426
        %v1428 = vpop.f32.mrb[0].mxu0
        %1429 = vmatprep.mubr.f32.mxu0 0.0
        %1430 = vmatmul.mubr.f32.gmra.mrb[0].mxu0 %v330
        %v1431 = vpop.f32.mrb[0].mxu0
        %v1432 = vadd.f32 %v1267, %v1431
        %v1433 = vpop.f32.mrb[0].mxu0
        %1434 = vmatprep.mubr.f32.mxu0 0.0
        %1435 = vmatmul.mubr.f32.gmra.mrb[0].mxu0 %v331
        %v1436 = vpop.f32.mrb[0].mxu0
        %v1437 = vadd.f32 %v1272, %v1436
        %v1438 = vpop.f32.mrb[0].mxu0
        %1439 = vmatprep.mubr.f32.mxu0 0.0
        %1440 = vmatmul.mubr.f32.gmra.mrb[0].mxu0 %v332
        %v1441 = vpop.f32.mrb[0].mxu0
        %v1442 = vadd.f32 %v1277, %v1441
        %v1443 = vpop.f32.mrb[0].mxu0
        %1444 = vmatprep.mubr.f32.mxu0 0.0
        %1445 = vmatmul.mubr.f32.gmra.mrb[0].mxu0 %v333
        %v1446 = vpop.f32.mrb[0].mxu0
        %v1447 = vadd.f32 %v1282, %v1446
        %v1448 = vpop.f32.mrb[0].mxu0
        %1449 = vmatprep.mubr.f32.mxu0 0.0
        %1450 = vmatmul.mubr.f32.gmra.mrb[0].mxu0 %v334
        %v1451 = vpop.f32.mrb[0].mxu0
        %v1452 = vadd.f32 %v1287, %v1451
        %v1453 = vpop.f32.mrb[0].mxu0
        %1454 = vmatprep.mubr.f32.mxu0 0.0
        %1455 = vmatmul.mubr.f32.gmra.mrb[0].mxu0 %v335
        %v1456 = vpop.f32.mrb[0].mxu0
        %v1457 = vadd.f32 %v1292, %v1456
        %v1458 = vpop.f32.mrb[0].mxu0
        %1459 = vmatprep.mubr.f32.mxu0 0.0
        %1460 = vmatmul.mubr.f32.gmra.mrb[0].mxu0 %v336
        %v1461 = vpop.f32.mrb[0].mxu0
        %v1462 = vadd.f32 %v1297, %v1461
        %v1463 = vpop.f32.mrb[0].mxu0
        %1464 = vmatprep.mubr.f32.mxu0 0.0
        %1465 = vmatmul.mubr.f32.gmra.mrb[0].mxu0 %v337
        %v1466 = vpop.f32.mrb[0].mxu0
        %v1467 = vadd.f32 %v1302, %v1466
        %v1468 = vpop.f32.mrb[0].mxu0
        %1469 = vmatprep.mubr.f32.mxu0 0.0
        %1470 = vmatmul.mubr.f32.gmra.mrb[0].mxu0 %v338
        %v1471 = vpop.f32.mrb[0].mxu0
        %v1472 = vadd.f32 %v1307, %v1471
        %v1473 = vpop.f32.mrb[0].mxu0
        %1474 = vdwg.mxu0
        %v1475 = vadd.f32 %v998, %v1377
        %v1476 = vadd.f32 %v1003, %v1382
        %v1477 = vadd.f32 %v1008, %v1387
        %v1478 = vadd.f32 %v1013, %v1392
        %v1479 = vadd.f32 %v1018, %v1397
        %v1480 = vadd.f32 %v1023, %v1402
        %v1481 = vadd.f32 %v1028, %v1407
        %v1482 = vadd.f32 %v1033, %v1412
        %v1483 = vadd.f32 %v1038, %v1417
        %v1484 = vadd.f32 %v1043, %v1422
        %v1485 = vadd.f32 %v1048, %v1427
        %v1486 = vadd.f32 %v1053, %v1432
        %v1487 = vadd.f32 %v1058, %v1437
        %v1488 = vadd.f32 %v1063, %v1442
        %v1489 = vadd.f32 %v1068, %v1447
        %v1490 = vadd.f32 %v1073, %v1452
        %v1491 = vadd.f32 %v1078, %v1457
        %v1492 = vadd.f32 %v1083, %v1462
        %v1493 = vadd.f32 %v1088, %v1467
        %v1494 = vadd.f32 %v1093, %v1472
        %v1495 = vld [vmem:[%s3] sm:$0x1]
        %v1496 = vld [vmem:[%s3 + $0x1] sm:$0x1]
        %v1497 = vlaneseq
        %v1498 = vshrl.u32 %v1497, 7
        %v1499 = vsub.s32 0, %v1498
        %v1500 = vrot.slane %v1495, %v1499
        %v1501 = vmul.f32 %v1475, %v1500
        %v1502 = vmul.f32 %v1476, %v1500
        %v1503 = vmul.f32 %v1477, %v1500
        %v1504 = vmul.f32 %v1478, %v1500
        %v1505 = vmul.f32 %v1479, %v1500
        %v1506 = vmul.f32 %v1480, %v1500
        %v1507 = vmul.f32 %v1481, %v1500
        %v1508 = vmul.f32 %v1482, %v1500
        %v1509 = vmul.f32 %v1483, %v1500
        %v1510 = vmul.f32 %v1484, %v1500
        %v1511 = vmul.f32 %v1485, %v1500
        %v1512 = vmul.f32 %v1486, %v1500
        %v1513 = vmul.f32 %v1487, %v1500
        %v1514 = vmul.f32 %v1488, %v1500
        %v1515 = vmul.f32 %v1489, %v1500
        %v1516 = vmul.f32 %v1490, %v1500
        %v1517 = vmul.f32 %v1491, %v1500
        %v1518 = vmul.f32 %v1492, %v1500
        %v1519 = vmul.f32 %v1493, %v1500
        %v1520 = vmul.f32 %v1494, %v1500
        %v1521 = vlaneseq
        %v1522 = vshrl.u32 %v1521, 7
        %v1523 = vsub.s32 0, %v1522
        %v1524 = vrot.slane %v1496, %v1523
        %v1525 = vadd.f32 %v1501, %v1524
        %v1526 = vadd.f32 %v1502, %v1524
        %v1527 = vadd.f32 %v1503, %v1524
        %v1528 = vadd.f32 %v1504, %v1524
        %v1529 = vadd.f32 %v1505, %v1524
        %v1530 = vadd.f32 %v1506, %v1524
        %v1531 = vadd.f32 %v1507, %v1524
        %v1532 = vadd.f32 %v1508, %v1524
        %v1533 = vadd.f32 %v1509, %v1524
        %v1534 = vadd.f32 %v1510, %v1524
        %v1535 = vadd.f32 %v1511, %v1524
        %v1536 = vadd.f32 %v1512, %v1524
        %v1537 = vadd.f32 %v1513, %v1524
        %v1538 = vadd.f32 %v1514, %v1524
        %v1539 = vadd.f32 %v1515, %v1524
        %v1540 = vadd.f32 %v1516, %v1524
        %v1541 = vadd.f32 %v1517, %v1524
        %v1542 = vadd.f32 %v1518, %v1524
        %v1543 = vadd.f32 %v1519, %v1524
        %v1544 = vadd.f32 %v1520, %v1524
        %v1545 = vmax.f32 %v1525, 0.0
        %v1546 = vmax.f32 %v1526, 0.0
        %v1547 = vmax.f32 %v1527, 0.0
        %v1548 = vmax.f32 %v1528, 0.0
        %v1549 = vmax.f32 %v1529, 0.0
        %v1550 = vmax.f32 %v1530, 0.0
        %v1551 = vmax.f32 %v1531, 0.0
        %v1552 = vmax.f32 %v1532, 0.0
        %v1553 = vmax.f32 %v1533, 0.0
        %v1554 = vmax.f32 %v1534, 0.0
        %v1555 = vmax.f32 %v1535, 0.0
        %v1556 = vmax.f32 %v1536, 0.0
        %v1557 = vmax.f32 %v1537, 0.0
        %v1558 = vmax.f32 %v1538, 0.0
        %v1559 = vmax.f32 %v1539, 0.0
        %v1560 = vmax.f32 %v1540, 0.0
        %v1561 = vmax.f32 %v1541, 0.0
        %v1562 = vmax.f32 %v1542, 0.0
        %v1563 = vmax.f32 %v1543, 0.0
        %v1564 = vmax.f32 %v1544, 0.0
        %s1565 = smul.u32 %s25, 8
        %s1566 = ssub.s32 %s1565, 1
        %v1567 = vstv %s1566
        %v1568 = vadd.s32 %v1567, 1
        %v1569 = vadd.s32 %v1567, 2
        %v1570 = vadd.s32 %v1567, 3
        %v1571 = vadd.s32 %v1567, 4
        %v1572 = vadd.s32 %v1567, 5
        %v1573 = vadd.s32 %v1567, 6
        %v1574 = vadd.s32 %v1567, 7
        %v1575 = vadd.s32 %v1567, 8
        %v1576 = vadd.s32 %v1567, 9
        %vm1577 = vcmp.ge.s32.totalorder %v1567, 0
        %vm1578 = vcmp.ge.s32.totalorder %v1568, 0
        %vm1579 = vcmp.ge.s32.totalorder %v1569, 0
        %vm1580 = vcmp.ge.s32.totalorder %v1570, 0
        %vm1581 = vcmp.ge.s32.totalorder %v1571, 0
        %vm1582 = vcmp.ge.s32.totalorder %v1572, 0
        %vm1583 = vcmp.ge.s32.totalorder %v1573, 0
        %vm1584 = vcmp.ge.s32.totalorder %v1574, 0
        %vm1585 = vcmp.ge.s32.totalorder %v1575, 0
        %vm1586 = vcmp.ge.s32.totalorder %v1576, 0
        %vm1587 = vcmp.lt.s32.totalorder %v1567, 16
        %vm1588 = vcmp.lt.s32.totalorder %v1568, 16
        %vm1589 = vcmp.lt.s32.totalorder %v1569, 16
        %vm1590 = vcmp.lt.s32.totalorder %v1570, 16
        %vm1591 = vcmp.lt.s32.totalorder %v1571, 16
        %vm1592 = vcmp.lt.s32.totalorder %v1572, 16
        %vm1593 = vcmp.lt.s32.totalorder %v1573, 16
        %vm1594 = vcmp.lt.s32.totalorder %v1574, 16
        %vm1595 = vcmp.lt.s32.totalorder %v1575, 16
        %vm1596 = vcmp.lt.s32.totalorder %v1576, 16
        %vm1597 = vmand %vm1577, %vm1587
        %vm1598 = vmand %vm1578, %vm1588
        %vm1599 = vmand %vm1579, %vm1589
        %vm1600 = vmand %vm1580, %vm1590
        %vm1601 = vmand %vm1581, %vm1591
        %vm1602 = vmand %vm1582, %vm1592
        %vm1603 = vmand %vm1583, %vm1593
        %vm1604 = vmand %vm1584, %vm1594
        %vm1605 = vmand %vm1585, %vm1595
        %vm1606 = vmand %vm1586, %vm1596
        %v1607 = vsel %vm1597, 1, 0
        %v1608 = vsel %vm1598, 1, 0
        %v1609 = vsel %vm1599, 1, 0
        %v1610 = vsel %vm1600, 1, 0
        %v1611 = vsel %vm1601, 1, 0
        %v1612 = vsel %vm1602, 1, 0
        %v1613 = vsel %vm1603, 1, 0
        %v1614 = vsel %vm1604, 1, 0
        %v1615 = vsel %vm1605, 1, 0
        %v1616 = vsel %vm1606, 1, 0
        %vm1617 = vcmp.eq.s32.totalorder %v1607, 1
        %vm1618 = vcmp.eq.s32.totalorder %v1608, 1
        %vm1619 = vcmp.eq.s32.totalorder %v1609, 1
        %vm1620 = vcmp.eq.s32.totalorder %v1610, 1
        %vm1621 = vcmp.eq.s32.totalorder %v1611, 1
        %vm1622 = vcmp.eq.s32.totalorder %v1612, 1
        %vm1623 = vcmp.eq.s32.totalorder %v1613, 1
        %vm1624 = vcmp.eq.s32.totalorder %v1614, 1
        %vm1625 = vcmp.eq.s32.totalorder %v1615, 1
        %vm1626 = vcmp.eq.s32.totalorder %v1616, 1
        %v1627 = vsel %vm1617, %v1545, 0.0
        %v1628 = vsel %vm1617, %v1546, 0.0
        %v1629 = vsel %vm1618, %v1547, 0.0
        %v1630 = vsel %vm1618, %v1548, 0.0
        %v1631 = vsel %vm1619, %v1549, 0.0
        %v1632 = vsel %vm1619, %v1550, 0.0
        %v1633 = vsel %vm1620, %v1551, 0.0
        %v1634 = vsel %vm1620, %v1552, 0.0
        %v1635 = vsel %vm1621, %v1553, 0.0
        %v1636 = vsel %vm1621, %v1554, 0.0
        %v1637 = vsel %vm1622, %v1555, 0.0
        %v1638 = vsel %vm1622, %v1556, 0.0
        %v1639 = vsel %vm1623, %v1557, 0.0
        %v1640 = vsel %vm1623, %v1558, 0.0
        %v1641 = vsel %vm1624, %v1559, 0.0
        %v1642 = vsel %vm1624, %v1560, 0.0
        %v1643 = vsel %vm1625, %v1561, 0.0
        %v1644 = vsel %vm1625, %v1562, 0.0
        %v1645 = vsel %vm1626, %v1563, 0.0
        %v1646 = vsel %vm1626, %v1564, 0.0
        %vm1667 = vcmask 1040384
        %v1668 = vrot.slane %v1627, 7
        %v1669 = vrot.slane %v1628, 7
        %v1670 = vsel %vm1667, %v1668, %v1669
        %v1671 = vrot.slane %v1629, 7
        %v1672 = vrot.slane %v1630, 7
        %v1673 = vsel %vm1667, %v1671, %v1672
        %v1674 = vrot.slane %v1631, 7
        %v1675 = vrot.slane %v1632, 7
        %v1676 = vsel %vm1667, %v1674, %v1675
        %v1677 = vrot.slane %v1633, 7
        %v1678 = vrot.slane %v1634, 7
        %v1679 = vsel %vm1667, %v1677, %v1678
        %v1680 = vrot.slane %v1635, 7
        %v1681 = vrot.slane %v1636, 7
        %v1682 = vsel %vm1667, %v1680, %v1681
        %v1683 = vrot.slane %v1637, 7
        %v1684 = vrot.slane %v1638, 7
        %v1685 = vsel %vm1667, %v1683, %v1684
        %v1686 = vrot.slane %v1639, 7
        %v1687 = vrot.slane %v1640, 7
        %v1688 = vsel %vm1667, %v1686, %v1687
        %v1689 = vrot.slane %v1641, 7
        %v1690 = vrot.slane %v1642, 7
        %v1691 = vsel %vm1667, %v1689, %v1690
        %v1692 = vrot.slane %v1643, 7
        %v1693 = vrot.slane %v1644, 7
        %v1694 = vsel %vm1667, %v1692, %v1693
        %v1695 = vrot.slane %v1645, 7
        %v1696 = vrot.slane %v1646, 7
        %v1697 = vsel %vm1667, %v1695, %v1696
        %v1718 = vsel %vm1667, 0.0, %v1668
        %v1719 = vsel %vm1667, 0.0, %v1671
        %v1720 = vsel %vm1667, 0.0, %v1674
        %v1721 = vsel %vm1667, 0.0, %v1677
        %v1722 = vsel %vm1667, 0.0, %v1680
        %v1723 = vsel %vm1667, 0.0, %v1683
        %v1724 = vsel %vm1667, 0.0, %v1686
        %v1725 = vsel %vm1667, 0.0, %v1689
        %v1726 = vsel %vm1667, 0.0, %v1692
        %v1727 = vsel %vm1667, 0.0, %v1695
        %vm1728 = vcmask 1046528
        %v1729 = vrot.slane %v1627, 1
        %v1730 = vrot.slane %v1628, 1
        %v1731 = vsel %vm1728, %v1729, %v1730
        %v1732 = vrot.slane %v1629, 1
        %v1733 = vrot.slane %v1630, 1
        %v1734 = vsel %vm1728, %v1732, %v1733
        %v1735 = vrot.slane %v1631, 1
        %v1736 = vrot.slane %v1632, 1
        %v1737 = vsel %vm1728, %v1735, %v1736
        %v1738 = vrot.slane %v1633, 1
        %v1739 = vrot.slane %v1634, 1
        %v1740 = vsel %vm1728, %v1738, %v1739
        %v1741 = vrot.slane %v1635, 1
        %v1742 = vrot.slane %v1636, 1
        %v1743 = vsel %vm1728, %v1741, %v1742
        %v1744 = vrot.slane %v1637, 1
        %v1745 = vrot.slane %v1638, 1
        %v1746 = vsel %vm1728, %v1744, %v1745
        %v1747 = vrot.slane %v1639, 1
        %v1748 = vrot.slane %v1640, 1
        %v1749 = vsel %vm1728, %v1747, %v1748
        %v1750 = vrot.slane %v1641, 1
        %v1751 = vrot.slane %v1642, 1
        %v1752 = vsel %vm1728, %v1750, %v1751
        %v1753 = vrot.slane %v1643, 1
        %v1754 = vrot.slane %v1644, 1
        %v1755 = vsel %vm1728, %v1753, %v1754
        %v1756 = vrot.slane %v1645, 1
        %v1757 = vrot.slane %v1646, 1
        %v1758 = vsel %vm1728, %v1756, %v1757
        %v1779 = vsel %vm1728, %v1730, 0.0
        %v1780 = vsel %vm1728, %v1733, 0.0
        %v1781 = vsel %vm1728, %v1736, 0.0
        %v1782 = vsel %vm1728, %v1739, 0.0
        %v1783 = vsel %vm1728, %v1742, 0.0
        %v1784 = vsel %vm1728, %v1745, 0.0
        %v1785 = vsel %vm1728, %v1748, 0.0
        %v1786 = vsel %vm1728, %v1751, 0.0
        %v1787 = vsel %vm1728, %v1754, 0.0
        %v1788 = vsel %vm1728, %v1757, 0.0
        %v1789 = vld [vmem:[#allocation2] sm:$0xff]
        %v1790 = vld [vmem:[#allocation2 + $0x8] sm:$0xff]
        %v1791 = vld [vmem:[#allocation2 + $0x10] sm:$0xff]
        %v1792 = vld [vmem:[#allocation2 + $0x18] sm:$0xff]
        %v1793 = vld [vmem:[#allocation2 + $0x20] sm:$0xff]
        %v1794 = vld [vmem:[#allocation2 + $0x28] sm:$0xff]
        %v1795 = vld [vmem:[#allocation2 + $0x30] sm:$0xff]
        %v1796 = vld [vmem:[#allocation2 + $0x38] sm:$0xff]
        %v1797 = vld [vmem:[#allocation2 + $0x40] sm:$0xff]
        %v1798 = vld [vmem:[#allocation2 + $0x48] sm:$0xff]
        %v1799 = vld [vmem:[#allocation2 + $0x50] sm:$0xff]
        %v1800 = vld [vmem:[#allocation2 + $0x58] sm:$0xff]
        %v1801 = vld [vmem:[#allocation2 + $0x60] sm:$0xff]
        %v1802 = vld [vmem:[#allocation2 + $0x68] sm:$0xff]
        %v1803 = vld [vmem:[#allocation2 + $0x70] sm:$0xff]
        %v1804 = vld [vmem:[#allocation2 + $0x78] sm:$0xff]
        %v1805 = vld [vmem:[#allocation2 + $0x80] sm:$0xff]
        %v1806 = vld [vmem:[#allocation2 + $0x88] sm:$0xff]
        %v1807 = vld [vmem:[#allocation2 + $0x90] sm:$0xff]
        %v1808 = vld [vmem:[#allocation2 + $0x98] sm:$0xff]
        %v1809 = vld [vmem:[#allocation2 + $0xa0] sm:$0xff]
        %v1810 = vld [vmem:[#allocation2 + $0xa8] sm:$0xff]
        %v1811 = vld [vmem:[#allocation2 + $0xb0] sm:$0xff]
        %v1812 = vld [vmem:[#allocation2 + $0xb8] sm:$0xff]
        %v1813 = vld [vmem:[#allocation2 + $0xc0] sm:$0xff]
        %v1814 = vld [vmem:[#allocation2 + $0xc8] sm:$0xff]
        %v1815 = vld [vmem:[#allocation2 + $0xd0] sm:$0xff]
        %v1816 = vld [vmem:[#allocation2 + $0xd8] sm:$0xff]
        %v1817 = vld [vmem:[#allocation2 + $0xe0] sm:$0xff]
        %v1818 = vld [vmem:[#allocation2 + $0xe8] sm:$0xff]
        %v1819 = vld [vmem:[#allocation2 + $0xf0] sm:$0xff]
        %v1820 = vld [vmem:[#allocation2 + $0xf8] sm:$0xff]
        %v1821 = vld [vmem:[#allocation2 + $0x100] sm:$0xff]
        %v1822 = vld [vmem:[#allocation2 + $0x108] sm:$0xff]
        %v1823 = vld [vmem:[#allocation2 + $0x110] sm:$0xff]
        %v1824 = vld [vmem:[#allocation2 + $0x118] sm:$0xff]
        %v1825 = vld [vmem:[#allocation2 + $0x120] sm:$0xff]
        %v1826 = vld [vmem:[#allocation2 + $0x128] sm:$0xff]
        %v1827 = vld [vmem:[#allocation2 + $0x130] sm:$0xff]
        %v1828 = vld [vmem:[#allocation2 + $0x138] sm:$0xff]
        %v1829 = vld [vmem:[#allocation2 + $0x140] sm:$0xff]
        %v1830 = vld [vmem:[#allocation2 + $0x148] sm:$0xff]
        %v1831 = vld [vmem:[#allocation2 + $0x150] sm:$0xff]
        %v1832 = vld [vmem:[#allocation2 + $0x158] sm:$0xff]
        %v1833 = vld [vmem:[#allocation2 + $0x160] sm:$0xff]
        %v1834 = vld [vmem:[#allocation2 + $0x168] sm:$0xff]
        %v1835 = vld [vmem:[#allocation2 + $0x170] sm:$0xff]
        %v1836 = vld [vmem:[#allocation2 + $0x178] sm:$0xff]
        %s1837 = scalar_lea.vmem [#allocation2], 384
        %v1838 = vld [vmem:[%s1837] sm:$0xff]
        %v1839 = vld [vmem:[%s1837 + $0x8] sm:$0xff]
        %v1840 = vld [vmem:[%s1837 + $0x10] sm:$0xff]
        %v1841 = vld [vmem:[%s1837 + $0x18] sm:$0xff]
        %v1842 = vld [vmem:[%s1837 + $0x20] sm:$0xff]
        %v1843 = vld [vmem:[%s1837 + $0x28] sm:$0xff]
        %v1844 = vld [vmem:[%s1837 + $0x30] sm:$0xff]
        %v1845 = vld [vmem:[%s1837 + $0x38] sm:$0xff]
        %v1846 = vld [vmem:[%s1837 + $0x40] sm:$0xff]
        %v1847 = vld [vmem:[%s1837 + $0x48] sm:$0xff]
        %v1848 = vld [vmem:[%s1837 + $0x50] sm:$0xff]
        %v1849 = vld [vmem:[%s1837 + $0x58] sm:$0xff]
        %v1850 = vld [vmem:[%s1837 + $0x60] sm:$0xff]
        %v1851 = vld [vmem:[%s1837 + $0x68] sm:$0xff]
        %v1852 = vld [vmem:[%s1837 + $0x70] sm:$0xff]
        %v1853 = vld [vmem:[%s1837 + $0x78] sm:$0xff]
        %v1854 = vld [vmem:[%s1837 + $0x80] sm:$0xff]
        %v1855 = vld [vmem:[%s1837 + $0x88] sm:$0xff]
        %v1856 = vld [vmem:[%s1837 + $0x90] sm:$0xff]
        %v1857 = vld [vmem:[%s1837 + $0x98] sm:$0xff]
        %v1858 = vld [vmem:[%s1837 + $0xa0] sm:$0xff]
        %v1859 = vld [vmem:[%s1837 + $0xa8] sm:$0xff]
        %v1860 = vld [vmem:[%s1837 + $0xb0] sm:$0xff]
        %v1861 = vld [vmem:[%s1837 + $0xb8] sm:$0xff]
        %v1862 = vld [vmem:[%s1837 + $0xc0] sm:$0xff]
        %v1863 = vld [vmem:[%s1837 + $0xc8] sm:$0xff]
        %v1864 = vld [vmem:[%s1837 + $0xd0] sm:$0xff]
        %v1865 = vld [vmem:[%s1837 + $0xd8] sm:$0xff]
        %v1866 = vld [vmem:[%s1837 + $0xe0] sm:$0xff]
        %v1867 = vld [vmem:[%s1837 + $0xe8] sm:$0xff]
        %v1868 = vld [vmem:[%s1837 + $0xf0] sm:$0xff]
        %v1869 = vld [vmem:[%s1837 + $0xf8] sm:$0xff]
        %v1870 = vld [vmem:[%s1837 + $0x100] sm:$0xff]
        %v1871 = vld [vmem:[%s1837 + $0x108] sm:$0xff]
        %v1872 = vld [vmem:[%s1837 + $0x110] sm:$0xff]
        %v1873 = vld [vmem:[%s1837 + $0x118] sm:$0xff]
        %v1874 = vld [vmem:[%s1837 + $0x120] sm:$0xff]
        %v1875 = vld [vmem:[%s1837 + $0x128] sm:$0xff]
        %v1876 = vld [vmem:[%s1837 + $0x130] sm:$0xff]
        %v1877 = vld [vmem:[%s1837 + $0x138] sm:$0xff]
        %v1878 = vld [vmem:[%s1837 + $0x140] sm:$0xff]
        %v1879 = vld [vmem:[%s1837 + $0x148] sm:$0xff]
        %v1880 = vld [vmem:[%s1837 + $0x150] sm:$0xff]
        %v1881 = vld [vmem:[%s1837 + $0x158] sm:$0xff]
        %v1882 = vld [vmem:[%s1837 + $0x160] sm:$0xff]
        %v1883 = vld [vmem:[%s1837 + $0x168] sm:$0xff]
        %v1884 = vld [vmem:[%s1837 + $0x170] sm:$0xff]
        %v1885 = vld [vmem:[%s1837 + $0x178] sm:$0xff]
        %1886 = vmatprep.subr.mxu0 0.0
        %1887 = vmatpush1.msra.mxu0 %v1838
        %1888 = vmatprep.subr.mxu0 0.0
        %1889 = vmatpush1.msra.mxu0 %v1839
        %1890 = vmatprep.subr.mxu0 0.0
        %1891 = vmatpush1.msra.mxu0 %v1840
        %1892 = vmatprep.subr.mxu0 0.0
        %1893 = vmatpush1.msra.mxu0 %v1841
        %1894 = vmatprep.subr.mxu0 0.0
        %1895 = vmatpush1.msra.mxu0 %v1842
        %1896 = vmatprep.subr.mxu0 0.0
        %1897 = vmatpush1.msra.mxu0 %v1843
        %1898 = vmatprep.subr.mxu0 0.0
        %1899 = vmatpush1.msra.mxu0 %v1844
        %1900 = vmatprep.subr.mxu0 0.0
        %1901 = vmatpush1.msra.mxu0 %v1845
        %1902 = vmatprep.subr.mxu0 0.0
        %1903 = vmatpush1.msra.mxu0 %v1846
        %1904 = vmatprep.subr.mxu0 0.0
        %1905 = vmatpush1.msra.mxu0 %v1847
        %1906 = vmatprep.subr.mxu0 0.0
        %1907 = vmatpush1.msra.mxu0 %v1848
        %1908 = vmatprep.subr.mxu0 0.0
        %1909 = vmatpush1.msra.mxu0 %v1849
        %1910 = vmatprep.subr.mxu0 0.0
        %1911 = vmatpush1.msra.mxu0 %v1850
        %1912 = vmatprep.subr.mxu0 0.0
        %1913 = vmatpush1.msra.mxu0 %v1851
        %1914 = vmatprep.subr.mxu0 0.0
        %1915 = vmatpush1.msra.mxu0 %v1852
        %1916 = vmatprep.subr.mxu0 0.0
        %1917 = vmatpush1.msra.mxu0 %v1853
        %1918 = vmatprep.subr.mxu0 0.0
        %1919 = vmatpush1.msra.mxu0 %v1854
        %1920 = vmatprep.subr.mxu0 0.0
        %1921 = vmatpush1.msra.mxu0 %v1855
        %1922 = vmatprep.subr.mxu0 0.0
        %1923 = vmatpush1.msra.mxu0 %v1856
        %1924 = vmatprep.subr.mxu0 0.0
        %1925 = vmatpush1.msra.mxu0 %v1857
        %1926 = vmatprep.subr.mxu0 0.0
        %1927 = vmatpush1.msra.mxu0 %v1858
        %1928 = vmatprep.subr.mxu0 0.0
        %1929 = vmatpush1.msra.mxu0 %v1859
        %1930 = vmatprep.subr.mxu0 0.0
        %1931 = vmatpush1.msra.mxu0 %v1860
        %1932 = vmatprep.subr.mxu0 0.0
        %1933 = vmatpush1.msra.mxu0 %v1861
        %1934 = vmatprep.subr.mxu0 0.0
        %1935 = vmatpush1.msra.mxu0 %v1862
        %1936 = vmatprep.subr.mxu0 0.0
        %1937 = vmatpush1.msra.mxu0 %v1863
        %1938 = vmatprep.subr.mxu0 0.0
        %1939 = vmatpush1.msra.mxu0 %v1864
        %1940 = vmatprep.subr.mxu0 0.0
        %1941 = vmatpush1.msra.mxu0 %v1865
        %1942 = vmatprep.subr.mxu0 0.0
        %1943 = vmatpush1.msra.mxu0 %v1866
        %1944 = vmatprep.subr.mxu0 0.0
        %1945 = vmatpush1.msra.mxu0 %v1867
        %1946 = vmatprep.subr.mxu0 0.0
        %1947 = vmatpush1.msra.mxu0 %v1868
        %1948 = vmatprep.subr.mxu0 0.0
        %1949 = vmatpush1.msra.mxu0 %v1869
        %1950 = vmatprep.mubr.f32.mxu0 %v1629
        %1951 = vmatmul.mubr.f32.gmra.mrb[0].mxu0 %v1719
        %v1952 = vpop.f32.mrb[0].mxu0
        %v1953 = vadd.f32 0.0, %v1952
        %v1954 = vpop.f32.mrb[0].mxu0
        %1955 = vmatprep.mubr.f32.mxu0 %v1630
        %1956 = vmatmul.mubr.f32.gmra.mrb[0].mxu0 %v1673
        %v1957 = vpop.f32.mrb[0].mxu0
        %v1958 = vadd.f32 0.0, %v1957
        %v1959 = vpop.f32.mrb[0].mxu0
        %1960 = vmatprep.mubr.f32.mxu0 %v1631
        %1961 = vmatmul.mubr.f32.gmra.mrb[0].mxu0 %v1720
        %v1962 = vpop.f32.mrb[0].mxu0
        %v1963 = vadd.f32 0.0, %v1962
        %v1964 = vpop.f32.mrb[0].mxu0
        %1965 = vmatprep.mubr.f32.mxu0 %v1632
        %1966 = vmatmul.mubr.f32.gmra.mrb[0].mxu0 %v1676
        %v1967 = vpop.f32.mrb[0].mxu0
        %v1968 = vadd.f32 0.0, %v1967
        %v1969 = vpop.f32.mrb[0].mxu0
        %1970 = vmatprep.mubr.f32.mxu0 %v1633
        %1971 = vmatmul.mubr.f32.gmra.mrb[0].mxu0 %v1721
        %v1972 = vpop.f32.mrb[0].mxu0
        %v1973 = vadd.f32 0.0, %v1972
        %v1974 = vpop.f32.mrb[0].mxu0
        %1975 = vmatprep.mubr.f32.mxu0 %v1634
        %1976 = vmatmul.mubr.f32.gmra.mrb[0].mxu0 %v1679
        %v1977 = vpop.f32.mrb[0].mxu0
        %v1978 = vadd.f32 0.0, %v1977
        %v1979 = vpop.f32.mrb[0].mxu0
        %1980 = vmatprep.mubr.f32.mxu0 %v1635
        %1981 = vmatmul.mubr.f32.gmra.mrb[0].mxu0 %v1722
        %v1982 = vpop.f32.mrb[0].mxu0
        %v1983 = vadd.f32 0.0, %v1982
        %v1984 = vpop.f32.mrb[0].mxu0
        %1985 = vmatprep.mubr.f32.mxu0 %v1636
        %1986 = vmatmul.mubr.f32.gmra.mrb[0].mxu0 %v1682
        %v1987 = vpop.f32.mrb[0].mxu0
        %v1988 = vadd.f32 0.0, %v1987
        %v1989 = vpop.f32.mrb[0].mxu0
        %1990 = vmatprep.mubr.f32.mxu0 %v1637
        %1991 = vmatmul.mubr.f32.gmra.mrb[0].mxu0 %v1723
        %v1992 = vpop.f32.mrb[0].mxu0
        %v1993 = vadd.f32 0.0, %v1992
        %v1994 = vpop.f32.mrb[0].mxu0
        %1995 = vmatprep.mubr.f32.mxu0 %v1638
        %1996 = vmatmul.mubr.f32.gmra.mrb[0].mxu0 %v1685
        %v1997 = vpop.f32.mrb[0].mxu0
        %v1998 = vadd.f32 0.0, %v1997
        %v1999 = vpop.f32.mrb[0].mxu0
        %2000 = vmatprep.mubr.f32.mxu0 %v1639
        %2001 = vmatmul.mubr.f32.gmra.mrb[0].mxu0 %v1724
        %v2002 = vpop.f32.mrb[0].mxu0
        %v2003 = vadd.f32 0.0, %v2002
        %v2004 = vpop.f32.mrb[0].mxu0
        %2005 = vmatprep.mubr.f32.mxu0 %v1640
        %2006 = vmatmul.mubr.f32.gmra.mrb[0].mxu0 %v1688
        %v2007 = vpop.f32.mrb[0].mxu0
        %v2008 = vadd.f32 0.0, %v2007
        %v2009 = vpop.f32.mrb[0].mxu0
        %2010 = vmatprep.mubr.f32.mxu0 %v1641
        %2011 = vmatmul.mubr.f32.gmra.mrb[0].mxu0 %v1725
        %v2012 = vpop.f32.mrb[0].mxu0
        %v2013 = vadd.f32 0.0, %v2012
        %v2014 = vpop.f32.mrb[0].mxu0
        %2015 = vmatprep.mubr.f32.mxu0 %v1642
        %2016 = vmatmul.mubr.f32.gmra.mrb[0].mxu0 %v1691
        %v2017 = vpop.f32.mrb[0].mxu0
        %v2018 = vadd.f32 0.0, %v2017
        %v2019 = vpop.f32.mrb[0].mxu0
        %2020 = vmatprep.mubr.f32.mxu0 %v1643
        %2021 = vmatmul.mubr.f32.gmra.mrb[0].mxu0 %v1726
        %v2022 = vpop.f32.mrb[0].mxu0
        %v2023 = vadd.f32 0.0, %v2022
        %v2024 = vpop.f32.mrb[0].mxu0
        %2025 = vmatprep.mubr.f32.mxu0 %v1644
        %2026 = vmatmul.mubr.f32.gmra.mrb[0].mxu0 %v1694
        %v2027 = vpop.f32.mrb[0].mxu0
        %v2028 = vadd.f32 0.0, %v2027
        %v2029 = vpop.f32.mrb[0].mxu0
        %2030 = vdwg.mxu0
        %2031 = vmatprep.subr.mxu0 0.0
        %2032 = vmatpush1.msra.mxu0 %v1870
        %2033 = vmatprep.subr.mxu0 0.0
        %2034 = vmatpush1.msra.mxu0 %v1871
        %2035 = vmatprep.subr.mxu0 0.0
        %2036 = vmatpush1.msra.mxu0 %v1872
        %2037 = vmatprep.subr.mxu0 0.0
        %2038 = vmatpush1.msra.mxu0 %v1873
        %2039 = vmatprep.subr.mxu0 0.0
        %2040 = vmatpush1.msra.mxu0 %v1874
        %2041 = vmatprep.subr.mxu0 0.0
        %2042 = vmatpush1.msra.mxu0 %v1875
        %2043 = vmatprep.subr.mxu0 0.0
        %2044 = vmatpush1.msra.mxu0 %v1876
        %2045 = vmatprep.subr.mxu0 0.0
        %2046 = vmatpush1.msra.mxu0 %v1877
        %2047 = vmatprep.subr.mxu0 0.0
        %2048 = vmatpush1.msra.mxu0 %v1878
        %2049 = vmatprep.subr.mxu0 0.0
        %2050 = vmatpush1.msra.mxu0 %v1879
        %2051 = vmatprep.subr.mxu0 0.0
        %2052 = vmatpush1.msra.mxu0 %v1880
        %2053 = vmatprep.subr.mxu0 0.0
        %2054 = vmatpush1.msra.mxu0 %v1881
        %2055 = vmatprep.subr.mxu0 0.0
        %2056 = vmatpush1.msra.mxu0 %v1882
        %2057 = vmatprep.subr.mxu0 0.0
        %2058 = vmatpush1.msra.mxu0 %v1883
        %2059 = vmatprep.subr.mxu0 0.0
        %2060 = vmatpush1.msra.mxu0 %v1884
        %2061 = vmatprep.subr.mxu0 0.0
        %2062 = vmatpush1.msra.mxu0 %v1885
        %2063 = vmatprep.subr.mxu0 0.0
        %2064 = vmatpush1.msra.mxu0 0.0
        %2065 = vmatprep.subr.mxu0 0.0
        %2066 = vmatpush1.msra.mxu0 0.0
        %2067 = vmatprep.subr.mxu0 0.0
        %2068 = vmatpush1.msra.mxu0 0.0
        %2069 = vmatprep.subr.mxu0 0.0
        %2070 = vmatpush1.msra.mxu0 0.0
        %2071 = vmatprep.subr.mxu0 0.0
        %2072 = vmatpush1.msra.mxu0 0.0
        %2073 = vmatprep.subr.mxu0 0.0
        %2074 = vmatpush1.msra.mxu0 0.0
        %2075 = vmatprep.subr.mxu0 0.0
        %2076 = vmatpush1.msra.mxu0 0.0
        %2077 = vmatprep.subr.mxu0 0.0
        %2078 = vmatpush1.msra.mxu0 0.0
        %2079 = vmatprep.subr.mxu0 0.0
        %2080 = vmatpush1.msra.mxu0 0.0
        %2081 = vmatprep.subr.mxu0 0.0
        %2082 = vmatpush1.msra.mxu0 0.0
        %2083 = vmatprep.subr.mxu0 0.0
        %2084 = vmatpush1.msra.mxu0 0.0
        %2085 = vmatprep.subr.mxu0 0.0
        %2086 = vmatpush1.msra.mxu0 0.0
        %2087 = vmatprep.subr.mxu0 0.0
        %2088 = vmatpush1.msra.mxu0 0.0
        %2089 = vmatprep.subr.mxu0 0.0
        %2090 = vmatpush1.msra.mxu0 0.0
        %2091 = vmatprep.subr.mxu0 0.0
        %2092 = vmatpush1.msra.mxu0 0.0
        %2093 = vmatprep.subr.mxu0 0.0
        %2094 = vmatpush1.msra.mxu0 0.0
        %2095 = vmatprep.mubr.f32.mxu0 0.0
        %2096 = vmatmul.mubr.f32.gmra.mrb[0].mxu0 %v1734
        %v2097 = vpop.f32.mrb[0].mxu0
        %v2098 = vadd.f32 %v1953, %v2097
        %v2099 = vpop.f32.mrb[0].mxu0
        %2100 = vmatprep.mubr.f32.mxu0 0.0
        %2101 = vmatmul.mubr.f32.gmra.mrb[0].mxu0 %v1780
        %v2102 = vpop.f32.mrb[0].mxu0
        %v2103 = vadd.f32 %v1958, %v2102
        %v2104 = vpop.f32.mrb[0].mxu0
        %2105 = vmatprep.mubr.f32.mxu0 0.0
        %2106 = vmatmul.mubr.f32.gmra.mrb[0].mxu0 %v1737
        %v2107 = vpop.f32.mrb[0].mxu0
        %v2108 = vadd.f32 %v1963, %v2107
        %v2109 = vpop.f32.mrb[0].mxu0
        %2110 = vmatprep.mubr.f32.mxu0 0.0
        %2111 = vmatmul.mubr.f32.gmra.mrb[0].mxu0 %v1781
        %v2112 = vpop.f32.mrb[0].mxu0
        %v2113 = vadd.f32 %v1968, %v2112
        %v2114 = vpop.f32.mrb[0].mxu0
        %2115 = vmatprep.mubr.f32.mxu0 0.0
        %2116 = vmatmul.mubr.f32.gmra.mrb[0].mxu0 %v1740
        %v2117 = vpop.f32.mrb[0].mxu0
        %v2118 = vadd.f32 %v1973, %v2117
        %v2119 = vpop.f32.mrb[0].mxu0
        %2120 = vmatprep.mubr.f32.mxu0 0.0
        %2121 = vmatmul.mubr.f32.gmra.mrb[0].mxu0 %v1782
        %v2122 = vpop.f32.mrb[0].mxu0
        %v2123 = vadd.f32 %v1978, %v2122
        %v2124 = vpop.f32.mrb[0].mxu0
        %2125 = vmatprep.mubr.f32.mxu0 0.0
        %2126 = vmatmul.mubr.f32.gmra.mrb[0].mxu0 %v1743
        %v2127 = vpop.f32.mrb[0].mxu0
        %v2128 = vadd.f32 %v1983, %v2127
        %v2129 = vpop.f32.mrb[0].mxu0
        %2130 = vmatprep.mubr.f32.mxu0 0.0
        %2131 = vmatmul.mubr.f32.gmra.mrb[0].mxu0 %v1783
        %v2132 = vpop.f32.mrb[0].mxu0
        %v2133 = vadd.f32 %v1988, %v2132
        %v2134 = vpop.f32.mrb[0].mxu0
        %2135 = vmatprep.mubr.f32.mxu0 0.0
        %2136 = vmatmul.mubr.f32.gmra.mrb[0].mxu0 %v1746
        %v2137 = vpop.f32.mrb[0].mxu0
        %v2138 = vadd.f32 %v1993, %v2137
        %v2139 = vpop.f32.mrb[0].mxu0
        %2140 = vmatprep.mubr.f32.mxu0 0.0
        %2141 = vmatmul.mubr.f32.gmra.mrb[0].mxu0 %v1784
        %v2142 = vpop.f32.mrb[0].mxu0
        %v2143 = vadd.f32 %v1998, %v2142
        %v2144 = vpop.f32.mrb[0].mxu0
        %2145 = vmatprep.mubr.f32.mxu0 0.0
        %2146 = vmatmul.mubr.f32.gmra.mrb[0].mxu0 %v1749
        %v2147 = vpop.f32.mrb[0].mxu0
        %v2148 = vadd.f32 %v2003, %v2147
        %v2149 = vpop.f32.mrb[0].mxu0
        %2150 = vmatprep.mubr.f32.mxu0 0.0
        %2151 = vmatmul.mubr.f32.gmra.mrb[0].mxu0 %v1785
        %v2152 = vpop.f32.mrb[0].mxu0
        %v2153 = vadd.f32 %v2008, %v2152
        %v2154 = vpop.f32.mrb[0].mxu0
        %2155 = vmatprep.mubr.f32.mxu0 0.0
        %2156 = vmatmul.mubr.f32.gmra.mrb[0].mxu0 %v1752
        %v2157 = vpop.f32.mrb[0].mxu0
        %v2158 = vadd.f32 %v2013, %v2157
        %v2159 = vpop.f32.mrb[0].mxu0
        %2160 = vmatprep.mubr.f32.mxu0 0.0
        %2161 = vmatmul.mubr.f32.gmra.mrb[0].mxu0 %v1786
        %v2162 = vpop.f32.mrb[0].mxu0
        %v2163 = vadd.f32 %v2018, %v2162
        %v2164 = vpop.f32.mrb[0].mxu0
        %2165 = vmatprep.mubr.f32.mxu0 0.0
        %2166 = vmatmul.mubr.f32.gmra.mrb[0].mxu0 %v1755
        %v2167 = vpop.f32.mrb[0].mxu0
        %v2168 = vadd.f32 %v2023, %v2167
        %v2169 = vpop.f32.mrb[0].mxu0
        %2170 = vmatprep.mubr.f32.mxu0 0.0
        %2171 = vmatmul.mubr.f32.gmra.mrb[0].mxu0 %v1787
        %v2172 = vpop.f32.mrb[0].mxu0
        %v2173 = vadd.f32 %v2028, %v2172
        %v2174 = vpop.f32.mrb[0].mxu0
        %2175 = vdwg.mxu0
        %2176 = vmatprep.subr.mxu0 0.0
        %2177 = vmatpush1.msra.mxu0 %v1789
        %2178 = vmatprep.subr.mxu0 0.0
        %2179 = vmatpush1.msra.mxu0 %v1790
        %2180 = vmatprep.subr.mxu0 0.0
        %2181 = vmatpush1.msra.mxu0 %v1791
        %2182 = vmatprep.subr.mxu0 0.0
        %2183 = vmatpush1.msra.mxu0 %v1792
        %2184 = vmatprep.subr.mxu0 0.0
        %2185 = vmatpush1.msra.mxu0 %v1793
        %2186 = vmatprep.subr.mxu0 0.0
        %2187 = vmatpush1.msra.mxu0 %v1794
        %2188 = vmatprep.subr.mxu0 0.0
        %2189 = vmatpush1.msra.mxu0 %v1795
        %2190 = vmatprep.subr.mxu0 0.0
        %2191 = vmatpush1.msra.mxu0 %v1796
        %2192 = vmatprep.subr.mxu0 0.0
        %2193 = vmatpush1.msra.mxu0 %v1797
        %2194 = vmatprep.subr.mxu0 0.0
        %2195 = vmatpush1.msra.mxu0 %v1798
        %2196 = vmatprep.subr.mxu0 0.0
        %2197 = vmatpush1.msra.mxu0 %v1799
        %2198 = vmatprep.subr.mxu0 0.0
        %2199 = vmatpush1.msra.mxu0 %v1800
        %2200 = vmatprep.subr.mxu0 0.0
        %2201 = vmatpush1.msra.mxu0 %v1801
        %2202 = vmatprep.subr.mxu0 0.0
        %2203 = vmatpush1.msra.mxu0 %v1802
        %2204 = vmatprep.subr.mxu0 0.0
        %2205 = vmatpush1.msra.mxu0 %v1803
        %2206 = vmatprep.subr.mxu0 0.0
        %2207 = vmatpush1.msra.mxu0 %v1804
        %2208 = vmatprep.subr.mxu0 0.0
        %2209 = vmatpush1.msra.mxu0 %v1805
        %2210 = vmatprep.subr.mxu0 0.0
        %2211 = vmatpush1.msra.mxu0 %v1806
        %2212 = vmatprep.subr.mxu0 0.0
        %2213 = vmatpush1.msra.mxu0 %v1807
        %2214 = vmatprep.subr.mxu0 0.0
        %2215 = vmatpush1.msra.mxu0 %v1808
        %2216 = vmatprep.subr.mxu0 0.0
        %2217 = vmatpush1.msra.mxu0 %v1809
        %2218 = vmatprep.subr.mxu0 0.0
        %2219 = vmatpush1.msra.mxu0 %v1810
        %2220 = vmatprep.subr.mxu0 0.0
        %2221 = vmatpush1.msra.mxu0 %v1811
        %2222 = vmatprep.subr.mxu0 0.0
        %2223 = vmatpush1.msra.mxu0 %v1812
        %2224 = vmatprep.subr.mxu0 0.0
        %2225 = vmatpush1.msra.mxu0 %v1813
        %2226 = vmatprep.subr.mxu0 0.0
        %2227 = vmatpush1.msra.mxu0 %v1814
        %2228 = vmatprep.subr.mxu0 0.0
        %2229 = vmatpush1.msra.mxu0 %v1815
        %2230 = vmatprep.subr.mxu0 0.0
        %2231 = vmatpush1.msra.mxu0 %v1816
        %2232 = vmatprep.subr.mxu0 0.0
        %2233 = vmatpush1.msra.mxu0 %v1817
        %2234 = vmatprep.subr.mxu0 0.0
        %2235 = vmatpush1.msra.mxu0 %v1818
        %2236 = vmatprep.subr.mxu0 0.0
        %2237 = vmatpush1.msra.mxu0 %v1819
        %2238 = vmatprep.subr.mxu0 0.0
        %2239 = vmatpush1.msra.mxu0 %v1820
        %2240 = vmatprep.mubr.f32.mxu0 %v1627
        %2241 = vmatmul.mubr.f32.gmra.mrb[0].mxu0 %v1718
        %v2242 = vpop.f32.mrb[0].mxu0
        %v2243 = vadd.f32 %v2098, %v2242
        %v2244 = vpop.f32.mrb[0].mxu0
        %2245 = vmatprep.mubr.f32.mxu0 %v1628
        %2246 = vmatmul.mubr.f32.gmra.mrb[0].mxu0 %v1670
        %v2247 = vpop.f32.mrb[0].mxu0
        %v2248 = vadd.f32 %v2103, %v2247
        %v2249 = vpop.f32.mrb[0].mxu0
        %2250 = vmatprep.mubr.f32.mxu0 %v1629
        %2251 = vmatmul.mubr.f32.gmra.mrb[0].mxu0 %v1719
        %v2252 = vpop.f32.mrb[0].mxu0
        %v2253 = vadd.f32 %v2108, %v2252
        %v2254 = vpop.f32.mrb[0].mxu0
        %2255 = vmatprep.mubr.f32.mxu0 %v1630
        %2256 = vmatmul.mubr.f32.gmra.mrb[0].mxu0 %v1673
        %v2257 = vpop.f32.mrb[0].mxu0
        %v2258 = vadd.f32 %v2113, %v2257
        %v2259 = vpop.f32.mrb[0].mxu0
        %2260 = vmatprep.mubr.f32.mxu0 %v1631
        %2261 = vmatmul.mubr.f32.gmra.mrb[0].mxu0 %v1720
        %v2262 = vpop.f32.mrb[0].mxu0
        %v2263 = vadd.f32 %v2118, %v2262
        %v2264 = vpop.f32.mrb[0].mxu0
        %2265 = vmatprep.mubr.f32.mxu0 %v1632
        %2266 = vmatmul.mubr.f32.gmra.mrb[0].mxu0 %v1676
        %v2267 = vpop.f32.mrb[0].mxu0
        %v2268 = vadd.f32 %v2123, %v2267
        %v2269 = vpop.f32.mrb[0].mxu0
        %2270 = vmatprep.mubr.f32.mxu0 %v1633
        %2271 = vmatmul.mubr.f32.gmra.mrb[0].mxu0 %v1721
        %v2272 = vpop.f32.mrb[0].mxu0
        %v2273 = vadd.f32 %v2128, %v2272
        %v2274 = vpop.f32.mrb[0].mxu0
        %2275 = vmatprep.mubr.f32.mxu0 %v1634
        %2276 = vmatmul.mubr.f32.gmra.mrb[0].mxu0 %v1679
        %v2277 = vpop.f32.mrb[0].mxu0
        %v2278 = vadd.f32 %v2133, %v2277
        %v2279 = vpop.f32.mrb[0].mxu0
        %2280 = vmatprep.mubr.f32.mxu0 %v1635
        %2281 = vmatmul.mubr.f32.gmra.mrb[0].mxu0 %v1722
        %v2282 = vpop.f32.mrb[0].mxu0
        %v2283 = vadd.f32 %v2138, %v2282
        %v2284 = vpop.f32.mrb[0].mxu0
        %2285 = vmatprep.mubr.f32.mxu0 %v1636
        %2286 = vmatmul.mubr.f32.gmra.mrb[0].mxu0 %v1682
        %v2287 = vpop.f32.mrb[0].mxu0
        %v2288 = vadd.f32 %v2143, %v2287
        %v2289 = vpop.f32.mrb[0].mxu0
        %2290 = vmatprep.mubr.f32.mxu0 %v1637
        %2291 = vmatmul.mubr.f32.gmra.mrb[0].mxu0 %v1723
        %v2292 = vpop.f32.mrb[0].mxu0
        %v2293 = vadd.f32 %v2148, %v2292
        %v2294 = vpop.f32.mrb[0].mxu0
        %2295 = vmatprep.mubr.f32.mxu0 %v1638
        %2296 = vmatmul.mubr.f32.gmra.mrb[0].mxu0 %v1685
        %v2297 = vpop.f32.mrb[0].mxu0
        %v2298 = vadd.f32 %v2153, %v2297
        %v2299 = vpop.f32.mrb[0].mxu0
        %2300 = vmatprep.mubr.f32.mxu0 %v1639
        %2301 = vmatmul.mubr.f32.gmra.mrb[0].mxu0 %v1724
        %v2302 = vpop.f32.mrb[0].mxu0
        %v2303 = vadd.f32 %v2158, %v2302
        %v2304 = vpop.f32.mrb[0].mxu0
        %2305 = vmatprep.mubr.f32.mxu0 %v1640
        %2306 = vmatmul.mubr.f32.gmra.mrb[0].mxu0 %v1688
        %v2307 = vpop.f32.mrb[0].mxu0
        %v2308 = vadd.f32 %v2163, %v2307
        %v2309 = vpop.f32.mrb[0].mxu0
        %2310 = vmatprep.mubr.f32.mxu0 %v1641
        %2311 = vmatmul.mubr.f32.gmra.mrb[0].mxu0 %v1725
        %v2312 = vpop.f32.mrb[0].mxu0
        %v2313 = vadd.f32 %v2168, %v2312
        %v2314 = vpop.f32.mrb[0].mxu0
        %2315 = vmatprep.mubr.f32.mxu0 %v1642
        %2316 = vmatmul.mubr.f32.gmra.mrb[0].mxu0 %v1691
        %v2317 = vpop.f32.mrb[0].mxu0
        %v2318 = vadd.f32 %v2173, %v2317
        %v2319 = vpop.f32.mrb[0].mxu0
        %2320 = vdwg.mxu0
        %2321 = vmatprep.subr.mxu0 0.0
        %2322 = vmatpush1.msra.mxu0 %v1821
        %2323 = vmatprep.subr.mxu0 0.0
        %2324 = vmatpush1.msra.mxu0 %v1822
        %2325 = vmatprep.subr.mxu0 0.0
        %2326 = vmatpush1.msra.mxu0 %v1823
        %2327 = vmatprep.subr.mxu0 0.0
        %2328 = vmatpush1.msra.mxu0 %v1824
        %2329 = vmatprep.subr.mxu0 0.0
        %2330 = vmatpush1.msra.mxu0 %v1825
        %2331 = vmatprep.subr.mxu0 0.0
        %2332 = vmatpush1.msra.mxu0 %v1826
        %2333 = vmatprep.subr.mxu0 0.0
        %2334 = vmatpush1.msra.mxu0 %v1827
        %2335 = vmatprep.subr.mxu0 0.0
        %2336 = vmatpush1.msra.mxu0 %v1828
        %2337 = vmatprep.subr.mxu0 0.0
        %2338 = vmatpush1.msra.mxu0 %v1829
        %2339 = vmatprep.subr.mxu0 0.0
        %2340 = vmatpush1.msra.mxu0 %v1830
        %2341 = vmatprep.subr.mxu0 0.0
        %2342 = vmatpush1.msra.mxu0 %v1831
        %2343 = vmatprep.subr.mxu0 0.0
        %2344 = vmatpush1.msra.mxu0 %v1832
        %2345 = vmatprep.subr.mxu0 0.0
        %2346 = vmatpush1.msra.mxu0 %v1833
        %2347 = vmatprep.subr.mxu0 0.0
        %2348 = vmatpush1.msra.mxu0 %v1834
        %2349 = vmatprep.subr.mxu0 0.0
        %2350 = vmatpush1.msra.mxu0 %v1835
        %2351 = vmatprep.subr.mxu0 0.0
        %2352 = vmatpush1.msra.mxu0 %v1836
        %2353 = vmatprep.subr.mxu0 0.0
        %2354 = vmatpush1.msra.mxu0 0.0
        %2355 = vmatprep.subr.mxu0 0.0
        %2356 = vmatpush1.msra.mxu0 0.0
        %2357 = vmatprep.subr.mxu0 0.0
        %2358 = vmatpush1.msra.mxu0 0.0
        %2359 = vmatprep.subr.mxu0 0.0
        %2360 = vmatpush1.msra.mxu0 0.0
        %2361 = vmatprep.subr.mxu0 0.0
        %2362 = vmatpush1.msra.mxu0 0.0
        %2363 = vmatprep.subr.mxu0 0.0
        %2364 = vmatpush1.msra.mxu0 0.0
        %2365 = vmatprep.subr.mxu0 0.0
        %2366 = vmatpush1.msra.mxu0 0.0
        %2367 = vmatprep.subr.mxu0 0.0
        %2368 = vmatpush1.msra.mxu0 0.0
        %2369 = vmatprep.subr.mxu0 0.0
        %2370 = vmatpush1.msra.mxu0 0.0
        %2371 = vmatprep.subr.mxu0 0.0
        %2372 = vmatpush1.msra.mxu0 0.0
        %2373 = vmatprep.subr.mxu0 0.0
        %2374 = vmatpush1.msra.mxu0 0.0
        %2375 = vmatprep.subr.mxu0 0.0
        %2376 = vmatpush1.msra.mxu0 0.0
        %2377 = vmatprep.subr.mxu0 0.0
        %2378 = vmatpush1.msra.mxu0 0.0
        %2379 = vmatprep.subr.mxu0 0.0
        %2380 = vmatpush1.msra.mxu0 0.0
        %2381 = vmatprep.subr.mxu0 0.0
        %2382 = vmatpush1.msra.mxu0 0.0
        %2383 = vmatprep.subr.mxu0 0.0
        %2384 = vmatpush1.msra.mxu0 0.0
        %2385 = vmatprep.mubr.f32.mxu0 0.0
        %2386 = vmatmul.mubr.f32.gmra.mrb[0].mxu0 %v1731
        %v2387 = vpop.f32.mrb[0].mxu0
        %v2388 = vadd.f32 %v2243, %v2387
        %v2389 = vpop.f32.mrb[0].mxu0
        %2390 = vmatprep.mubr.f32.mxu0 0.0
        %2391 = vmatmul.mubr.f32.gmra.mrb[0].mxu0 %v1779
        %v2392 = vpop.f32.mrb[0].mxu0
        %v2393 = vadd.f32 %v2248, %v2392
        %v2394 = vpop.f32.mrb[0].mxu0
        %2395 = vmatprep.mubr.f32.mxu0 0.0
        %2396 = vmatmul.mubr.f32.gmra.mrb[0].mxu0 %v1734
        %v2397 = vpop.f32.mrb[0].mxu0
        %v2398 = vadd.f32 %v2253, %v2397
        %v2399 = vpop.f32.mrb[0].mxu0
        %2400 = vmatprep.mubr.f32.mxu0 0.0
        %2401 = vmatmul.mubr.f32.gmra.mrb[0].mxu0 %v1780
        %v2402 = vpop.f32.mrb[0].mxu0
        %v2403 = vadd.f32 %v2258, %v2402
        %v2404 = vpop.f32.mrb[0].mxu0
        %2405 = vmatprep.mubr.f32.mxu0 0.0
        %2406 = vmatmul.mubr.f32.gmra.mrb[0].mxu0 %v1737
        %v2407 = vpop.f32.mrb[0].mxu0
        %v2408 = vadd.f32 %v2263, %v2407
        %v2409 = vpop.f32.mrb[0].mxu0
        %2410 = vmatprep.mubr.f32.mxu0 0.0
        %2411 = vmatmul.mubr.f32.gmra.mrb[0].mxu0 %v1781
        %v2412 = vpop.f32.mrb[0].mxu0
        %v2413 = vadd.f32 %v2268, %v2412
        %v2414 = vpop.f32.mrb[0].mxu0
        %2415 = vmatprep.mubr.f32.mxu0 0.0
        %2416 = vmatmul.mubr.f32.gmra.mrb[0].mxu0 %v1740
        %v2417 = vpop.f32.mrb[0].mxu0
        %v2418 = vadd.f32 %v2273, %v2417
        %v2419 = vpop.f32.mrb[0].mxu0
        %2420 = vmatprep.mubr.f32.mxu0 0.0
        %2421 = vmatmul.mubr.f32.gmra.mrb[0].mxu0 %v1782
        %v2422 = vpop.f32.mrb[0].mxu0
        %v2423 = vadd.f32 %v2278, %v2422
        %v2424 = vpop.f32.mrb[0].mxu0
        %2425 = vmatprep.mubr.f32.mxu0 0.0
        %2426 = vmatmul.mubr.f32.gmra.mrb[0].mxu0 %v1743
        %v2427 = vpop.f32.mrb[0].mxu0
        %v2428 = vadd.f32 %v2283, %v2427
        %v2429 = vpop.f32.mrb[0].mxu0
        %2430 = vmatprep.mubr.f32.mxu0 0.0
        %2431 = vmatmul.mubr.f32.gmra.mrb[0].mxu0 %v1783
        %v2432 = vpop.f32.mrb[0].mxu0
        %v2433 = vadd.f32 %v2288, %v2432
        %v2434 = vpop.f32.mrb[0].mxu0
        %2435 = vmatprep.mubr.f32.mxu0 0.0
        %2436 = vmatmul.mubr.f32.gmra.mrb[0].mxu0 %v1746
        %v2437 = vpop.f32.mrb[0].mxu0
        %v2438 = vadd.f32 %v2293, %v2437
        %v2439 = vpop.f32.mrb[0].mxu0
        %2440 = vmatprep.mubr.f32.mxu0 0.0
        %2441 = vmatmul.mubr.f32.gmra.mrb[0].mxu0 %v1784
        %v2442 = vpop.f32.mrb[0].mxu0
        %v2443 = vadd.f32 %v2298, %v2442
        %v2444 = vpop.f32.mrb[0].mxu0
        %2445 = vmatprep.mubr.f32.mxu0 0.0
        %2446 = vmatmul.mubr.f32.gmra.mrb[0].mxu0 %v1749
        %v2447 = vpop.f32.mrb[0].mxu0
        %v2448 = vadd.f32 %v2303, %v2447
        %v2449 = vpop.f32.mrb[0].mxu0
        %2450 = vmatprep.mubr.f32.mxu0 0.0
        %2451 = vmatmul.mubr.f32.gmra.mrb[0].mxu0 %v1785
        %v2452 = vpop.f32.mrb[0].mxu0
        %v2453 = vadd.f32 %v2308, %v2452
        %v2454 = vpop.f32.mrb[0].mxu0
        %2455 = vmatprep.mubr.f32.mxu0 0.0
        %2456 = vmatmul.mubr.f32.gmra.mrb[0].mxu0 %v1752
        %v2457 = vpop.f32.mrb[0].mxu0
        %v2458 = vadd.f32 %v2313, %v2457
        %v2459 = vpop.f32.mrb[0].mxu0
        %2460 = vmatprep.mubr.f32.mxu0 0.0
        %2461 = vmatmul.mubr.f32.gmra.mrb[0].mxu0 %v1786
        %v2462 = vpop.f32.mrb[0].mxu0
        %v2463 = vadd.f32 %v2318, %v2462
        %v2464 = vpop.f32.mrb[0].mxu0
        %2465 = vdwg.mxu0
        %s2466 = scalar_lea.vmem [#allocation2], 768
        %v2467 = vld [vmem:[%s2466] sm:$0xff]
        %v2468 = vld [vmem:[%s2466 + $0x8] sm:$0xff]
        %v2469 = vld [vmem:[%s2466 + $0x10] sm:$0xff]
        %v2470 = vld [vmem:[%s2466 + $0x18] sm:$0xff]
        %v2471 = vld [vmem:[%s2466 + $0x20] sm:$0xff]
        %v2472 = vld [vmem:[%s2466 + $0x28] sm:$0xff]
        %v2473 = vld [vmem:[%s2466 + $0x30] sm:$0xff]
        %v2474 = vld [vmem:[%s2466 + $0x38] sm:$0xff]
        %v2475 = vld [vmem:[%s2466 + $0x40] sm:$0xff]
        %v2476 = vld [vmem:[%s2466 + $0x48] sm:$0xff]
        %v2477 = vld [vmem:[%s2466 + $0x50] sm:$0xff]
        %v2478 = vld [vmem:[%s2466 + $0x58] sm:$0xff]
        %v2479 = vld [vmem:[%s2466 + $0x60] sm:$0xff]
        %v2480 = vld [vmem:[%s2466 + $0x68] sm:$0xff]
        %v2481 = vld [vmem:[%s2466 + $0x70] sm:$0xff]
        %v2482 = vld [vmem:[%s2466 + $0x78] sm:$0xff]
        %v2483 = vld [vmem:[%s2466 + $0x80] sm:$0xff]
        %v2484 = vld [vmem:[%s2466 + $0x88] sm:$0xff]
        %v2485 = vld [vmem:[%s2466 + $0x90] sm:$0xff]
        %v2486 = vld [vmem:[%s2466 + $0x98] sm:$0xff]
        %v2487 = vld [vmem:[%s2466 + $0xa0] sm:$0xff]
        %v2488 = vld [vmem:[%s2466 + $0xa8] sm:$0xff]
        %v2489 = vld [vmem:[%s2466 + $0xb0] sm:$0xff]
        %v2490 = vld [vmem:[%s2466 + $0xb8] sm:$0xff]
        %v2491 = vld [vmem:[%s2466 + $0xc0] sm:$0xff]
        %v2492 = vld [vmem:[%s2466 + $0xc8] sm:$0xff]
        %v2493 = vld [vmem:[%s2466 + $0xd0] sm:$0xff]
        %v2494 = vld [vmem:[%s2466 + $0xd8] sm:$0xff]
        %v2495 = vld [vmem:[%s2466 + $0xe0] sm:$0xff]
        %v2496 = vld [vmem:[%s2466 + $0xe8] sm:$0xff]
        %v2497 = vld [vmem:[%s2466 + $0xf0] sm:$0xff]
        %v2498 = vld [vmem:[%s2466 + $0xf8] sm:$0xff]
        %v2499 = vld [vmem:[%s2466 + $0x100] sm:$0xff]
        %v2500 = vld [vmem:[%s2466 + $0x108] sm:$0xff]
        %v2501 = vld [vmem:[%s2466 + $0x110] sm:$0xff]
        %v2502 = vld [vmem:[%s2466 + $0x118] sm:$0xff]
        %v2503 = vld [vmem:[%s2466 + $0x120] sm:$0xff]
        %v2504 = vld [vmem:[%s2466 + $0x128] sm:$0xff]
        %v2505 = vld [vmem:[%s2466 + $0x130] sm:$0xff]
        %v2506 = vld [vmem:[%s2466 + $0x138] sm:$0xff]
        %v2507 = vld [vmem:[%s2466 + $0x140] sm:$0xff]
        %v2508 = vld [vmem:[%s2466 + $0x148] sm:$0xff]
        %v2509 = vld [vmem:[%s2466 + $0x150] sm:$0xff]
        %v2510 = vld [vmem:[%s2466 + $0x158] sm:$0xff]
        %v2511 = vld [vmem:[%s2466 + $0x160] sm:$0xff]
        %v2512 = vld [vmem:[%s2466 + $0x168] sm:$0xff]
        %v2513 = vld [vmem:[%s2466 + $0x170] sm:$0xff]
        %v2514 = vld [vmem:[%s2466 + $0x178] sm:$0xff]
        %2515 = vmatprep.subr.mxu0 0.0
        %2516 = vmatpush1.msra.mxu0 %v2467
        %2517 = vmatprep.subr.mxu0 0.0
        %2518 = vmatpush1.msra.mxu0 %v2468
        %2519 = vmatprep.subr.mxu0 0.0
        %2520 = vmatpush1.msra.mxu0 %v2469
        %2521 = vmatprep.subr.mxu0 0.0
        %2522 = vmatpush1.msra.mxu0 %v2470
        %2523 = vmatprep.subr.mxu0 0.0
        %2524 = vmatpush1.msra.mxu0 %v2471
        %2525 = vmatprep.subr.mxu0 0.0
        %2526 = vmatpush1.msra.mxu0 %v2472
        %2527 = vmatprep.subr.mxu0 0.0
        %2528 = vmatpush1.msra.mxu0 %v2473
        %2529 = vmatprep.subr.mxu0 0.0
        %2530 = vmatpush1.msra.mxu0 %v2474
        %2531 = vmatprep.subr.mxu0 0.0
        %2532 = vmatpush1.msra.mxu0 %v2475
        %2533 = vmatprep.subr.mxu0 0.0
        %2534 = vmatpush1.msra.mxu0 %v2476
        %2535 = vmatprep.subr.mxu0 0.0
        %2536 = vmatpush1.msra.mxu0 %v2477
        %2537 = vmatprep.subr.mxu0 0.0
        %2538 = vmatpush1.msra.mxu0 %v2478
        %2539 = vmatprep.subr.mxu0 0.0
        %2540 = vmatpush1.msra.mxu0 %v2479
        %2541 = vmatprep.subr.mxu0 0.0
        %2542 = vmatpush1.msra.mxu0 %v2480
        %2543 = vmatprep.subr.mxu0 0.0
        %2544 = vmatpush1.msra.mxu0 %v2481
        %2545 = vmatprep.subr.mxu0 0.0
        %2546 = vmatpush1.msra.mxu0 %v2482
        %2547 = vmatprep.subr.mxu0 0.0
        %2548 = vmatpush1.msra.mxu0 %v2483
        %2549 = vmatprep.subr.mxu0 0.0
        %2550 = vmatpush1.msra.mxu0 %v2484
        %2551 = vmatprep.subr.mxu0 0.0
        %2552 = vmatpush1.msra.mxu0 %v2485
        %2553 = vmatprep.subr.mxu0 0.0
        %2554 = vmatpush1.msra.mxu0 %v2486
        %2555 = vmatprep.subr.mxu0 0.0
        %2556 = vmatpush1.msra.mxu0 %v2487
        %2557 = vmatprep.subr.mxu0 0.0
        %2558 = vmatpush1.msra.mxu0 %v2488
        %2559 = vmatprep.subr.mxu0 0.0
        %2560 = vmatpush1.msra.mxu0 %v2489
        %2561 = vmatprep.subr.mxu0 0.0
        %2562 = vmatpush1.msra.mxu0 %v2490
        %2563 = vmatprep.subr.mxu0 0.0
        %2564 = vmatpush1.msra.mxu0 %v2491
        %2565 = vmatprep.subr.mxu0 0.0
        %2566 = vmatpush1.msra.mxu0 %v2492
        %2567 = vmatprep.subr.mxu0 0.0
        %2568 = vmatpush1.msra.mxu0 %v2493
        %2569 = vmatprep.subr.mxu0 0.0
        %2570 = vmatpush1.msra.mxu0 %v2494
        %2571 = vmatprep.subr.mxu0 0.0
        %2572 = vmatpush1.msra.mxu0 %v2495
        %2573 = vmatprep.subr.mxu0 0.0
        %2574 = vmatpush1.msra.mxu0 %v2496
        %2575 = vmatprep.subr.mxu0 0.0
        %2576 = vmatpush1.msra.mxu0 %v2497
        %2577 = vmatprep.subr.mxu0 0.0
        %2578 = vmatpush1.msra.mxu0 %v2498
        %2579 = vmatprep.mubr.f32.mxu0 %v1631
        %2580 = vmatmul.mubr.f32.gmra.mrb[0].mxu0 %v1720
        %v2581 = vpop.f32.mrb[0].mxu0
        %v2582 = vadd.f32 0.0, %v2581
        %v2583 = vpop.f32.mrb[0].mxu0
        %2584 = vmatprep.mubr.f32.mxu0 %v1632
        %2585 = vmatmul.mubr.f32.gmra.mrb[0].mxu0 %v1676
        %v2586 = vpop.f32.mrb[0].mxu0
        %v2587 = vadd.f32 0.0, %v2586
        %v2588 = vpop.f32.mrb[0].mxu0
        %2589 = vmatprep.mubr.f32.mxu0 %v1633
        %2590 = vmatmul.mubr.f32.gmra.mrb[0].mxu0 %v1721
        %v2591 = vpop.f32.mrb[0].mxu0
        %v2592 = vadd.f32 0.0, %v2591
        %v2593 = vpop.f32.mrb[0].mxu0
        %2594 = vmatprep.mubr.f32.mxu0 %v1634
        %2595 = vmatmul.mubr.f32.gmra.mrb[0].mxu0 %v1679
        %v2596 = vpop.f32.mrb[0].mxu0
        %v2597 = vadd.f32 0.0, %v2596
        %v2598 = vpop.f32.mrb[0].mxu0
        %2599 = vmatprep.mubr.f32.mxu0 %v1635
        %2600 = vmatmul.mubr.f32.gmra.mrb[0].mxu0 %v1722
        %v2601 = vpop.f32.mrb[0].mxu0
        %v2602 = vadd.f32 0.0, %v2601
        %v2603 = vpop.f32.mrb[0].mxu0
        %2604 = vmatprep.mubr.f32.mxu0 %v1636
        %2605 = vmatmul.mubr.f32.gmra.mrb[0].mxu0 %v1682
        %v2606 = vpop.f32.mrb[0].mxu0
        %v2607 = vadd.f32 0.0, %v2606
        %v2608 = vpop.f32.mrb[0].mxu0
        %2609 = vmatprep.mubr.f32.mxu0 %v1637
        %2610 = vmatmul.mubr.f32.gmra.mrb[0].mxu0 %v1723
        %v2611 = vpop.f32.mrb[0].mxu0
        %v2612 = vadd.f32 0.0, %v2611
        %v2613 = vpop.f32.mrb[0].mxu0
        %2614 = vmatprep.mubr.f32.mxu0 %v1638
        %2615 = vmatmul.mubr.f32.gmra.mrb[0].mxu0 %v1685
        %v2616 = vpop.f32.mrb[0].mxu0
        %v2617 = vadd.f32 0.0, %v2616
        %v2618 = vpop.f32.mrb[0].mxu0
        %2619 = vmatprep.mubr.f32.mxu0 %v1639
        %2620 = vmatmul.mubr.f32.gmra.mrb[0].mxu0 %v1724
        %v2621 = vpop.f32.mrb[0].mxu0
        %v2622 = vadd.f32 0.0, %v2621
        %v2623 = vpop.f32.mrb[0].mxu0
        %2624 = vmatprep.mubr.f32.mxu0 %v1640
        %2625 = vmatmul.mubr.f32.gmra.mrb[0].mxu0 %v1688
        %v2626 = vpop.f32.mrb[0].mxu0
        %v2627 = vadd.f32 0.0, %v2626
        %v2628 = vpop.f32.mrb[0].mxu0
        %2629 = vmatprep.mubr.f32.mxu0 %v1641
        %2630 = vmatmul.mubr.f32.gmra.mrb[0].mxu0 %v1725
        %v2631 = vpop.f32.mrb[0].mxu0
        %v2632 = vadd.f32 0.0, %v2631
        %v2633 = vpop.f32.mrb[0].mxu0
        %2634 = vmatprep.mubr.f32.mxu0 %v1642
        %2635 = vmatmul.mubr.f32.gmra.mrb[0].mxu0 %v1691
        %v2636 = vpop.f32.mrb[0].mxu0
        %v2637 = vadd.f32 0.0, %v2636
        %v2638 = vpop.f32.mrb[0].mxu0
        %2639 = vmatprep.mubr.f32.mxu0 %v1643
        %2640 = vmatmul.mubr.f32.gmra.mrb[0].mxu0 %v1726
        %v2641 = vpop.f32.mrb[0].mxu0
        %v2642 = vadd.f32 0.0, %v2641
        %v2643 = vpop.f32.mrb[0].mxu0
        %2644 = vmatprep.mubr.f32.mxu0 %v1644
        %2645 = vmatmul.mubr.f32.gmra.mrb[0].mxu0 %v1694
        %v2646 = vpop.f32.mrb[0].mxu0
        %v2647 = vadd.f32 0.0, %v2646
        %v2648 = vpop.f32.mrb[0].mxu0
        %2649 = vmatprep.mubr.f32.mxu0 %v1645
        %2650 = vmatmul.mubr.f32.gmra.mrb[0].mxu0 %v1727
        %v2651 = vpop.f32.mrb[0].mxu0
        %v2652 = vadd.f32 0.0, %v2651
        %v2653 = vpop.f32.mrb[0].mxu0
        %2654 = vmatprep.mubr.f32.mxu0 %v1646
        %2655 = vmatmul.mubr.f32.gmra.mrb[0].mxu0 %v1697
        %v2656 = vpop.f32.mrb[0].mxu0
        %v2657 = vadd.f32 0.0, %v2656
        %v2658 = vpop.f32.mrb[0].mxu0
        %2659 = vdwg.mxu0
        %2660 = vmatprep.subr.mxu0 0.0
        %2661 = vmatpush1.msra.mxu0 %v2499
        %2662 = vmatprep.subr.mxu0 0.0
        %2663 = vmatpush1.msra.mxu0 %v2500
        %2664 = vmatprep.subr.mxu0 0.0
        %2665 = vmatpush1.msra.mxu0 %v2501
        %2666 = vmatprep.subr.mxu0 0.0
        %2667 = vmatpush1.msra.mxu0 %v2502
        %2668 = vmatprep.subr.mxu0 0.0
        %2669 = vmatpush1.msra.mxu0 %v2503
        %2670 = vmatprep.subr.mxu0 0.0
        %2671 = vmatpush1.msra.mxu0 %v2504
        %2672 = vmatprep.subr.mxu0 0.0
        %2673 = vmatpush1.msra.mxu0 %v2505
        %2674 = vmatprep.subr.mxu0 0.0
        %2675 = vmatpush1.msra.mxu0 %v2506
        %2676 = vmatprep.subr.mxu0 0.0
        %2677 = vmatpush1.msra.mxu0 %v2507
        %2678 = vmatprep.subr.mxu0 0.0
        %2679 = vmatpush1.msra.mxu0 %v2508
        %2680 = vmatprep.subr.mxu0 0.0
        %2681 = vmatpush1.msra.mxu0 %v2509
        %2682 = vmatprep.subr.mxu0 0.0
        %2683 = vmatpush1.msra.mxu0 %v2510
        %2684 = vmatprep.subr.mxu0 0.0
        %2685 = vmatpush1.msra.mxu0 %v2511
        %2686 = vmatprep.subr.mxu0 0.0
        %2687 = vmatpush1.msra.mxu0 %v2512
        %2688 = vmatprep.subr.mxu0 0.0
        %2689 = vmatpush1.msra.mxu0 %v2513
        %2690 = vmatprep.subr.mxu0 0.0
        %2691 = vmatpush1.msra.mxu0 %v2514
        %2692 = vmatprep.subr.mxu0 0.0
        %2693 = vmatpush1.msra.mxu0 0.0
        %2694 = vmatprep.subr.mxu0 0.0
        %2695 = vmatpush1.msra.mxu0 0.0
        %2696 = vmatprep.subr.mxu0 0.0
        %2697 = vmatpush1.msra.mxu0 0.0
        %2698 = vmatprep.subr.mxu0 0.0
        %2699 = vmatpush1.msra.mxu0 0.0
        %2700 = vmatprep.subr.mxu0 0.0
        %2701 = vmatpush1.msra.mxu0 0.0
        %2702 = vmatprep.subr.mxu0 0.0
        %2703 = vmatpush1.msra.mxu0 0.0
        %2704 = vmatprep.subr.mxu0 0.0
        %2705 = vmatpush1.msra.mxu0 0.0
        %2706 = vmatprep.subr.mxu0 0.0
        %2707 = vmatpush1.msra.mxu0 0.0
        %2708 = vmatprep.subr.mxu0 0.0
        %2709 = vmatpush1.msra.mxu0 0.0
        %2710 = vmatprep.subr.mxu0 0.0
        %2711 = vmatpush1.msra.mxu0 0.0
        %2712 = vmatprep.subr.mxu0 0.0
        %2713 = vmatpush1.msra.mxu0 0.0
        %2714 = vmatprep.subr.mxu0 0.0
        %2715 = vmatpush1.msra.mxu0 0.0
        %2716 = vmatprep.subr.mxu0 0.0
        %2717 = vmatpush1.msra.mxu0 0.0
        %2718 = vmatprep.subr.mxu0 0.0
        %2719 = vmatpush1.msra.mxu0 0.0
        %2720 = vmatprep.subr.mxu0 0.0
        %2721 = vmatpush1.msra.mxu0 0.0
        %2722 = vmatprep.subr.mxu0 0.0
        %2723 = vmatpush1.msra.mxu0 0.0
        %2724 = vmatprep.mubr.f32.mxu0 0.0
        %2725 = vmatmul.mubr.f32.gmra.mrb[0].mxu0 %v1737
        %v2726 = vpop.f32.mrb[0].mxu0
        %v2727 = vadd.f32 %v2582, %v2726
        %v2728 = vpop.f32.mrb[0].mxu0
        %2729 = vmatprep.mubr.f32.mxu0 0.0
        %2730 = vmatmul.mubr.f32.gmra.mrb[0].mxu0 %v1781
        %v2731 = vpop.f32.mrb[0].mxu0
        %v2732 = vadd.f32 %v2587, %v2731
        %v2733 = vpop.f32.mrb[0].mxu0
        %2734 = vmatprep.mubr.f32.mxu0 0.0
        %2735 = vmatmul.mubr.f32.gmra.mrb[0].mxu0 %v1740
        %v2736 = vpop.f32.mrb[0].mxu0
        %v2737 = vadd.f32 %v2592, %v2736
        %v2738 = vpop.f32.mrb[0].mxu0
        %2739 = vmatprep.mubr.f32.mxu0 0.0
        %2740 = vmatmul.mubr.f32.gmra.mrb[0].mxu0 %v1782
        %v2741 = vpop.f32.mrb[0].mxu0
        %v2742 = vadd.f32 %v2597, %v2741
        %v2743 = vpop.f32.mrb[0].mxu0
        %2744 = vmatprep.mubr.f32.mxu0 0.0
        %2745 = vmatmul.mubr.f32.gmra.mrb[0].mxu0 %v1743
        %v2746 = vpop.f32.mrb[0].mxu0
        %v2747 = vadd.f32 %v2602, %v2746
        %v2748 = vpop.f32.mrb[0].mxu0
        %2749 = vmatprep.mubr.f32.mxu0 0.0
        %2750 = vmatmul.mubr.f32.gmra.mrb[0].mxu0 %v1783
        %v2751 = vpop.f32.mrb[0].mxu0
        %v2752 = vadd.f32 %v2607, %v2751
        %v2753 = vpop.f32.mrb[0].mxu0
        %2754 = vmatprep.mubr.f32.mxu0 0.0
        %2755 = vmatmul.mubr.f32.gmra.mrb[0].mxu0 %v1746
        %v2756 = vpop.f32.mrb[0].mxu0
        %v2757 = vadd.f32 %v2612, %v2756
        %v2758 = vpop.f32.mrb[0].mxu0
        %2759 = vmatprep.mubr.f32.mxu0 0.0
        %2760 = vmatmul.mubr.f32.gmra.mrb[0].mxu0 %v1784
        %v2761 = vpop.f32.mrb[0].mxu0
        %v2762 = vadd.f32 %v2617, %v2761
        %v2763 = vpop.f32.mrb[0].mxu0
        %2764 = vmatprep.mubr.f32.mxu0 0.0
        %2765 = vmatmul.mubr.f32.gmra.mrb[0].mxu0 %v1749
        %v2766 = vpop.f32.mrb[0].mxu0
        %v2767 = vadd.f32 %v2622, %v2766
        %v2768 = vpop.f32.mrb[0].mxu0
        %2769 = vmatprep.mubr.f32.mxu0 0.0
        %2770 = vmatmul.mubr.f32.gmra.mrb[0].mxu0 %v1785
        %v2771 = vpop.f32.mrb[0].mxu0
        %v2772 = vadd.f32 %v2627, %v2771
        %v2773 = vpop.f32.mrb[0].mxu0
        %2774 = vmatprep.mubr.f32.mxu0 0.0
        %2775 = vmatmul.mubr.f32.gmra.mrb[0].mxu0 %v1752
        %v2776 = vpop.f32.mrb[0].mxu0
        %v2777 = vadd.f32 %v2632, %v2776
        %v2778 = vpop.f32.mrb[0].mxu0
        %2779 = vmatprep.mubr.f32.mxu0 0.0
        %2780 = vmatmul.mubr.f32.gmra.mrb[0].mxu0 %v1786
        %v2781 = vpop.f32.mrb[0].mxu0
        %v2782 = vadd.f32 %v2637, %v2781
        %v2783 = vpop.f32.mrb[0].mxu0
        %2784 = vmatprep.mubr.f32.mxu0 0.0
        %2785 = vmatmul.mubr.f32.gmra.mrb[0].mxu0 %v1755
        %v2786 = vpop.f32.mrb[0].mxu0
        %v2787 = vadd.f32 %v2642, %v2786
        %v2788 = vpop.f32.mrb[0].mxu0
        %2789 = vmatprep.mubr.f32.mxu0 0.0
        %2790 = vmatmul.mubr.f32.gmra.mrb[0].mxu0 %v1787
        %v2791 = vpop.f32.mrb[0].mxu0
        %v2792 = vadd.f32 %v2647, %v2791
        %v2793 = vpop.f32.mrb[0].mxu0
        %2794 = vmatprep.mubr.f32.mxu0 0.0
        %2795 = vmatmul.mubr.f32.gmra.mrb[0].mxu0 %v1758
        %v2796 = vpop.f32.mrb[0].mxu0
        %v2797 = vadd.f32 %v2652, %v2796
        %v2798 = vpop.f32.mrb[0].mxu0
        %2799 = vmatprep.mubr.f32.mxu0 0.0
        %2800 = vmatmul.mubr.f32.gmra.mrb[0].mxu0 %v1788
        %v2801 = vpop.f32.mrb[0].mxu0
        %v2802 = vadd.f32 %v2657, %v2801
        %v2803 = vpop.f32.mrb[0].mxu0
        %2804 = vdwg.mxu0
        %v2805 = vadd.f32 %v2388, %v2727
        %v2806 = vadd.f32 %v2393, %v2732
        %v2807 = vadd.f32 %v2398, %v2737
        %v2808 = vadd.f32 %v2403, %v2742
        %v2809 = vadd.f32 %v2408, %v2747
        %v2810 = vadd.f32 %v2413, %v2752
        %v2811 = vadd.f32 %v2418, %v2757
        %v2812 = vadd.f32 %v2423, %v2762
        %v2813 = vadd.f32 %v2428, %v2767
        %v2814 = vadd.f32 %v2433, %v2772
        %v2815 = vadd.f32 %v2438, %v2777
        %v2816 = vadd.f32 %v2443, %v2782
        %v2817 = vadd.f32 %v2448, %v2787
        %v2818 = vadd.f32 %v2453, %v2792
        %v2819 = vadd.f32 %v2458, %v2797
        %v2820 = vadd.f32 %v2463, %v2802
        %v2821 = vld [vmem:[%s4] sm:$0x1]
        %v2822 = vld [vmem:[%s4 + $0x1] sm:$0x1]
        %s2823 = scalar_lea.vmem %s263, 48
        %v2824 = vld [vmem:[%s2823 + $0x1] sm:$0xff]
        %v2825 = vld [vmem:[%s2823 + $0x9] sm:$0xff]
        %v2826 = vld [vmem:[%s2823 + $0x19] sm:$0xff]
        %v2827 = vld [vmem:[%s2823 + $0x21] sm:$0xff]
        %v2828 = vld [vmem:[%s2823 + $0x31] sm:$0xff]
        %v2829 = vld [vmem:[%s2823 + $0x39] sm:$0xff]
        %v2830 = vld [vmem:[%s2823 + $0x49] sm:$0xff]
        %v2831 = vld [vmem:[%s2823 + $0x51] sm:$0xff]
        %v2832 = vld [vmem:[%s2823 + $0x61] sm:$0xff]
        %v2833 = vld [vmem:[%s2823 + $0x69] sm:$0xff]
        %v2834 = vld [vmem:[%s2823 + $0x79] sm:$0xff]
        %v2835 = vld [vmem:[%s2823 + $0x81] sm:$0xff]
        %v2836 = vld [vmem:[%s2823 + $0x91] sm:$0xff]
        %v2837 = vld [vmem:[%s2823 + $0x99] sm:$0xff]
        %v2838 = vld [vmem:[%s2823 + $0xa9] sm:$0xff]
        %v2839 = vld [vmem:[%s2823 + $0xb1] sm:$0xff]
        %v2840 = vlaneseq
        %v2841 = vshrl.u32 %v2840, 7
        %v2842 = vsub.s32 0, %v2841
        %v2843 = vrot.slane %v2821, %v2842
        %v2844 = vmul.f32 %v2805, %v2843
        %v2845 = vmul.f32 %v2806, %v2843
        %v2846 = vmul.f32 %v2807, %v2843
        %v2847 = vmul.f32 %v2808, %v2843
        %v2848 = vmul.f32 %v2809, %v2843
        %v2849 = vmul.f32 %v2810, %v2843
        %v2850 = vmul.f32 %v2811, %v2843
        %v2851 = vmul.f32 %v2812, %v2843
        %v2852 = vmul.f32 %v2813, %v2843
        %v2853 = vmul.f32 %v2814, %v2843
        %v2854 = vmul.f32 %v2815, %v2843
        %v2855 = vmul.f32 %v2816, %v2843
        %v2856 = vmul.f32 %v2817, %v2843
        %v2857 = vmul.f32 %v2818, %v2843
        %v2858 = vmul.f32 %v2819, %v2843
        %v2859 = vmul.f32 %v2820, %v2843
        %v2860 = vlaneseq
        %v2861 = vshrl.u32 %v2860, 7
        %v2862 = vsub.s32 0, %v2861
        %v2863 = vrot.slane %v2822, %v2862
        %v2864 = vadd.f32 %v2844, %v2863
        %v2865 = vadd.f32 %v2845, %v2863
        %v2866 = vadd.f32 %v2846, %v2863
        %v2867 = vadd.f32 %v2847, %v2863
        %v2868 = vadd.f32 %v2848, %v2863
        %v2869 = vadd.f32 %v2849, %v2863
        %v2870 = vadd.f32 %v2850, %v2863
        %v2871 = vadd.f32 %v2851, %v2863
        %v2872 = vadd.f32 %v2852, %v2863
        %v2873 = vadd.f32 %v2853, %v2863
        %v2874 = vadd.f32 %v2854, %v2863
        %v2875 = vadd.f32 %v2855, %v2863
        %v2876 = vadd.f32 %v2856, %v2863
        %v2877 = vadd.f32 %v2857, %v2863
        %v2878 = vadd.f32 %v2858, %v2863
        %v2879 = vadd.f32 %v2859, %v2863
        %v2880 = vadd.f32 %v2864, %v2824
        %v2881 = vadd.f32 %v2865, %v2825
        %v2882 = vadd.f32 %v2866, %v2826
        %v2883 = vadd.f32 %v2867, %v2827
        %v2884 = vadd.f32 %v2868, %v2828
        %v2885 = vadd.f32 %v2869, %v2829
        %v2886 = vadd.f32 %v2870, %v2830
        %v2887 = vadd.f32 %v2871, %v2831
        %v2888 = vadd.f32 %v2872, %v2832
        %v2889 = vadd.f32 %v2873, %v2833
        %v2890 = vadd.f32 %v2874, %v2834
        %v2891 = vadd.f32 %v2875, %v2835
        %v2892 = vadd.f32 %v2876, %v2836
        %v2893 = vadd.f32 %v2877, %v2837
        %v2894 = vadd.f32 %v2878, %v2838
        %v2895 = vadd.f32 %v2879, %v2839
        %2896 = vst [vmem:[%s256] sm:$0xff] %v2880
        %2897 = vst [vmem:[%s256 + $0x8] sm:$0xff] %v2881
        %2898 = vst [vmem:[%s256 + $0x10] sm:$0xff] %v2882
        %2899 = vst [vmem:[%s256 + $0x18] sm:$0xff] %v2883
        %2900 = vst [vmem:[%s256 + $0x20] sm:$0xff] %v2884
        %2901 = vst [vmem:[%s256 + $0x28] sm:$0xff] %v2885
        %2902 = vst [vmem:[%s256 + $0x30] sm:$0xff] %v2886
        %2903 = vst [vmem:[%s256 + $0x38] sm:$0xff] %v2887
        %2904 = vst [vmem:[%s256 + $0x40] sm:$0xff] %v2888
        %2905 = vst [vmem:[%s256 + $0x48] sm:$0xff] %v2889
        %2906 = vst [vmem:[%s256 + $0x50] sm:$0xff] %v2890
        %2907 = vst [vmem:[%s256 + $0x58] sm:$0xff] %v2891
        %2908 = vst [vmem:[%s256 + $0x60] sm:$0xff] %v2892
        %2909 = vst [vmem:[%s256 + $0x68] sm:$0xff] %v2893
        %2910 = vst [vmem:[%s256 + $0x70] sm:$0xff] %v2894
        %2911 = vst [vmem:[%s256 + $0x78] sm:$0xff] %v2895
        %s2912 = sand.u32 %s156, 1
        %s2913 = scalar_lea.sflag [#allocation4], %s2912
        %s2914 = sand.u32 %s156, 1
        %s2915 = smul.addr %s2914, 128
        %s2916 = scalar_lea.vmem [#allocation5], %s2915
        // Predicated region
        $region45: #{tpu_custom_call.1} parent=39 // pred_check
          %p2917 = pneg %p166
        $region46: #{tpu_custom_call.1} parent=39 // pred_check_branch
          %2919 = sbr.rel (%p2917) target = $region48
        $region47: #{tpu_custom_call.1} parent=39 // pred_region
          %s2920 = smul.u32 8, %s25
          %s2922 = ssub.s32 2048, 2048
          %2923 = vsyncadd %s2913, %s2922
          %s2924 = smul.addr %s2920, 2
          %s2925 = smul.addr %s24, 32
          %s2926 = sadd.s32 %s2924, %s2925
          %s2927 = smul.addr %s2926, 128
          %s2928 = scalar_lea.hbm %s5, %s2927
          %s2929 = sshll.u32 %s2916, 4
          %s2930 = int_to_ptr.vmem [resolvable:$true] %s2929
          %2935 = dma.vmem_to_hbm [thread:$0]  %s2930, 2048, %s2928, %s2913, 128, 128, 8
        $region48: #{tpu_custom_call.1} parent=39 // pred_fallthru
          _
      $region40: #{tpu_custom_call.1} parent=5 // pred_fallthru
        _
      %p2936 = scmp.le.s32.totalorder 2, %s15
      // Predicated region
      $region49: #{tpu_custom_call.1} parent=5 // pred_check
        %p2937 = pneg %p2936
      $region50: #{tpu_custom_call.1} parent=5 // pred_check_branch
        %2939 = sbr.rel (%p2937) target = $region52
      $region51: #{tpu_custom_call.1} parent=5 // pred_region
        %s2940 = ssub.s32 %s15, 2
        // Predicated region
        $region53: #{tpu_custom_call.1} parent=51 // pred_check
          %p2941 = pneg %p172
        $region54: #{tpu_custom_call.1} parent=51 // pred_check_branch
          %2943 = sbr.rel (%p2941) target = $region56
        $region55: #{tpu_custom_call.1} parent=51 // pred_region
          %s2944 = sand.u32 %s157, 1
          %s2945 = scalar_lea.sflag [#allocation4], %s2944
          %s2946 = sand.u32 %s157, 1
          %s2947 = smul.addr %s2946, 128
          %s2948 = scalar_lea.vmem [#allocation5], %s2947
          %2949 = dma.done %s2945, 2048
        $region56: #{tpu_custom_call.1} parent=51 // pred_fallthru
          _
      $region52: #{tpu_custom_call.1} parent=5 // pred_fallthru
        _
    $region6: #{tpu_custom_call.1} parent=1 // loop_footer
      %s19 = sadd.s32 1, %s15
    $region7: #{tpu_custom_call.1} parent=1 // loop_footer_branch
      %14 = sbr.rel target = $region3
    $region8: #{tpu_custom_call.1} parent=1 // loop_exit
      _
    %2950 = vsyncpa [#allocation3], 1
    %s2951 = scalar_lea.sflag [#allocation3], 1
    %2952 = vsyncpa %s2951, 1
    %2953 = vsyncpa [#allocation4], 1
    %s2954 = scalar_lea.sflag [#allocation4], 1
    %2955 = vsyncpa %s2954, 1

</llo_original>
